<compile_context>
chip_gen: v6e
topology: v6e:2x2x1
jax: 0.10.0
libtpu: 0.0.40
codegen_flags: <defaults>
</compile_context>

<pallas_src>
import jax
import jax.numpy as jnp
from jax.experimental import pallas as pl
from jax.experimental.pallas import tpu as pltpu

HIDDEN = 768      # encoder hidden size (ernie/bert pooler_output dim)
OUT_DIM = 256     # output_embedding_dim
MARGIN = 0.0
SCALE = 20.0


# ----------------------------------------------------------------------------
# Fused kernel: pooler dense+tanh -> reduce linear -> (eval) dropout -> L2 norm
#               -> cosine-sim matrix -> margin/scale -> cross-entropy loss
# ----------------------------------------------------------------------------
def _simcse_fused_kernel(ms_ref, qx_ref, dx_ref, wp_ref, bp_ref, w_ref, b_ref,
                         o_ref):
    """ms:(2,) SMEM [margin, scale]; qx/dx:(B,768) f32 mean-pooled activations;
       wp:(768,768) bf16; bp:(1,768) f32; w:(768,256) bf16; b:(1,256) f32;
       o:(1,1) f32 loss."""
    margin = ms_ref[0]
    scale = ms_ref[1]

    # bf16 weights: loaded into VMEM exactly once, shared by query & doc pass.
    wp = wp_ref[...]
    bp = bp_ref[...]
    w = w_ref[...]
    b = b_ref[...]

    def embed(x):
        # pooler dense + tanh (bf16 MXU inputs, f32 accumulation)
        pooled = jnp.tanh(
            jnp.dot(x.astype(jnp.bfloat16), wp,
                    preferred_element_type=jnp.float32) + bp)
        # 768 -> 256 reduce linear
        y = jnp.dot(pooled.astype(jnp.bfloat16), w,
                    preferred_element_type=jnp.float32) + b
        # TODO(synk): nn.Dropout(p=0.1) is stochastic; implemented in eval mode
        # (identity). Training parity would use pltpu.prng_random_bits.
        sq = jnp.sum(y * y, axis=-1, keepdims=True)
        # F.normalize clamps the norm at 1e-12  ->  clamp norm^2 at 1e-24.
        return y * jax.lax.rsqrt(jnp.maximum(sq, 1e-24))

    q = embed(qx_ref[...])                                       # (B, 256) f32
    d = embed(dx_ref[...])                                       # (B, 256) f32
    batch = q.shape[0]

    # ---- contrastive loss (in-batch negatives, labels = arange(B)) ----
    # f32 similarity: (B,256)x(256,B) is tiny; keeps lse and tgt consistent.
    sim = jax.lax.dot_general(q, d, (((1,), (1,)), ((), ())),
                              preferred_element_type=jnp.float32)   # q @ d.T

    row = jax.lax.broadcasted_iota(jnp.int32, (batch, batch), 0)
    col = jax.lax.broadcasted_iota(jnp.int32, (batch, batch), 1)
    is_diag = row == col
    logits = jnp.where(is_diag, sim - margin, sim) * scale

    # cross-entropy with mean reduction; the target logit is extracted from the
    # SAME logits matrix so there is no precision mismatch with lse.
    m = jnp.max(logits, axis=-1, keepdims=True)
    lse = jnp.log(jnp.sum(jnp.exp(logits - m), axis=-1, keepdims=True)) + m
    tgt = jnp.sum(jnp.where(is_diag, logits, 0.0), axis=-1, keepdims=True)
    loss = jnp.sum(lse - tgt) / batch
    o_ref[...] = jnp.reshape(loss, (1, 1))


def simcse_fused(q_x, d_x, wp_bf16, bp, w_bf16, b, *, margin, scale):
    B = q_x.shape[0]
    vm = pltpu.MemorySpace.VMEM
    sm = pltpu.MemorySpace.SMEM
    ms = jnp.asarray([margin, scale], dtype=jnp.float32)

    # Advisory cost hint so XLA overlaps the embedding-lookup HLO with the
    # kernel's weight DMA.
    flops = 2 * (2 * B) * HIDDEN * (HIDDEN + OUT_DIM) + 2 * B * B * OUT_DIM
    transcendentals = 2 * B * HIDDEN + B * B + 2 * B
    bytes_accessed = (wp_bf16.size * 2 + w_bf16.size * 2
                      + bp.size * 4 + b.size * 4
                      + 2 * B * HIDDEN * 4 + 2 * 4 + 4)

    out = pl.pallas_call(
        _simcse_fused_kernel,
        out_shape=jax.ShapeDtypeStruct((1, 1), jnp.float32),
        in_specs=[pl.BlockSpec(memory_space=sm)]          # margin/scale scalars
                 + [pl.BlockSpec(memory_space=vm)] * 6,   # activations + weights
        out_specs=pl.BlockSpec(memory_space=vm),
        cost_estimate=pl.CostEstimate(flops=flops,
                                      transcendentals=transcendentals,
                                      bytes_accessed=bytes_accessed),
    )(ms, q_x, d_x, wp_bf16, bp, w_bf16, b)
    return out[0, 0]


# ----------------------------------------------------------------------------
# Synthetic encoder front-end (glue, plain JAX)
# ----------------------------------------------------------------------------
def encoder_mean_pool(input_ids, token_type_ids, word_emb, type_emb):
    # TODO(synk): the pretrained ernie3.0 transformer stack is not translated;
    # replaced by a deterministic synthetic encoder (embedding lookup + mean
    # pooling). The pooler dense+tanh runs inside the Pallas kernel.
    tok = word_emb[input_ids]           # (B, S, H)
    typ = type_emb[token_type_ids]      # (B, S, H)
    return jnp.mean(tok + typ, axis=1)  # (B, H)


def simcse_forward(params, query_input_ids, query_token_type_ids,
                   doc_input_ids, doc_token_type_ids,
                   margin=MARGIN, scale=SCALE):
    q_x = encoder_mean_pool(query_input_ids, query_token_type_ids,
                            params["word_emb"], params["type_emb"])
    d_x = encoder_mean_pool(doc_input_ids, doc_token_type_ids,
                            params["word_emb"], params["type_emb"])
    return simcse_fused(q_x, d_x, params["wp"], params["bp"],
                        params["w_red"], params["b_red"],
                        margin=margin, scale=scale)


# ----------------------------------------------------------------------------
# Pure-JAX reference (mirrors the bf16-weight / f32-accumulate path)
# ----------------------------------------------------------------------------
def simcse_forward_ref(params, q_ids, q_tt, d_ids, d_tt,
                       margin=MARGIN, scale=SCALE):
    def emb_fn(ids, tt):
        x = encoder_mean_pool(ids, tt, params["word_emb"], params["type_emb"])
        pooled = jnp.tanh(
            jnp.dot(x.astype(jnp.bfloat16), params["wp"],
                    preferred_element_type=jnp.float32) + params["bp"])
        y = jnp.dot(pooled.astype(jnp.bfloat16), params["w_red"],
                    preferred_element_type=jnp.float32) + params["b_red"]
        return y / jnp.maximum(jnp.linalg.norm(y, axis=-1, keepdims=True), 1e-12)

    q, d = emb_fn(q_ids, q_tt), emb_fn(d_ids, d_tt)
    B = q.shape[0]
    sim = jnp.dot(q, d.T, preferred_element_type=jnp.float32)
    logits = (sim - margin * jnp.eye(B)) * scale
    logp = jax.nn.log_softmax(logits, axis=-1)
    return -jnp.mean(logp[jnp.arange(B), jnp.arange(B)])


if __name__ == "__main__":
    key = jax.random.PRNGKey(0)
    k_we, k_te, k_wp, k_bp, k_w, k_b, k_qi, k_di, k_tt = jax.random.split(key, 9)

    B, S, VOCAB = 4, 8, 97

    params = {
        "word_emb": jax.random.normal(k_we, (VOCAB, HIDDEN), jnp.float32) * 0.02,
        "type_emb": jax.random.normal(k_te, (2, HIDDEN), jnp.float32) * 0.02,
        # MXU weights stored in bf16 (half the HBM->VMEM DMA, no in-kernel cast)
        "wp":    (jax.random.normal(k_wp, (HIDDEN, HIDDEN), jnp.float32)
                  * 0.02).astype(jnp.bfloat16),
        "bp":    jax.random.normal(k_bp, (1, HIDDEN), jnp.float32) * 0.02,
        "w_red": (jax.random.normal(k_w, (HIDDEN, OUT_DIM), jnp.float32)
                  * 0.02).astype(jnp.bfloat16),
        "b_red": jax.random.normal(k_b, (1, OUT_DIM), jnp.float32) * 0.02,
    }

    query_input_ids = jax.random.randint(k_qi, (B, S), 0, VOCAB, jnp.int32)
    doc_input_ids = jax.random.randint(k_di, (B, S), 0, VOCAB, jnp.int32)
    query_token_type_ids = jnp.zeros((B, S), jnp.int32)
    doc_token_type_ids = jax.random.randint(k_tt, (B, S), 0, 2, jnp.int32)

    # Default margin/scale (matches the PyTorch module defaults).
    loss = simcse_forward(params, query_input_ids, query_token_type_ids,
                          doc_input_ids, doc_token_type_ids)
    loss = jax.block_until_ready(loss)
    ref = simcse_forward_ref(params, query_input_ids, query_token_type_ids,
                             doc_input_ids, doc_token_type_ids)
    assert jnp.isfinite(loss), "loss is not finite"
    assert jnp.allclose(loss, ref, rtol=5e-3, atol=5e-3), (loss, ref)

    # Nonzero-margin check (runtime SMEM scalars -> no kernel recompile).
    loss_m = simcse_forward(params, query_input_ids, query_token_type_ids,
                            doc_input_ids, doc_token_type_ids,
                            margin=0.2, scale=20.0)
    loss_m = jax.block_until_ready(loss_m)
    ref_m = simcse_forward_ref(params, query_input_ids, query_token_type_ids,
                               doc_input_ids, doc_token_type_ids,
                               margin=0.2, scale=20.0)
    assert jnp.isfinite(loss_m), "margin loss is not finite"
    assert jnp.allclose(loss_m, ref_m, rtol=5e-3, atol=5e-3), (loss_m, ref_m)

    print("KERNEL_OK")
</pallas_src>

<mosaic_0001>
module attributes {stable_mosaic.version = 11 : i64} {
  func.func @_simcse_fused_kernel(%arg0: memref<2xf32, #tpu.memory_space<smem>>, %arg1: memref<4x768xf32, #tpu.memory_space<vmem>>, %arg2: memref<4x768xf32, #tpu.memory_space<vmem>>, %arg3: memref<768x768xbf16, #tpu.memory_space<vmem>>, %arg4: memref<1x768xf32, #tpu.memory_space<vmem>>, %arg5: memref<768x256xbf16, #tpu.memory_space<vmem>>, %arg6: memref<1x256xf32, #tpu.memory_space<vmem>>, %arg7: memref<1x1xf32, #tpu.memory_space<vmem>>) attributes {dimension_semantics = [], scalar_prefetch = 0 : i64, scratch_operands = 0 : i64, tpu.core_type = #tpu.core_type<tc>} {
    %c0 = arith.constant 0 : index
    %0 = memref.load %arg0[%c0] : memref<2xf32, #tpu.memory_space<smem>>
    %c1 = arith.constant 1 : index
    %1 = memref.load %arg0[%c1] : memref<2xf32, #tpu.memory_space<smem>>
    %c0_0 = arith.constant 0 : index
    %c0_1 = arith.constant 0 : index
    %2 = vector.load %arg3[%c0_0, %c0_1] : memref<768x768xbf16, #tpu.memory_space<vmem>>, vector<768x768xbf16>
    %c0_2 = arith.constant 0 : index
    %c0_3 = arith.constant 0 : index
    %3 = vector.load %arg4[%c0_2, %c0_3] : memref<1x768xf32, #tpu.memory_space<vmem>>, vector<1x768xf32>
    %c0_4 = arith.constant 0 : index
    %c0_5 = arith.constant 0 : index
    %4 = vector.load %arg5[%c0_4, %c0_5] : memref<768x256xbf16, #tpu.memory_space<vmem>>, vector<768x256xbf16>
    %c0_6 = arith.constant 0 : index
    %c0_7 = arith.constant 0 : index
    %5 = vector.load %arg6[%c0_6, %c0_7] : memref<1x256xf32, #tpu.memory_space<vmem>>, vector<1x256xf32>
    %c0_8 = arith.constant 0 : index
    %c0_9 = arith.constant 0 : index
    %6 = vector.load %arg1[%c0_8, %c0_9] : memref<4x768xf32, #tpu.memory_space<vmem>>, vector<4x768xf32>
    %7 = arith.truncf %6 : vector<4x768xf32> to vector<4x768xbf16>
    %cst = arith.constant dense<0.000000e+00> : vector<4x768xf32>
    %8 = tpu.matmul %7, %2, %cst {dimension_numbers = #tpu.dot_dimension_numbers<[1], [0], [0], [1], [0, 0, 1, 1], [], []>} : vector<4x768xbf16>, vector<768x768xbf16>, vector<4x768xf32> -> vector<4x768xf32>
    %9 = vector.broadcast %3 : vector<1x768xf32> to vector<4x768xf32>
    %10 = arith.addf %8, %9 : vector<4x768xf32>
    %11 = math.tanh %10 : vector<4x768xf32>
    %12 = arith.truncf %11 : vector<4x768xf32> to vector<4x768xbf16>
    %cst_10 = arith.constant dense<0.000000e+00> : vector<4x256xf32>
    %13 = tpu.matmul %12, %4, %cst_10 {dimension_numbers = #tpu.dot_dimension_numbers<[1], [0], [0], [1], [0, 0, 1, 1], [], []>} : vector<4x768xbf16>, vector<768x256xbf16>, vector<4x256xf32> -> vector<4x256xf32>
    %14 = vector.broadcast %5 : vector<1x256xf32> to vector<4x256xf32>
    %15 = arith.addf %13, %14 : vector<4x256xf32>
    %16 = arith.mulf %15, %15 : vector<4x256xf32>
    %cst_11 = arith.constant dense<0.000000e+00> : vector<4xf32>
    %17 = vector.multi_reduction <add>, %16, %cst_11 [1] : vector<4x256xf32> to vector<4xf32>
    %18 = vector.shape_cast %17 : vector<4xf32> to vector<4x1xf32>
    %cst_12 = arith.constant 1.000000e-24 : f32
    %19 = vector.broadcast %cst_12 : f32 to vector<4x1xf32>
    %20 = arith.maximumf %18, %19 : vector<4x1xf32>
    %21 = math.rsqrt %20 : vector<4x1xf32>
    %22 = vector.broadcast %21 : vector<4x1xf32> to vector<4x256xf32>
    %23 = arith.mulf %15, %22 : vector<4x256xf32>
    %c0_13 = arith.constant 0 : index
    %c0_14 = arith.constant 0 : index
    %24 = vector.load %arg2[%c0_13, %c0_14] : memref<4x768xf32, #tpu.memory_space<vmem>>, vector<4x768xf32>
    %25 = arith.truncf %24 : vector<4x768xf32> to vector<4x768xbf16>
    %cst_15 = arith.constant dense<0.000000e+00> : vector<4x768xf32>
    %26 = tpu.matmul %25, %2, %cst_15 {dimension_numbers = #tpu.dot_dimension_numbers<[1], [0], [0], [1], [0, 0, 1, 1], [], []>} : vector<4x768xbf16>, vector<768x768xbf16>, vector<4x768xf32> -> vector<4x768xf32>
    %27 = vector.broadcast %3 : vector<1x768xf32> to vector<4x768xf32>
    %28 = arith.addf %26, %27 : vector<4x768xf32>
    %29 = math.tanh %28 : vector<4x768xf32>
    %30 = arith.truncf %29 : vector<4x768xf32> to vector<4x768xbf16>
    %cst_16 = arith.constant dense<0.000000e+00> : vector<4x256xf32>
    %31 = tpu.matmul %30, %4, %cst_16 {dimension_numbers = #tpu.dot_dimension_numbers<[1], [0], [0], [1], [0, 0, 1, 1], [], []>} : vector<4x768xbf16>, vector<768x256xbf16>, vector<4x256xf32> -> vector<4x256xf32>
    %32 = vector.broadcast %5 : vector<1x256xf32> to vector<4x256xf32>
    %33 = arith.addf %31, %32 : vector<4x256xf32>
    %34 = arith.mulf %33, %33 : vector<4x256xf32>
    %cst_17 = arith.constant dense<0.000000e+00> : vector<4xf32>
    %35 = vector.multi_reduction <add>, %34, %cst_17 [1] : vector<4x256xf32> to vector<4xf32>
    %36 = vector.shape_cast %35 : vector<4xf32> to vector<4x1xf32>
    %cst_18 = arith.constant 1.000000e-24 : f32
    %37 = vector.broadcast %cst_18 : f32 to vector<4x1xf32>
    %38 = arith.maximumf %36, %37 : vector<4x1xf32>
    %39 = math.rsqrt %38 : vector<4x1xf32>
    %40 = vector.broadcast %39 : vector<4x1xf32> to vector<4x256xf32>
    %41 = arith.mulf %33, %40 : vector<4x256xf32>
    %cst_19 = arith.constant dense<0.000000e+00> : vector<4x4xf32>
    %42 = tpu.matmul %23, %41, %cst_19 {dimension_numbers = #tpu.dot_dimension_numbers<[1], [1], [0], [0], [0, 0, 1, 0], [], []>} : vector<4x256xf32>, vector<4x256xf32>, vector<4x4xf32> -> vector<4x4xf32>
    %43 = tpu.iota {dimensions = array<i32: 0>} : vector<4x4xi32>
    %44 = tpu.iota {dimensions = array<i32: 1>} : vector<4x4xi32>
    %45 = arith.cmpi eq, %43, %44 : vector<4x4xi32>
    %46 = vector.broadcast %0 : f32 to vector<4x4xf32>
    %47 = arith.subf %42, %46 : vector<4x4xf32>
    %48 = arith.select %45, %47, %42 : vector<4x4xi1>, vector<4x4xf32>
    %49 = vector.broadcast %1 : f32 to vector<4x4xf32>
    %50 = arith.mulf %48, %49 : vector<4x4xf32>
    %cst_20 = arith.constant dense<0xFF800000> : vector<4xf32>
    %51 = vector.multi_reduction <maximumf>, %50, %cst_20 [1] : vector<4x4xf32> to vector<4xf32>
    %52 = vector.shape_cast %51 : vector<4xf32> to vector<4x1xf32>
    %53 = vector.broadcast %52 : vector<4x1xf32> to vector<4x4xf32>
    %54 = arith.subf %50, %53 : vector<4x4xf32>
    %55 = math.exp %54 : vector<4x4xf32>
    %cst_21 = arith.constant dense<0.000000e+00> : vector<4xf32>
    %56 = vector.multi_reduction <add>, %55, %cst_21 [1] : vector<4x4xf32> to vector<4xf32>
    %57 = vector.shape_cast %56 : vector<4xf32> to vector<4x1xf32>
    %58 = math.log %57 : vector<4x1xf32>
    %59 = arith.addf %58, %52 : vector<4x1xf32>
    %cst_22 = arith.constant 0.000000e+00 : f32
    %60 = vector.broadcast %cst_22 : f32 to vector<4x4xf32>
    %61 = arith.select %45, %50, %60 : vector<4x4xi1>, vector<4x4xf32>
    %cst_23 = arith.constant dense<0.000000e+00> : vector<4xf32>
    %62 = vector.multi_reduction <add>, %61, %cst_23 [1] : vector<4x4xf32> to vector<4xf32>
    %63 = vector.shape_cast %62 : vector<4xf32> to vector<4x1xf32>
    %64 = arith.subf %59, %63 : vector<4x1xf32>
    %65 = vector.shape_cast %64 : vector<4x1xf32> to vector<1x4x1xf32>
    %cst_24 = arith.constant dense<0.000000e+00> : vector<1xf32>
    %66 = vector.multi_reduction <add>, %65, %cst_24 [1, 2] : vector<1x4x1xf32> to vector<1xf32>
    %67 = vector.shape_cast %66 : vector<1xf32> to vector<1x1x1xf32>
    %68 = vector.extract %67[0, 0, 0] : f32 from vector<1x1x1xf32>
    %cst_25 = arith.constant 4.000000e+00 : f32
    %69 = arith.divf %68, %cst_25 : f32
    %70 = vector.broadcast %69 : f32 to vector<1x1xf32>
    %c0_26 = arith.constant 0 : index
    %c0_27 = arith.constant 0 : index
    %71 = vector.load %arg7[%c0_26, %c0_27] : memref<1x1xf32, #tpu.memory_space<vmem>>, vector<1x1xf32>
    tpu.vector_store %arg7[%c0_26, %c0_27], %70 {strides = array<i32>} : memref<1x1xf32, #tpu.memory_space<vmem>>, vector<1x1xf32>,
    return
  }
}

</mosaic_0001>

<llo_original>
// kernel: tpu_custom_call.1
$region0: #{tpu_custom_call.1}
  #allocation0 [shape = 'u32[]', space=smem, size = 0x4, offset = 0x4, fixed_abs, tag = 'smem constant byte address 0x4 - core index']
  #allocation1 [shape = 'u32[144,128]{1,0:T(1,128)}', space=vmem, size = 0x12000, scoped, tag = 'internal scratch']
  %s0 = inlined_call_operand.hbm [shape: f32[2], index: 0, kind: input, shape index: {}]
  %s1 = inlined_call_operand.hbm [shape: f32[4,768], index: 1, kind: input, shape index: {}]
  %s2 = inlined_call_operand.hbm [shape: f32[4,768], index: 2, kind: input, shape index: {}]
  %s3 = inlined_call_operand.hbm [shape: bf16[768,768], index: 3, kind: input, shape index: {}]
  %s4 = inlined_call_operand.hbm [shape: f32[1,768], index: 4, kind: input, shape index: {}]
  %s5 = inlined_call_operand.hbm [shape: bf16[768,256], index: 5, kind: input, shape index: {}]
  %s6 = inlined_call_operand.hbm [shape: f32[1,256], index: 6, kind: input, shape index: {}]
  %s7 = inlined_call_operand.hbm [shape: f32[1,1], index: 7, kind: output, shape index: {}]
  %s8 = sld [smem:[#allocation0]]
  $region66: #{tpu_custom_call.1} parent=0
    _
  %s10 = ssub.s32 1, %s8
  %s11 = scalar_select 0, %s10, %s8
  $region1: #{tpu_custom_call.1} parent=0
    #allocation2 [shape = 'u8[512]{0}', space=smem, size = 0x200, scoped, tag = 'input window, operand 0, single buffered']
    #allocation3 [shape = 's32[1]{0}', space=sflag, size = 0x4, scoped, tag = 'scoped memory for tpu_custom_call.1']
    #allocation4 [shape = 's32[1]{0}', space=sflag, size = 0x4, scoped, tag = 'scoped memory for tpu_custom_call.1']
    #allocation5 [shape = 's32[1]{0}', space=sflag, size = 0x4, scoped, tag = 'scoped memory for tpu_custom_call.1']
    #allocation6 [shape = 'u8[12288]{0}', space=vmem, size = 0x3000, scoped, tag = 'input window, operand 1, single buffered']
    #allocation7 [shape = 'u8[12288]{0}', space=vmem, size = 0x3000, scoped, tag = 'input window, operand 2, single buffered']
    #allocation8 [shape = 's32[1]{0}', space=sflag, size = 0x4, scoped, tag = 'scoped memory for tpu_custom_call.1']
    #allocation9 [shape = 'u8[1179648]{0}', space=vmem, size = 0x120000, scoped, tag = 'input window, operand 3, single buffered']
    #allocation10 [shape = 'u8[3072]{0}', space=vmem, size = 0xc00, scoped, tag = 'input window, operand 4, single buffered']
    #allocation11 [shape = 's32[1]{0}', space=sflag, size = 0x4, scoped, tag = 'scoped memory for tpu_custom_call.1']
    #allocation12 [shape = 'u8[393216]{0}', space=vmem, size = 0x60000, scoped, tag = 'input window, operand 5, single buffered']
    #allocation13 [shape = 'u8[1024]{0}', space=vmem, size = 0x400, scoped, tag = 'input window, operand 6, single buffered']
    #allocation14 [shape = 's32[1]{0}', space=sflag, size = 0x4, scoped, tag = 'scoped memory for tpu_custom_call.1']
    #allocation15 [shape = 'u8[512]{0}', space=vmem, size = 0x400, scoped, tag = 'output window, operand 0, single buffered']
    %12 = vsyncpa [#allocation5], 0
    %13 = vsyncpa [#allocation3], 0
    %14 = vsyncpa [#allocation8], 0
    %15 = vsyncpa [#allocation11], 0
    %16 = vsyncpa [#allocation14], 0
    %17 = vsyncpa [#allocation4], 0
    // Predicated region
    $region2: #{tpu_custom_call.1} parent=1 // pred_check
      _
    $region3: #{tpu_custom_call.1} parent=1 // pred_check_branch
      %19 = sbr.rel (0) target = $region5
    $region4: #{tpu_custom_call.1} parent=1 // pred_region
      %s21 = ssub.s32 16, 16
      %22 = vsyncadd [#allocation5], %s21
      %25 = dma.hbm_to_smem %s0, 16, [#allocation2], [#allocation5]
    $region5: #{tpu_custom_call.1} parent=1 // pred_fallthru
      _
    // Predicated region
    $region6: #{tpu_custom_call.1} parent=1 // pred_check
      _
    $region7: #{tpu_custom_call.1} parent=1 // pred_check_branch
      %27 = sbr.rel (0) target = $region9
    $region8: #{tpu_custom_call.1} parent=1 // pred_region
      %s29 = ssub.s32 384, 384
      %30 = vsyncadd [#allocation3], %s29
      %s32 = sshll.u32 [#allocation6], 4
      %s33 = int_to_ptr.vmem [resolvable:$true] %s32
      %35 = dma.hbm_to_vmem [thread:$0]  %s1, 384, %s33, [#allocation3]
    $region9: #{tpu_custom_call.1} parent=1 // pred_fallthru
      _
    // Predicated region
    $region10: #{tpu_custom_call.1} parent=1 // pred_check
      _
    $region11: #{tpu_custom_call.1} parent=1 // pred_check_branch
      %37 = sbr.rel (0) target = $region13
    $region12: #{tpu_custom_call.1} parent=1 // pred_region
      %s39 = ssub.s32 384, 384
      %40 = vsyncadd [#allocation8], %s39
      %s42 = sshll.u32 [#allocation7], 4
      %s43 = int_to_ptr.vmem [resolvable:$true] %s42
      %45 = dma.hbm_to_vmem [thread:$0]  %s2, 384, %s43, [#allocation8]
    $region13: #{tpu_custom_call.1} parent=1 // pred_fallthru
      _
    // Predicated region
    $region14: #{tpu_custom_call.1} parent=1 // pred_check
      _
    $region15: #{tpu_custom_call.1} parent=1 // pred_check_branch
      %47 = sbr.rel (0) target = $region17
    $region16: #{tpu_custom_call.1} parent=1 // pred_region
      %s49 = ssub.s32 36864, 36864
      %50 = vsyncadd [#allocation8], %s49
      %s51 = sshll.u32 [#allocation9], 4
      %s52 = int_to_ptr.vmem [resolvable:$true] %s51
      %57 = dma.hbm_to_vmem [thread:$0]  %s3, 36864, %s52, [#allocation8], 384, 384, 24
    $region17: #{tpu_custom_call.1} parent=1 // pred_fallthru
      _
    // Predicated region
    $region18: #{tpu_custom_call.1} parent=1 // pred_check
      _
    $region19: #{tpu_custom_call.1} parent=1 // pred_check_branch
      %59 = sbr.rel (0) target = $region21
    $region20: #{tpu_custom_call.1} parent=1 // pred_region
      %s61 = ssub.s32 96, 96
      %62 = vsyncadd [#allocation11], %s61
      %s64 = sshll.u32 [#allocation10], 4
      %s65 = int_to_ptr.vmem [resolvable:$true] %s64
      %67 = dma.hbm_to_vmem [thread:$0]  %s4, 96, %s65, [#allocation11]
    $region21: #{tpu_custom_call.1} parent=1 // pred_fallthru
      _
    // Predicated region
    $region22: #{tpu_custom_call.1} parent=1 // pred_check
      _
    $region23: #{tpu_custom_call.1} parent=1 // pred_check_branch
      %69 = sbr.rel (0) target = $region25
    $region24: #{tpu_custom_call.1} parent=1 // pred_region
      %s71 = ssub.s32 12288, 12288
      %72 = vsyncadd [#allocation11], %s71
      %s73 = sshll.u32 [#allocation12], 4
      %s74 = int_to_ptr.vmem [resolvable:$true] %s73
      %79 = dma.hbm_to_vmem [thread:$0]  %s5, 12288, %s74, [#allocation11], 128, 128, 8
    $region25: #{tpu_custom_call.1} parent=1 // pred_fallthru
      _
    // Predicated region
    $region26: #{tpu_custom_call.1} parent=1 // pred_check
      _
    $region27: #{tpu_custom_call.1} parent=1 // pred_check_branch
      %81 = sbr.rel (0) target = $region29
    $region28: #{tpu_custom_call.1} parent=1 // pred_region
      %s83 = ssub.s32 32, 32
      %84 = vsyncadd [#allocation14], %s83
      %s86 = sshll.u32 [#allocation13], 4
      %s87 = int_to_ptr.vmem [resolvable:$true] %s86
      %89 = dma.hbm_to_vmem [thread:$0]  %s6, 32, %s87, [#allocation14]
    $region29: #{tpu_custom_call.1} parent=1 // pred_fallthru
      _
    // Predicated region
    $region30: #{tpu_custom_call.1} parent=1 // pred_check
      _
    $region31: #{tpu_custom_call.1} parent=1 // pred_check_branch
      %91 = sbr.rel (0) target = $region33
    $region32: #{tpu_custom_call.1} parent=1 // pred_region
      %92 = dma.done [#allocation5], 16
    $region33: #{tpu_custom_call.1} parent=1 // pred_fallthru
      _
    // Predicated region
    $region34: #{tpu_custom_call.1} parent=1 // pred_check
      _
    $region35: #{tpu_custom_call.1} parent=1 // pred_check_branch
      %94 = sbr.rel (0) target = $region37
    $region36: #{tpu_custom_call.1} parent=1 // pred_region
      %95 = dma.done [#allocation3], 384
    $region37: #{tpu_custom_call.1} parent=1 // pred_fallthru
      _
    // Predicated region
    $region38: #{tpu_custom_call.1} parent=1 // pred_check
      _
    $region39: #{tpu_custom_call.1} parent=1 // pred_check_branch
      %97 = sbr.rel (0) target = $region41
    $region40: #{tpu_custom_call.1} parent=1 // pred_region
      %98 = dma.done [#allocation8], 384
    $region41: #{tpu_custom_call.1} parent=1 // pred_fallthru
      _
    // Predicated region
    $region42: #{tpu_custom_call.1} parent=1 // pred_check
      _
    $region43: #{tpu_custom_call.1} parent=1 // pred_check_branch
      %100 = sbr.rel (0) target = $region45
    $region44: #{tpu_custom_call.1} parent=1 // pred_region
      %101 = dma.done [#allocation8], 36864
    $region45: #{tpu_custom_call.1} parent=1 // pred_fallthru
      _
    // Predicated region
    $region46: #{tpu_custom_call.1} parent=1 // pred_check
      _
    $region47: #{tpu_custom_call.1} parent=1 // pred_check_branch
      %103 = sbr.rel (0) target = $region49
    $region48: #{tpu_custom_call.1} parent=1 // pred_region
      %104 = dma.done [#allocation11], 96
    $region49: #{tpu_custom_call.1} parent=1 // pred_fallthru
      _
    // Predicated region
    $region50: #{tpu_custom_call.1} parent=1 // pred_check
      _
    $region51: #{tpu_custom_call.1} parent=1 // pred_check_branch
      %106 = sbr.rel (0) target = $region53
    $region52: #{tpu_custom_call.1} parent=1 // pred_region
      %107 = dma.done [#allocation11], 12288
    $region53: #{tpu_custom_call.1} parent=1 // pred_fallthru
      _
    // Predicated region
    $region54: #{tpu_custom_call.1} parent=1 // pred_check
      _
    $region55: #{tpu_custom_call.1} parent=1 // pred_check_branch
      %109 = sbr.rel (0) target = $region57
    $region56: #{tpu_custom_call.1} parent=1 // pred_region
      %110 = dma.done [#allocation14], 32
    $region57: #{tpu_custom_call.1} parent=1 // pred_fallthru
      _
    %111 = sfence
    %s112 = sld [smem:[#allocation2]]
    %s113 = sld [smem:[#allocation2 + $0x1]]
    %v114 = vld [vmem:[#allocation9] sm:$0xff]
    %v115 = vld [vmem:[#allocation9 + $0x8] sm:$0xff]
    %v116 = vld [vmem:[#allocation9 + $0x10] sm:$0xff]
    %v117 = vld [vmem:[#allocation9 + $0x18] sm:$0xff]
    %v118 = vld [vmem:[#allocation9 + $0x20] sm:$0xff]
    %v119 = vld [vmem:[#allocation9 + $0x28] sm:$0xff]
    %v120 = vld [vmem:[#allocation9 + $0x30] sm:$0xff]
    %v121 = vld [vmem:[#allocation9 + $0x38] sm:$0xff]
    %v122 = vld [vmem:[#allocation9 + $0x40] sm:$0xff]
    %v123 = vld [vmem:[#allocation9 + $0x48] sm:$0xff]
    %v124 = vld [vmem:[#allocation9 + $0x50] sm:$0xff]
    %v125 = vld [vmem:[#allocation9 + $0x58] sm:$0xff]
    %v126 = vld [vmem:[#allocation9 + $0x60] sm:$0xff]
    %v127 = vld [vmem:[#allocation9 + $0x68] sm:$0xff]
    %v128 = vld [vmem:[#allocation9 + $0x70] sm:$0xff]
    %v129 = vld [vmem:[#allocation9 + $0x78] sm:$0xff]
    %v130 = vld [vmem:[#allocation9 + $0x80] sm:$0xff]
    %v131 = vld [vmem:[#allocation9 + $0x88] sm:$0xff]
    %v132 = vld [vmem:[#allocation9 + $0x90] sm:$0xff]
    %v133 = vld [vmem:[#allocation9 + $0x98] sm:$0xff]
    %v134 = vld [vmem:[#allocation9 + $0xa0] sm:$0xff]
    %v135 = vld [vmem:[#allocation9 + $0xa8] sm:$0xff]
    %v136 = vld [vmem:[#allocation9 + $0xb0] sm:$0xff]
    %v137 = vld [vmem:[#allocation9 + $0xb8] sm:$0xff]
    %v138 = vld [vmem:[#allocation9 + $0xc0] sm:$0xff]
    %v139 = vld [vmem:[#allocation9 + $0xc8] sm:$0xff]
    %v140 = vld [vmem:[#allocation9 + $0xd0] sm:$0xff]
    %v141 = vld [vmem:[#allocation9 + $0xd8] sm:$0xff]
    %v142 = vld [vmem:[#allocation9 + $0xe0] sm:$0xff]
    %v143 = vld [vmem:[#allocation9 + $0xe8] sm:$0xff]
    %v144 = vld [vmem:[#allocation9 + $0xf0] sm:$0xff]
    %v145 = vld [vmem:[#allocation9 + $0xf8] sm:$0xff]
    %v146 = vld [vmem:[#allocation9 + $0x100] sm:$0xff]
    %v147 = vld [vmem:[#allocation9 + $0x108] sm:$0xff]
    %v148 = vld [vmem:[#allocation9 + $0x110] sm:$0xff]
    %v149 = vld [vmem:[#allocation9 + $0x118] sm:$0xff]
    %v150 = vld [vmem:[#allocation9 + $0x120] sm:$0xff]
    %v151 = vld [vmem:[#allocation9 + $0x128] sm:$0xff]
    %v152 = vld [vmem:[#allocation9 + $0x130] sm:$0xff]
    %v153 = vld [vmem:[#allocation9 + $0x138] sm:$0xff]
    %v154 = vld [vmem:[#allocation9 + $0x140] sm:$0xff]
    %v155 = vld [vmem:[#allocation9 + $0x148] sm:$0xff]
    %v156 = vld [vmem:[#allocation9 + $0x150] sm:$0xff]
    %v157 = vld [vmem:[#allocation9 + $0x158] sm:$0xff]
    %v158 = vld [vmem:[#allocation9 + $0x160] sm:$0xff]
    %v159 = vld [vmem:[#allocation9 + $0x168] sm:$0xff]
    %v160 = vld [vmem:[#allocation9 + $0x170] sm:$0xff]
    %v161 = vld [vmem:[#allocation9 + $0x178] sm:$0xff]
    %v162 = vld [vmem:[#allocation9 + $0x180] sm:$0xff]
    %v163 = vld [vmem:[#allocation9 + $0x188] sm:$0xff]
    %v164 = vld [vmem:[#allocation9 + $0x190] sm:$0xff]
    %v165 = vld [vmem:[#allocation9 + $0x198] sm:$0xff]
    %v166 = vld [vmem:[#allocation9 + $0x1a0] sm:$0xff]
    %v167 = vld [vmem:[#allocation9 + $0x1a8] sm:$0xff]
    %v168 = vld [vmem:[#allocation9 + $0x1b0] sm:$0xff]
    %v169 = vld [vmem:[#allocation9 + $0x1b8] sm:$0xff]
    %v170 = vld [vmem:[#allocation9 + $0x1c0] sm:$0xff]
    %v171 = vld [vmem:[#allocation9 + $0x1c8] sm:$0xff]
    %v172 = vld [vmem:[#allocation9 + $0x1d0] sm:$0xff]
    %v173 = vld [vmem:[#allocation9 + $0x1d8] sm:$0xff]
    %v174 = vld [vmem:[#allocation9 + $0x1e0] sm:$0xff]
    %v175 = vld [vmem:[#allocation9 + $0x1e8] sm:$0xff]
    %v176 = vld [vmem:[#allocation9 + $0x1f0] sm:$0xff]
    %v177 = vld [vmem:[#allocation9 + $0x1f8] sm:$0xff]
    %v178 = vld [vmem:[#allocation9 + $0x200] sm:$0xff]
    %v179 = vld [vmem:[#allocation9 + $0x208] sm:$0xff]
    %v180 = vld [vmem:[#allocation9 + $0x210] sm:$0xff]
    %v181 = vld [vmem:[#allocation9 + $0x218] sm:$0xff]
    %v182 = vld [vmem:[#allocation9 + $0x220] sm:$0xff]
    %v183 = vld [vmem:[#allocation9 + $0x228] sm:$0xff]
    %v184 = vld [vmem:[#allocation9 + $0x230] sm:$0xff]
    %v185 = vld [vmem:[#allocation9 + $0x238] sm:$0xff]
    %v186 = vld [vmem:[#allocation9 + $0x240] sm:$0xff]
    %v187 = vld [vmem:[#allocation9 + $0x248] sm:$0xff]
    %v188 = vld [vmem:[#allocation9 + $0x250] sm:$0xff]
    %v189 = vld [vmem:[#allocation9 + $0x258] sm:$0xff]
    %v190 = vld [vmem:[#allocation9 + $0x260] sm:$0xff]
    %v191 = vld [vmem:[#allocation9 + $0x268] sm:$0xff]
    %v192 = vld [vmem:[#allocation9 + $0x270] sm:$0xff]
    %v193 = vld [vmem:[#allocation9 + $0x278] sm:$0xff]
    %v194 = vld [vmem:[#allocation9 + $0x280] sm:$0xff]
    %v195 = vld [vmem:[#allocation9 + $0x288] sm:$0xff]
    %v196 = vld [vmem:[#allocation9 + $0x290] sm:$0xff]
    %v197 = vld [vmem:[#allocation9 + $0x298] sm:$0xff]
    %v198 = vld [vmem:[#allocation9 + $0x2a0] sm:$0xff]
    %v199 = vld [vmem:[#allocation9 + $0x2a8] sm:$0xff]
    %v200 = vld [vmem:[#allocation9 + $0x2b0] sm:$0xff]
    %v201 = vld [vmem:[#allocation9 + $0x2b8] sm:$0xff]
    %v202 = vld [vmem:[#allocation9 + $0x2c0] sm:$0xff]
    %v203 = vld [vmem:[#allocation9 + $0x2c8] sm:$0xff]
    %v204 = vld [vmem:[#allocation9 + $0x2d0] sm:$0xff]
    %v205 = vld [vmem:[#allocation9 + $0x2d8] sm:$0xff]
    %v206 = vld [vmem:[#allocation9 + $0x2e0] sm:$0xff]
    %v207 = vld [vmem:[#allocation9 + $0x2e8] sm:$0xff]
    %v208 = vld [vmem:[#allocation9 + $0x2f0] sm:$0xff]
    %v209 = vld [vmem:[#allocation9 + $0x2f8] sm:$0xff]
    %v210 = vld [vmem:[#allocation9 + $0x300] sm:$0xff]
    %v211 = vld [vmem:[#allocation9 + $0x308] sm:$0xff]
    %v212 = vld [vmem:[#allocation9 + $0x310] sm:$0xff]
    %v213 = vld [vmem:[#allocation9 + $0x318] sm:$0xff]
    %v214 = vld [vmem:[#allocation9 + $0x320] sm:$0xff]
    %v215 = vld [vmem:[#allocation9 + $0x328] sm:$0xff]
    %v216 = vld [vmem:[#allocation9 + $0x330] sm:$0xff]
    %v217 = vld [vmem:[#allocation9 + $0x338] sm:$0xff]
    %v218 = vld [vmem:[#allocation9 + $0x340] sm:$0xff]
    %v219 = vld [vmem:[#allocation9 + $0x348] sm:$0xff]
    %v220 = vld [vmem:[#allocation9 + $0x350] sm:$0xff]
    %v221 = vld [vmem:[#allocation9 + $0x358] sm:$0xff]
    %v222 = vld [vmem:[#allocation9 + $0x360] sm:$0xff]
    %v223 = vld [vmem:[#allocation9 + $0x368] sm:$0xff]
    %v224 = vld [vmem:[#allocation9 + $0x370] sm:$0xff]
    %v225 = vld [vmem:[#allocation9 + $0x378] sm:$0xff]
    %v226 = vld [vmem:[#allocation9 + $0x380] sm:$0xff]
    %v227 = vld [vmem:[#allocation9 + $0x388] sm:$0xff]
    %v228 = vld [vmem:[#allocation9 + $0x390] sm:$0xff]
    %v229 = vld [vmem:[#allocation9 + $0x398] sm:$0xff]
    %v230 = vld [vmem:[#allocation9 + $0x3a0] sm:$0xff]
    %v231 = vld [vmem:[#allocation9 + $0x3a8] sm:$0xff]
    %v232 = vld [vmem:[#allocation9 + $0x3b0] sm:$0xff]
    %v233 = vld [vmem:[#allocation9 + $0x3b8] sm:$0xff]
    %v234 = vld [vmem:[#allocation9 + $0x3c0] sm:$0xff]
    %v235 = vld [vmem:[#allocation9 + $0x3c8] sm:$0xff]
    %v236 = vld [vmem:[#allocation9 + $0x3d0] sm:$0xff]
    %v237 = vld [vmem:[#allocation9 + $0x3d8] sm:$0xff]
    %v238 = vld [vmem:[#allocation9 + $0x3e0] sm:$0xff]
    %v239 = vld [vmem:[#allocation9 + $0x3e8] sm:$0xff]
    %v240 = vld [vmem:[#allocation9 + $0x3f0] sm:$0xff]
    %v241 = vld [vmem:[#allocation9 + $0x3f8] sm:$0xff]
    %v242 = vld [vmem:[#allocation9 + $0x400] sm:$0xff]
    %v243 = vld [vmem:[#allocation9 + $0x408] sm:$0xff]
    %v244 = vld [vmem:[#allocation9 + $0x410] sm:$0xff]
    %v245 = vld [vmem:[#allocation9 + $0x418] sm:$0xff]
    %v246 = vld [vmem:[#allocation9 + $0x420] sm:$0xff]
    %v247 = vld [vmem:[#allocation9 + $0x428] sm:$0xff]
    %v248 = vld [vmem:[#allocation9 + $0x430] sm:$0xff]
    %v249 = vld [vmem:[#allocation9 + $0x438] sm:$0xff]
    %v250 = vld [vmem:[#allocation9 + $0x440] sm:$0xff]
    %v251 = vld [vmem:[#allocation9 + $0x448] sm:$0xff]
    %v252 = vld [vmem:[#allocation9 + $0x450] sm:$0xff]
    %v253 = vld [vmem:[#allocation9 + $0x458] sm:$0xff]
    %v254 = vld [vmem:[#allocation9 + $0x460] sm:$0xff]
    %v255 = vld [vmem:[#allocation9 + $0x468] sm:$0xff]
    %v256 = vld [vmem:[#allocation9 + $0x470] sm:$0xff]
    %v257 = vld [vmem:[#allocation9 + $0x478] sm:$0xff]
    %v258 = vld [vmem:[#allocation9 + $0x480] sm:$0xff]
    %v259 = vld [vmem:[#allocation9 + $0x488] sm:$0xff]
    %v260 = vld [vmem:[#allocation9 + $0x490] sm:$0xff]
    %v261 = vld [vmem:[#allocation9 + $0x498] sm:$0xff]
    %v262 = vld [vmem:[#allocation9 + $0x4a0] sm:$0xff]
    %v263 = vld [vmem:[#allocation9 + $0x4a8] sm:$0xff]
    %v264 = vld [vmem:[#allocation9 + $0x4b0] sm:$0xff]
    %v265 = vld [vmem:[#allocation9 + $0x4b8] sm:$0xff]
    %v266 = vld [vmem:[#allocation9 + $0x4c0] sm:$0xff]
    %v267 = vld [vmem:[#allocation9 + $0x4c8] sm:$0xff]
    %v268 = vld [vmem:[#allocation9 + $0x4d0] sm:$0xff]
    %v269 = vld [vmem:[#allocation9 + $0x4d8] sm:$0xff]
    %v270 = vld [vmem:[#allocation9 + $0x4e0] sm:$0xff]
    %v271 = vld [vmem:[#allocation9 + $0x4e8] sm:$0xff]
    %v272 = vld [vmem:[#allocation9 + $0x4f0] sm:$0xff]
    %v273 = vld [vmem:[#allocation9 + $0x4f8] sm:$0xff]
    %v274 = vld [vmem:[#allocation9 + $0x500] sm:$0xff]
    %v275 = vld [vmem:[#allocation9 + $0x508] sm:$0xff]
    %v276 = vld [vmem:[#allocation9 + $0x510] sm:$0xff]
    %v277 = vld [vmem:[#allocation9 + $0x518] sm:$0xff]
    %v278 = vld [vmem:[#allocation9 + $0x520] sm:$0xff]
    %v279 = vld [vmem:[#allocation9 + $0x528] sm:$0xff]
    %v280 = vld [vmem:[#allocation9 + $0x530] sm:$0xff]
    %v281 = vld [vmem:[#allocation9 + $0x538] sm:$0xff]
    %v282 = vld [vmem:[#allocation9 + $0x540] sm:$0xff]
    %v283 = vld [vmem:[#allocation9 + $0x548] sm:$0xff]
    %v284 = vld [vmem:[#allocation9 + $0x550] sm:$0xff]
    %v285 = vld [vmem:[#allocation9 + $0x558] sm:$0xff]
    %v286 = vld [vmem:[#allocation9 + $0x560] sm:$0xff]
    %v287 = vld [vmem:[#allocation9 + $0x568] sm:$0xff]
    %v288 = vld [vmem:[#allocation9 + $0x570] sm:$0xff]
    %v289 = vld [vmem:[#allocation9 + $0x578] sm:$0xff]
    %v290 = vld [vmem:[#allocation9 + $0x580] sm:$0xff]
    %v291 = vld [vmem:[#allocation9 + $0x588] sm:$0xff]
    %v292 = vld [vmem:[#allocation9 + $0x590] sm:$0xff]
    %v293 = vld [vmem:[#allocation9 + $0x598] sm:$0xff]
    %v294 = vld [vmem:[#allocation9 + $0x5a0] sm:$0xff]
    %v295 = vld [vmem:[#allocation9 + $0x5a8] sm:$0xff]
    %v296 = vld [vmem:[#allocation9 + $0x5b0] sm:$0xff]
    %v297 = vld [vmem:[#allocation9 + $0x5b8] sm:$0xff]
    %v298 = vld [vmem:[#allocation9 + $0x5c0] sm:$0xff]
    %v299 = vld [vmem:[#allocation9 + $0x5c8] sm:$0xff]
    %v300 = vld [vmem:[#allocation9 + $0x5d0] sm:$0xff]
    %v301 = vld [vmem:[#allocation9 + $0x5d8] sm:$0xff]
    %v302 = vld [vmem:[#allocation9 + $0x5e0] sm:$0xff]
    %v303 = vld [vmem:[#allocation9 + $0x5e8] sm:$0xff]
    %v304 = vld [vmem:[#allocation9 + $0x5f0] sm:$0xff]
    %v305 = vld [vmem:[#allocation9 + $0x5f8] sm:$0xff]
    %v306 = vld [vmem:[#allocation9 + $0x600] sm:$0xff]
    %v307 = vld [vmem:[#allocation9 + $0x608] sm:$0xff]
    %v308 = vld [vmem:[#allocation9 + $0x610] sm:$0xff]
    %v309 = vld [vmem:[#allocation9 + $0x618] sm:$0xff]
    %v310 = vld [vmem:[#allocation9 + $0x620] sm:$0xff]
    %v311 = vld [vmem:[#allocation9 + $0x628] sm:$0xff]
    %v312 = vld [vmem:[#allocation9 + $0x630] sm:$0xff]
    %v313 = vld [vmem:[#allocation9 + $0x638] sm:$0xff]
    %v314 = vld [vmem:[#allocation9 + $0x640] sm:$0xff]
    %v315 = vld [vmem:[#allocation9 + $0x648] sm:$0xff]
    %v316 = vld [vmem:[#allocation9 + $0x650] sm:$0xff]
    %v317 = vld [vmem:[#allocation9 + $0x658] sm:$0xff]
    %v318 = vld [vmem:[#allocation9 + $0x660] sm:$0xff]
    %v319 = vld [vmem:[#allocation9 + $0x668] sm:$0xff]
    %v320 = vld [vmem:[#allocation9 + $0x670] sm:$0xff]
    %v321 = vld [vmem:[#allocation9 + $0x678] sm:$0xff]
    %v322 = vld [vmem:[#allocation9 + $0x680] sm:$0xff]
    %v323 = vld [vmem:[#allocation9 + $0x688] sm:$0xff]
    %v324 = vld [vmem:[#allocation9 + $0x690] sm:$0xff]
    %v325 = vld [vmem:[#allocation9 + $0x698] sm:$0xff]
    %v326 = vld [vmem:[#allocation9 + $0x6a0] sm:$0xff]
    %v327 = vld [vmem:[#allocation9 + $0x6a8] sm:$0xff]
    %v328 = vld [vmem:[#allocation9 + $0x6b0] sm:$0xff]
    %v329 = vld [vmem:[#allocation9 + $0x6b8] sm:$0xff]
    %v330 = vld [vmem:[#allocation9 + $0x6c0] sm:$0xff]
    %v331 = vld [vmem:[#allocation9 + $0x6c8] sm:$0xff]
    %v332 = vld [vmem:[#allocation9 + $0x6d0] sm:$0xff]
    %v333 = vld [vmem:[#allocation9 + $0x6d8] sm:$0xff]
    %v334 = vld [vmem:[#allocation9 + $0x6e0] sm:$0xff]
    %v335 = vld [vmem:[#allocation9 + $0x6e8] sm:$0xff]
    %v336 = vld [vmem:[#allocation9 + $0x6f0] sm:$0xff]
    %v337 = vld [vmem:[#allocation9 + $0x6f8] sm:$0xff]
    %v338 = vld [vmem:[#allocation9 + $0x700] sm:$0xff]
    %v339 = vld [vmem:[#allocation9 + $0x708] sm:$0xff]
    %v340 = vld [vmem:[#allocation9 + $0x710] sm:$0xff]
    %v341 = vld [vmem:[#allocation9 + $0x718] sm:$0xff]
    %v342 = vld [vmem:[#allocation9 + $0x720] sm:$0xff]
    %v343 = vld [vmem:[#allocation9 + $0x728] sm:$0xff]
    %v344 = vld [vmem:[#allocation9 + $0x730] sm:$0xff]
    %v345 = vld [vmem:[#allocation9 + $0x738] sm:$0xff]
    %v346 = vld [vmem:[#allocation9 + $0x740] sm:$0xff]
    %v347 = vld [vmem:[#allocation9 + $0x748] sm:$0xff]
    %v348 = vld [vmem:[#allocation9 + $0x750] sm:$0xff]
    %v349 = vld [vmem:[#allocation9 + $0x758] sm:$0xff]
    %v350 = vld [vmem:[#allocation9 + $0x760] sm:$0xff]
    %v351 = vld [vmem:[#allocation9 + $0x768] sm:$0xff]
    %v352 = vld [vmem:[#allocation9 + $0x770] sm:$0xff]
    %v353 = vld [vmem:[#allocation9 + $0x778] sm:$0xff]
    %v354 = vld [vmem:[#allocation9 + $0x780] sm:$0xff]
    %v355 = vld [vmem:[#allocation9 + $0x788] sm:$0xff]
    %v356 = vld [vmem:[#allocation9 + $0x790] sm:$0xff]
    %v357 = vld [vmem:[#allocation9 + $0x798] sm:$0xff]
    %v358 = vld [vmem:[#allocation9 + $0x7a0] sm:$0xff]
    %v359 = vld [vmem:[#allocation9 + $0x7a8] sm:$0xff]
    %v360 = vld [vmem:[#allocation9 + $0x7b0] sm:$0xff]
    %v361 = vld [vmem:[#allocation9 + $0x7b8] sm:$0xff]
    %v362 = vld [vmem:[#allocation9 + $0x7c0] sm:$0xff]
    %v363 = vld [vmem:[#allocation9 + $0x7c8] sm:$0xff]
    %v364 = vld [vmem:[#allocation9 + $0x7d0] sm:$0xff]
    %v365 = vld [vmem:[#allocation9 + $0x7d8] sm:$0xff]
    %v366 = vld [vmem:[#allocation9 + $0x7e0] sm:$0xff]
    %v367 = vld [vmem:[#allocation9 + $0x7e8] sm:$0xff]
    %v368 = vld [vmem:[#allocation9 + $0x7f0] sm:$0xff]
    %v369 = vld [vmem:[#allocation9 + $0x7f8] sm:$0xff]
    %v370 = vld [vmem:[#allocation9 + $0x800] sm:$0xff]
    %v371 = vld [vmem:[#allocation9 + $0x808] sm:$0xff]
    %v372 = vld [vmem:[#allocation9 + $0x810] sm:$0xff]
    %v373 = vld [vmem:[#allocation9 + $0x818] sm:$0xff]
    %v374 = vld [vmem:[#allocation9 + $0x820] sm:$0xff]
    %v375 = vld [vmem:[#allocation9 + $0x828] sm:$0xff]
    %v376 = vld [vmem:[#allocation9 + $0x830] sm:$0xff]
    %v377 = vld [vmem:[#allocation9 + $0x838] sm:$0xff]
    %v378 = vld [vmem:[#allocation9 + $0x840] sm:$0xff]
    %v379 = vld [vmem:[#allocation9 + $0x848] sm:$0xff]
    %v380 = vld [vmem:[#allocation9 + $0x850] sm:$0xff]
    %v381 = vld [vmem:[#allocation9 + $0x858] sm:$0xff]
    %v382 = vld [vmem:[#allocation9 + $0x860] sm:$0xff]
    %v383 = vld [vmem:[#allocation9 + $0x868] sm:$0xff]
    %v384 = vld [vmem:[#allocation9 + $0x870] sm:$0xff]
    %v385 = vld [vmem:[#allocation9 + $0x878] sm:$0xff]
    %v386 = vld [vmem:[#allocation9 + $0x880] sm:$0xff]
    %v387 = vld [vmem:[#allocation9 + $0x888] sm:$0xff]
    %v388 = vld [vmem:[#allocation9 + $0x890] sm:$0xff]
    %v389 = vld [vmem:[#allocation9 + $0x898] sm:$0xff]
    %v390 = vld [vmem:[#allocation9 + $0x8a0] sm:$0xff]
    %v391 = vld [vmem:[#allocation9 + $0x8a8] sm:$0xff]
    %v392 = vld [vmem:[#allocation9 + $0x8b0] sm:$0xff]
    %v393 = vld [vmem:[#allocation9 + $0x8b8] sm:$0xff]
    %v394 = vld [vmem:[#allocation9 + $0x8c0] sm:$0xff]
    %v395 = vld [vmem:[#allocation9 + $0x8c8] sm:$0xff]
    %v396 = vld [vmem:[#allocation9 + $0x8d0] sm:$0xff]
    %v397 = vld [vmem:[#allocation9 + $0x8d8] sm:$0xff]
    %v398 = vld [vmem:[#allocation9 + $0x8e0] sm:$0xff]
    %v399 = vld [vmem:[#allocation9 + $0x8e8] sm:$0xff]
    %v400 = vld [vmem:[#allocation9 + $0x8f0] sm:$0xff]
    %v401 = vld [vmem:[#allocation9 + $0x8f8] sm:$0xff]
    %v402 = vld [vmem:[#allocation10] sm:$0x3f]
    %v403 = vld [vmem:[#allocation12] sm:$0xff]
    %v404 = vld [vmem:[#allocation12 + $0x8] sm:$0xff]
    %v405 = vld [vmem:[#allocation12 + $0x10] sm:$0xff]
    %v406 = vld [vmem:[#allocation12 + $0x18] sm:$0xff]
    %v407 = vld [vmem:[#allocation12 + $0x20] sm:$0xff]
    %v408 = vld [vmem:[#allocation12 + $0x28] sm:$0xff]
    %v409 = vld [vmem:[#allocation12 + $0x30] sm:$0xff]
    %v410 = vld [vmem:[#allocation12 + $0x38] sm:$0xff]
    %v411 = vld [vmem:[#allocation12 + $0x40] sm:$0xff]
    %v412 = vld [vmem:[#allocation12 + $0x48] sm:$0xff]
    %v413 = vld [vmem:[#allocation12 + $0x50] sm:$0xff]
    %v414 = vld [vmem:[#allocation12 + $0x58] sm:$0xff]
    %v415 = vld [vmem:[#allocation12 + $0x60] sm:$0xff]
    %v416 = vld [vmem:[#allocation12 + $0x68] sm:$0xff]
    %v417 = vld [vmem:[#allocation12 + $0x70] sm:$0xff]
    %v418 = vld [vmem:[#allocation12 + $0x78] sm:$0xff]
    %v419 = vld [vmem:[#allocation12 + $0x80] sm:$0xff]
    %v420 = vld [vmem:[#allocation12 + $0x88] sm:$0xff]
    %v421 = vld [vmem:[#allocation12 + $0x90] sm:$0xff]
    %v422 = vld [vmem:[#allocation12 + $0x98] sm:$0xff]
    %v423 = vld [vmem:[#allocation12 + $0xa0] sm:$0xff]
    %v424 = vld [vmem:[#allocation12 + $0xa8] sm:$0xff]
    %v425 = vld [vmem:[#allocation12 + $0xb0] sm:$0xff]
    %v426 = vld [vmem:[#allocation12 + $0xb8] sm:$0xff]
    %v427 = vld [vmem:[#allocation12 + $0xc0] sm:$0xff]
    %v428 = vld [vmem:[#allocation12 + $0xc8] sm:$0xff]
    %v429 = vld [vmem:[#allocation12 + $0xd0] sm:$0xff]
    %v430 = vld [vmem:[#allocation12 + $0xd8] sm:$0xff]
    %v431 = vld [vmem:[#allocation12 + $0xe0] sm:$0xff]
    %v432 = vld [vmem:[#allocation12 + $0xe8] sm:$0xff]
    %v433 = vld [vmem:[#allocation12 + $0xf0] sm:$0xff]
    %v434 = vld [vmem:[#allocation12 + $0xf8] sm:$0xff]
    %v435 = vld [vmem:[#allocation12 + $0x100] sm:$0xff]
    %v436 = vld [vmem:[#allocation12 + $0x108] sm:$0xff]
    %v437 = vld [vmem:[#allocation12 + $0x110] sm:$0xff]
    %v438 = vld [vmem:[#allocation12 + $0x118] sm:$0xff]
    %v439 = vld [vmem:[#allocation12 + $0x120] sm:$0xff]
    %v440 = vld [vmem:[#allocation12 + $0x128] sm:$0xff]
    %v441 = vld [vmem:[#allocation12 + $0x130] sm:$0xff]
    %v442 = vld [vmem:[#allocation12 + $0x138] sm:$0xff]
    %v443 = vld [vmem:[#allocation12 + $0x140] sm:$0xff]
    %v444 = vld [vmem:[#allocation12 + $0x148] sm:$0xff]
    %v445 = vld [vmem:[#allocation12 + $0x150] sm:$0xff]
    %v446 = vld [vmem:[#allocation12 + $0x158] sm:$0xff]
    %v447 = vld [vmem:[#allocation12 + $0x160] sm:$0xff]
    %v448 = vld [vmem:[#allocation12 + $0x168] sm:$0xff]
    %v449 = vld [vmem:[#allocation12 + $0x170] sm:$0xff]
    %v450 = vld [vmem:[#allocation12 + $0x178] sm:$0xff]
    %v451 = vld [vmem:[#allocation12 + $0x180] sm:$0xff]
    %v452 = vld [vmem:[#allocation12 + $0x188] sm:$0xff]
    %v453 = vld [vmem:[#allocation12 + $0x190] sm:$0xff]
    %v454 = vld [vmem:[#allocation12 + $0x198] sm:$0xff]
    %v455 = vld [vmem:[#allocation12 + $0x1a0] sm:$0xff]
    %v456 = vld [vmem:[#allocation12 + $0x1a8] sm:$0xff]
    %v457 = vld [vmem:[#allocation12 + $0x1b0] sm:$0xff]
    %v458 = vld [vmem:[#allocation12 + $0x1b8] sm:$0xff]
    %v459 = vld [vmem:[#allocation12 + $0x1c0] sm:$0xff]
    %v460 = vld [vmem:[#allocation12 + $0x1c8] sm:$0xff]
    %v461 = vld [vmem:[#allocation12 + $0x1d0] sm:$0xff]
    %v462 = vld [vmem:[#allocation12 + $0x1d8] sm:$0xff]
    %v463 = vld [vmem:[#allocation12 + $0x1e0] sm:$0xff]
    %v464 = vld [vmem:[#allocation12 + $0x1e8] sm:$0xff]
    %v465 = vld [vmem:[#allocation12 + $0x1f0] sm:$0xff]
    %v466 = vld [vmem:[#allocation12 + $0x1f8] sm:$0xff]
    %v467 = vld [vmem:[#allocation12 + $0x200] sm:$0xff]
    %v468 = vld [vmem:[#allocation12 + $0x208] sm:$0xff]
    %v469 = vld [vmem:[#allocation12 + $0x210] sm:$0xff]
    %v470 = vld [vmem:[#allocation12 + $0x218] sm:$0xff]
    %v471 = vld [vmem:[#allocation12 + $0x220] sm:$0xff]
    %v472 = vld [vmem:[#allocation12 + $0x228] sm:$0xff]
    %v473 = vld [vmem:[#allocation12 + $0x230] sm:$0xff]
    %v474 = vld [vmem:[#allocation12 + $0x238] sm:$0xff]
    %v475 = vld [vmem:[#allocation12 + $0x240] sm:$0xff]
    %v476 = vld [vmem:[#allocation12 + $0x248] sm:$0xff]
    %v477 = vld [vmem:[#allocation12 + $0x250] sm:$0xff]
    %v478 = vld [vmem:[#allocation12 + $0x258] sm:$0xff]
    %v479 = vld [vmem:[#allocation12 + $0x260] sm:$0xff]
    %v480 = vld [vmem:[#allocation12 + $0x268] sm:$0xff]
    %v481 = vld [vmem:[#allocation12 + $0x270] sm:$0xff]
    %v482 = vld [vmem:[#allocation12 + $0x278] sm:$0xff]
    %v483 = vld [vmem:[#allocation12 + $0x280] sm:$0xff]
    %v484 = vld [vmem:[#allocation12 + $0x288] sm:$0xff]
    %v485 = vld [vmem:[#allocation12 + $0x290] sm:$0xff]
    %v486 = vld [vmem:[#allocation12 + $0x298] sm:$0xff]
    %v487 = vld [vmem:[#allocation12 + $0x2a0] sm:$0xff]
    %v488 = vld [vmem:[#allocation12 + $0x2a8] sm:$0xff]
    %v489 = vld [vmem:[#allocation12 + $0x2b0] sm:$0xff]
    %v490 = vld [vmem:[#allocation12 + $0x2b8] sm:$0xff]
    %v491 = vld [vmem:[#allocation12 + $0x2c0] sm:$0xff]
    %v492 = vld [vmem:[#allocation12 + $0x2c8] sm:$0xff]
    %v493 = vld [vmem:[#allocation12 + $0x2d0] sm:$0xff]
    %v494 = vld [vmem:[#allocation12 + $0x2d8] sm:$0xff]
    %v495 = vld [vmem:[#allocation12 + $0x2e0] sm:$0xff]
    %v496 = vld [vmem:[#allocation12 + $0x2e8] sm:$0xff]
    %v497 = vld [vmem:[#allocation12 + $0x2f0] sm:$0xff]
    %v498 = vld [vmem:[#allocation12 + $0x2f8] sm:$0xff]
    %v499 = vld [vmem:[#allocation13] sm:$0x3]
    %v500 = vld [vmem:[#allocation6] sm:$0xff]
    %v501 = vld [vmem:[#allocation6 + $0x8] sm:$0xff]
    %v502 = vld [vmem:[#allocation6 + $0x10] sm:$0xff]
    %v506 = vcombine.high %v500, %v500
    %v507 = vcombine.high %v501, %v501
    %v508 = vcombine.high %v502, %v502
    %v512 = vpack.c.bf16 %v500, %v500
    %v513 = vpack.c.bf16 %v506, %v506
    %v514 = vpack.c.bf16 %v501, %v501
    %v515 = vpack.c.bf16 %v507, %v507
    %v516 = vpack.c.bf16 %v502, %v502
    %v517 = vpack.c.bf16 %v508, %v508
    %v519 = vlaneseq
    %v520 = vshrl.u32 %v519, 7
    %v521 = vsub.s32 0, %v520
    %v522 = vrot.slane %v402, %v521
    %v523 = vlaneseq
    %v524 = vshrl.u32 %v523, 7
    %v525 = vsub.s32 1, %v524
    %v526 = vrot.slane %v402, %v525
    %v527 = vlaneseq
    %v528 = vshrl.u32 %v527, 7
    %v529 = vsub.s32 2, %v528
    %v530 = vrot.slane %v402, %v529
    %v531 = vlaneseq
    %v532 = vshrl.u32 %v531, 7
    %v533 = vsub.s32 3, %v532
    %v534 = vrot.slane %v402, %v533
    %v535 = vlaneseq
    %v536 = vshrl.u32 %v535, 7
    %v537 = vsub.s32 4, %v536
    %v538 = vrot.slane %v402, %v537
    %v539 = vlaneseq
    %v540 = vshrl.u32 %v539, 7
    %v541 = vsub.s32 5, %v540
    %v542 = vrot.slane %v402, %v541
    %v837 = vunpack.c.l.b16 %v114
    %v838 = vunpack.c.h.b16 %v114
    %v839 = vunpack.c.l.b16 %v115
    %v840 = vunpack.c.h.b16 %v115
    %v841 = vunpack.c.l.b16 %v116
    %v842 = vunpack.c.h.b16 %v116
    %v843 = vunpack.c.l.b16 %v117
    %v844 = vunpack.c.h.b16 %v117
    %v845 = vunpack.c.l.b16 %v118
    %v846 = vunpack.c.h.b16 %v118
    %v847 = vunpack.c.l.b16 %v119
    %v848 = vunpack.c.h.b16 %v119
    %v849 = vunpack.c.l.b16 %v120
    %v850 = vunpack.c.h.b16 %v120
    %v851 = vunpack.c.l.b16 %v121
    %v852 = vunpack.c.h.b16 %v121
    %v853 = vunpack.c.l.b16 %v122
    %v854 = vunpack.c.h.b16 %v122
    %v855 = vunpack.c.l.b16 %v123
    %v856 = vunpack.c.h.b16 %v123
    %v857 = vunpack.c.l.b16 %v124
    %v858 = vunpack.c.h.b16 %v124
    %v859 = vunpack.c.l.b16 %v125
    %v860 = vunpack.c.h.b16 %v125
    %v861 = vunpack.c.l.b16 %v126
    %v862 = vunpack.c.h.b16 %v126
    %v863 = vunpack.c.l.b16 %v127
    %v864 = vunpack.c.h.b16 %v127
    %v865 = vunpack.c.l.b16 %v128
    %v866 = vunpack.c.h.b16 %v128
    %v867 = vunpack.c.l.b16 %v129
    %v868 = vunpack.c.h.b16 %v129
    %v869 = vunpack.c.l.b16 %v130
    %v870 = vunpack.c.h.b16 %v130
    %v871 = vunpack.c.l.b16 %v131
    %v872 = vunpack.c.h.b16 %v131
    %v873 = vunpack.c.l.b16 %v132
    %v874 = vunpack.c.h.b16 %v132
    %v875 = vunpack.c.l.b16 %v133
    %v876 = vunpack.c.h.b16 %v133
    %v877 = vunpack.c.l.b16 %v134
    %v878 = vunpack.c.h.b16 %v134
    %v879 = vunpack.c.l.b16 %v135
    %v880 = vunpack.c.h.b16 %v135
    %v881 = vunpack.c.l.b16 %v136
    %v882 = vunpack.c.h.b16 %v136
    %v883 = vunpack.c.l.b16 %v137
    %v884 = vunpack.c.h.b16 %v137
    %v885 = vunpack.c.l.b16 %v138
    %v886 = vunpack.c.h.b16 %v138
    %v887 = vunpack.c.l.b16 %v139
    %v888 = vunpack.c.h.b16 %v139
    %v889 = vunpack.c.l.b16 %v140
    %v890 = vunpack.c.h.b16 %v140
    %v891 = vunpack.c.l.b16 %v141
    %v892 = vunpack.c.h.b16 %v141
    %v893 = vunpack.c.l.b16 %v142
    %v894 = vunpack.c.h.b16 %v142
    %v895 = vunpack.c.l.b16 %v143
    %v896 = vunpack.c.h.b16 %v143
    %v897 = vunpack.c.l.b16 %v144
    %v898 = vunpack.c.h.b16 %v144
    %v899 = vunpack.c.l.b16 %v145
    %v900 = vunpack.c.h.b16 %v145
    %v901 = vunpack.c.l.b16 %v146
    %v902 = vunpack.c.h.b16 %v146
    %v903 = vunpack.c.l.b16 %v147
    %v904 = vunpack.c.h.b16 %v147
    %v905 = vunpack.c.l.b16 %v148
    %v906 = vunpack.c.h.b16 %v148
    %v907 = vunpack.c.l.b16 %v149
    %v908 = vunpack.c.h.b16 %v149
    %v909 = vunpack.c.l.b16 %v150
    %v910 = vunpack.c.h.b16 %v150
    %v911 = vunpack.c.l.b16 %v151
    %v912 = vunpack.c.h.b16 %v151
    %v913 = vunpack.c.l.b16 %v152
    %v914 = vunpack.c.h.b16 %v152
    %v915 = vunpack.c.l.b16 %v153
    %v916 = vunpack.c.h.b16 %v153
    %v917 = vunpack.c.l.b16 %v154
    %v918 = vunpack.c.h.b16 %v154
    %v919 = vunpack.c.l.b16 %v155
    %v920 = vunpack.c.h.b16 %v155
    %v921 = vunpack.c.l.b16 %v156
    %v922 = vunpack.c.h.b16 %v156
    %v923 = vunpack.c.l.b16 %v157
    %v924 = vunpack.c.h.b16 %v157
    %v925 = vunpack.c.l.b16 %v158
    %v926 = vunpack.c.h.b16 %v158
    %v927 = vunpack.c.l.b16 %v159
    %v928 = vunpack.c.h.b16 %v159
    %v929 = vunpack.c.l.b16 %v160
    %v930 = vunpack.c.h.b16 %v160
    %v931 = vunpack.c.l.b16 %v161
    %v932 = vunpack.c.h.b16 %v161
    %v933 = vunpack.c.l.b16 %v162
    %v934 = vunpack.c.h.b16 %v162
    %v935 = vunpack.c.l.b16 %v163
    %v936 = vunpack.c.h.b16 %v163
    %v937 = vunpack.c.l.b16 %v164
    %v938 = vunpack.c.h.b16 %v164
    %v939 = vunpack.c.l.b16 %v165
    %v940 = vunpack.c.h.b16 %v165
    %v941 = vunpack.c.l.b16 %v166
    %v942 = vunpack.c.h.b16 %v166
    %v943 = vunpack.c.l.b16 %v167
    %v944 = vunpack.c.h.b16 %v167
    %v945 = vunpack.c.l.b16 %v168
    %v946 = vunpack.c.h.b16 %v168
    %v947 = vunpack.c.l.b16 %v169
    %v948 = vunpack.c.h.b16 %v169
    %v949 = vunpack.c.l.b16 %v170
    %v950 = vunpack.c.h.b16 %v170
    %v951 = vunpack.c.l.b16 %v171
    %v952 = vunpack.c.h.b16 %v171
    %v953 = vunpack.c.l.b16 %v172
    %v954 = vunpack.c.h.b16 %v172
    %v955 = vunpack.c.l.b16 %v173
    %v956 = vunpack.c.h.b16 %v173
    %v957 = vunpack.c.l.b16 %v174
    %v958 = vunpack.c.h.b16 %v174
    %v959 = vunpack.c.l.b16 %v175
    %v960 = vunpack.c.h.b16 %v175
    %v961 = vunpack.c.l.b16 %v176
    %v962 = vunpack.c.h.b16 %v176
    %v963 = vunpack.c.l.b16 %v177
    %v964 = vunpack.c.h.b16 %v177
    %v965 = vunpack.c.l.b16 %v178
    %v966 = vunpack.c.h.b16 %v178
    %v967 = vunpack.c.l.b16 %v179
    %v968 = vunpack.c.h.b16 %v179
    %v969 = vunpack.c.l.b16 %v180
    %v970 = vunpack.c.h.b16 %v180
    %v971 = vunpack.c.l.b16 %v181
    %v972 = vunpack.c.h.b16 %v181
    %v973 = vunpack.c.l.b16 %v182
    %v974 = vunpack.c.h.b16 %v182
    %v975 = vunpack.c.l.b16 %v183
    %v976 = vunpack.c.h.b16 %v183
    %v977 = vunpack.c.l.b16 %v184
    %v978 = vunpack.c.h.b16 %v184
    %v979 = vunpack.c.l.b16 %v185
    %v980 = vunpack.c.h.b16 %v185
    %v981 = vunpack.c.l.b16 %v186
    %v982 = vunpack.c.h.b16 %v186
    %v983 = vunpack.c.l.b16 %v187
    %v984 = vunpack.c.h.b16 %v187
    %v985 = vunpack.c.l.b16 %v188
    %v986 = vunpack.c.h.b16 %v188
    %v987 = vunpack.c.l.b16 %v189
    %v988 = vunpack.c.h.b16 %v189
    %v989 = vunpack.c.l.b16 %v190
    %v990 = vunpack.c.h.b16 %v190
    %v991 = vunpack.c.l.b16 %v191
    %v992 = vunpack.c.h.b16 %v191
    %v993 = vunpack.c.l.b16 %v192
    %v994 = vunpack.c.h.b16 %v192
    %v995 = vunpack.c.l.b16 %v193
    %v996 = vunpack.c.h.b16 %v193
    %v997 = vunpack.c.l.b16 %v194
    %v998 = vunpack.c.h.b16 %v194
    %v999 = vunpack.c.l.b16 %v195
    %v1000 = vunpack.c.h.b16 %v195
    %v1001 = vunpack.c.l.b16 %v196
    %v1002 = vunpack.c.h.b16 %v196
    %v1003 = vunpack.c.l.b16 %v197
    %v1004 = vunpack.c.h.b16 %v197
    %v1005 = vunpack.c.l.b16 %v198
    %v1006 = vunpack.c.h.b16 %v198
    %v1007 = vunpack.c.l.b16 %v199
    %v1008 = vunpack.c.h.b16 %v199
    %v1009 = vunpack.c.l.b16 %v200
    %v1010 = vunpack.c.h.b16 %v200
    %v1011 = vunpack.c.l.b16 %v201
    %v1012 = vunpack.c.h.b16 %v201
    %v1013 = vunpack.c.l.b16 %v202
    %v1014 = vunpack.c.h.b16 %v202
    %v1015 = vunpack.c.l.b16 %v203
    %v1016 = vunpack.c.h.b16 %v203
    %v1017 = vunpack.c.l.b16 %v204
    %v1018 = vunpack.c.h.b16 %v204
    %v1019 = vunpack.c.l.b16 %v205
    %v1020 = vunpack.c.h.b16 %v205
    %v1021 = vunpack.c.l.b16 %v206
    %v1022 = vunpack.c.h.b16 %v206
    %v1023 = vunpack.c.l.b16 %v207
    %v1024 = vunpack.c.h.b16 %v207
    %v1025 = vunpack.c.l.b16 %v208
    %v1026 = vunpack.c.h.b16 %v208
    %v1027 = vunpack.c.l.b16 %v209
    %v1028 = vunpack.c.h.b16 %v209
    %v1029 = vunpack.c.l.b16 %v210
    %v1030 = vunpack.c.h.b16 %v210
    %v1031 = vunpack.c.l.b16 %v211
    %v1032 = vunpack.c.h.b16 %v211
    %v1033 = vunpack.c.l.b16 %v212
    %v1034 = vunpack.c.h.b16 %v212
    %v1035 = vunpack.c.l.b16 %v213
    %v1036 = vunpack.c.h.b16 %v213
    %v1037 = vunpack.c.l.b16 %v214
    %v1038 = vunpack.c.h.b16 %v214
    %v1039 = vunpack.c.l.b16 %v215
    %v1040 = vunpack.c.h.b16 %v215
    %v1041 = vunpack.c.l.b16 %v216
    %v1042 = vunpack.c.h.b16 %v216
    %v1043 = vunpack.c.l.b16 %v217
    %v1044 = vunpack.c.h.b16 %v217
    %v1045 = vunpack.c.l.b16 %v218
    %v1046 = vunpack.c.h.b16 %v218
    %v1047 = vunpack.c.l.b16 %v219
    %v1048 = vunpack.c.h.b16 %v219
    %v1049 = vunpack.c.l.b16 %v220
    %v1050 = vunpack.c.h.b16 %v220
    %v1051 = vunpack.c.l.b16 %v221
    %v1052 = vunpack.c.h.b16 %v221
    %v1053 = vunpack.c.l.b16 %v222
    %v1054 = vunpack.c.h.b16 %v222
    %v1055 = vunpack.c.l.b16 %v223
    %v1056 = vunpack.c.h.b16 %v223
    %v1057 = vunpack.c.l.b16 %v224
    %v1058 = vunpack.c.h.b16 %v224
    %v1059 = vunpack.c.l.b16 %v225
    %v1060 = vunpack.c.h.b16 %v225
    %v1061 = vunpack.c.l.b16 %v226
    %v1062 = vunpack.c.h.b16 %v226
    %v1063 = vunpack.c.l.b16 %v227
    %v1064 = vunpack.c.h.b16 %v227
    %v1065 = vunpack.c.l.b16 %v228
    %v1066 = vunpack.c.h.b16 %v228
    %v1067 = vunpack.c.l.b16 %v229
    %v1068 = vunpack.c.h.b16 %v229
    %v1069 = vunpack.c.l.b16 %v230
    %v1070 = vunpack.c.h.b16 %v230
    %v1071 = vunpack.c.l.b16 %v231
    %v1072 = vunpack.c.h.b16 %v231
    %v1073 = vunpack.c.l.b16 %v232
    %v1074 = vunpack.c.h.b16 %v232
    %v1075 = vunpack.c.l.b16 %v233
    %v1076 = vunpack.c.h.b16 %v233
    %v1077 = vunpack.c.l.b16 %v234
    %v1078 = vunpack.c.h.b16 %v234
    %v1079 = vunpack.c.l.b16 %v235
    %v1080 = vunpack.c.h.b16 %v235
    %v1081 = vunpack.c.l.b16 %v236
    %v1082 = vunpack.c.h.b16 %v236
    %v1083 = vunpack.c.l.b16 %v237
    %v1084 = vunpack.c.h.b16 %v237
    %v1085 = vunpack.c.l.b16 %v238
    %v1086 = vunpack.c.h.b16 %v238
    %v1087 = vunpack.c.l.b16 %v239
    %v1088 = vunpack.c.h.b16 %v239
    %v1089 = vunpack.c.l.b16 %v240
    %v1090 = vunpack.c.h.b16 %v240
    %v1091 = vunpack.c.l.b16 %v241
    %v1092 = vunpack.c.h.b16 %v241
    %v1093 = vunpack.c.l.b16 %v242
    %v1094 = vunpack.c.h.b16 %v242
    %v1095 = vunpack.c.l.b16 %v243
    %v1096 = vunpack.c.h.b16 %v243
    %v1097 = vunpack.c.l.b16 %v244
    %v1098 = vunpack.c.h.b16 %v244
    %v1099 = vunpack.c.l.b16 %v245
    %v1100 = vunpack.c.h.b16 %v245
    %v1101 = vunpack.c.l.b16 %v246
    %v1102 = vunpack.c.h.b16 %v246
    %v1103 = vunpack.c.l.b16 %v247
    %v1104 = vunpack.c.h.b16 %v247
    %v1105 = vunpack.c.l.b16 %v248
    %v1106 = vunpack.c.h.b16 %v248
    %v1107 = vunpack.c.l.b16 %v249
    %v1108 = vunpack.c.h.b16 %v249
    %v1109 = vunpack.c.l.b16 %v250
    %v1110 = vunpack.c.h.b16 %v250
    %v1111 = vunpack.c.l.b16 %v251
    %v1112 = vunpack.c.h.b16 %v251
    %v1113 = vunpack.c.l.b16 %v252
    %v1114 = vunpack.c.h.b16 %v252
    %v1115 = vunpack.c.l.b16 %v253
    %v1116 = vunpack.c.h.b16 %v253
    %v1117 = vunpack.c.l.b16 %v254
    %v1118 = vunpack.c.h.b16 %v254
    %v1119 = vunpack.c.l.b16 %v255
    %v1120 = vunpack.c.h.b16 %v255
    %v1121 = vunpack.c.l.b16 %v256
    %v1122 = vunpack.c.h.b16 %v256
    %v1123 = vunpack.c.l.b16 %v257
    %v1124 = vunpack.c.h.b16 %v257
    %v1125 = vunpack.c.l.b16 %v258
    %v1126 = vunpack.c.h.b16 %v258
    %v1127 = vunpack.c.l.b16 %v259
    %v1128 = vunpack.c.h.b16 %v259
    %v1129 = vunpack.c.l.b16 %v260
    %v1130 = vunpack.c.h.b16 %v260
    %v1131 = vunpack.c.l.b16 %v261
    %v1132 = vunpack.c.h.b16 %v261
    %v1133 = vunpack.c.l.b16 %v262
    %v1134 = vunpack.c.h.b16 %v262
    %v1135 = vunpack.c.l.b16 %v263
    %v1136 = vunpack.c.h.b16 %v263
    %v1137 = vunpack.c.l.b16 %v264
    %v1138 = vunpack.c.h.b16 %v264
    %v1139 = vunpack.c.l.b16 %v265
    %v1140 = vunpack.c.h.b16 %v265
    %v1141 = vunpack.c.l.b16 %v266
    %v1142 = vunpack.c.h.b16 %v266
    %v1143 = vunpack.c.l.b16 %v267
    %v1144 = vunpack.c.h.b16 %v267
    %v1145 = vunpack.c.l.b16 %v268
    %v1146 = vunpack.c.h.b16 %v268
    %v1147 = vunpack.c.l.b16 %v269
    %v1148 = vunpack.c.h.b16 %v269
    %v1149 = vunpack.c.l.b16 %v270
    %v1150 = vunpack.c.h.b16 %v270
    %v1151 = vunpack.c.l.b16 %v271
    %v1152 = vunpack.c.h.b16 %v271
    %v1153 = vunpack.c.l.b16 %v272
    %v1154 = vunpack.c.h.b16 %v272
    %v1155 = vunpack.c.l.b16 %v273
    %v1156 = vunpack.c.h.b16 %v273
    %v1157 = vunpack.c.l.b16 %v274
    %v1158 = vunpack.c.h.b16 %v274
    %v1159 = vunpack.c.l.b16 %v275
    %v1160 = vunpack.c.h.b16 %v275
    %v1161 = vunpack.c.l.b16 %v276
    %v1162 = vunpack.c.h.b16 %v276
    %v1163 = vunpack.c.l.b16 %v277
    %v1164 = vunpack.c.h.b16 %v277
    %v1165 = vunpack.c.l.b16 %v278
    %v1166 = vunpack.c.h.b16 %v278
    %v1167 = vunpack.c.l.b16 %v279
    %v1168 = vunpack.c.h.b16 %v279
    %v1169 = vunpack.c.l.b16 %v280
    %v1170 = vunpack.c.h.b16 %v280
    %v1171 = vunpack.c.l.b16 %v281
    %v1172 = vunpack.c.h.b16 %v281
    %v1173 = vunpack.c.l.b16 %v282
    %v1174 = vunpack.c.h.b16 %v282
    %v1175 = vunpack.c.l.b16 %v283
    %v1176 = vunpack.c.h.b16 %v283
    %v1177 = vunpack.c.l.b16 %v284
    %v1178 = vunpack.c.h.b16 %v284
    %v1179 = vunpack.c.l.b16 %v285
    %v1180 = vunpack.c.h.b16 %v285
    %v1181 = vunpack.c.l.b16 %v286
    %v1182 = vunpack.c.h.b16 %v286
    %v1183 = vunpack.c.l.b16 %v287
    %v1184 = vunpack.c.h.b16 %v287
    %v1185 = vunpack.c.l.b16 %v288
    %v1186 = vunpack.c.h.b16 %v288
    %v1187 = vunpack.c.l.b16 %v289
    %v1188 = vunpack.c.h.b16 %v289
    %v1189 = vunpack.c.l.b16 %v290
    %v1190 = vunpack.c.h.b16 %v290
    %v1191 = vunpack.c.l.b16 %v291
    %v1192 = vunpack.c.h.b16 %v291
    %v1193 = vunpack.c.l.b16 %v292
    %v1194 = vunpack.c.h.b16 %v292
    %v1195 = vunpack.c.l.b16 %v293
    %v1196 = vunpack.c.h.b16 %v293
    %v1197 = vunpack.c.l.b16 %v294
    %v1198 = vunpack.c.h.b16 %v294
    %v1199 = vunpack.c.l.b16 %v295
    %v1200 = vunpack.c.h.b16 %v295
    %v1201 = vunpack.c.l.b16 %v296
    %v1202 = vunpack.c.h.b16 %v296
    %v1203 = vunpack.c.l.b16 %v297
    %v1204 = vunpack.c.h.b16 %v297
    %v1205 = vunpack.c.l.b16 %v298
    %v1206 = vunpack.c.h.b16 %v298
    %v1207 = vunpack.c.l.b16 %v299
    %v1208 = vunpack.c.h.b16 %v299
    %v1209 = vunpack.c.l.b16 %v300
    %v1210 = vunpack.c.h.b16 %v300
    %v1211 = vunpack.c.l.b16 %v301
    %v1212 = vunpack.c.h.b16 %v301
    %v1213 = vunpack.c.l.b16 %v302
    %v1214 = vunpack.c.h.b16 %v302
    %v1215 = vunpack.c.l.b16 %v303
    %v1216 = vunpack.c.h.b16 %v303
    %v1217 = vunpack.c.l.b16 %v304
    %v1218 = vunpack.c.h.b16 %v304
    %v1219 = vunpack.c.l.b16 %v305
    %v1220 = vunpack.c.h.b16 %v305
    %v1221 = vunpack.c.l.b16 %v306
    %v1222 = vunpack.c.h.b16 %v306
    %v1223 = vunpack.c.l.b16 %v307
    %v1224 = vunpack.c.h.b16 %v307
    %v1225 = vunpack.c.l.b16 %v308
    %v1226 = vunpack.c.h.b16 %v308
    %v1227 = vunpack.c.l.b16 %v309
    %v1228 = vunpack.c.h.b16 %v309
    %v1229 = vunpack.c.l.b16 %v310
    %v1230 = vunpack.c.h.b16 %v310
    %v1231 = vunpack.c.l.b16 %v311
    %v1232 = vunpack.c.h.b16 %v311
    %v1233 = vunpack.c.l.b16 %v312
    %v1234 = vunpack.c.h.b16 %v312
    %v1235 = vunpack.c.l.b16 %v313
    %v1236 = vunpack.c.h.b16 %v313
    %v1237 = vunpack.c.l.b16 %v314
    %v1238 = vunpack.c.h.b16 %v314
    %v1239 = vunpack.c.l.b16 %v315
    %v1240 = vunpack.c.h.b16 %v315
    %v1241 = vunpack.c.l.b16 %v316
    %v1242 = vunpack.c.h.b16 %v316
    %v1243 = vunpack.c.l.b16 %v317
    %v1244 = vunpack.c.h.b16 %v317
    %v1245 = vunpack.c.l.b16 %v318
    %v1246 = vunpack.c.h.b16 %v318
    %v1247 = vunpack.c.l.b16 %v319
    %v1248 = vunpack.c.h.b16 %v319
    %v1249 = vunpack.c.l.b16 %v320
    %v1250 = vunpack.c.h.b16 %v320
    %v1251 = vunpack.c.l.b16 %v321
    %v1252 = vunpack.c.h.b16 %v321
    %v1253 = vunpack.c.l.b16 %v322
    %v1254 = vunpack.c.h.b16 %v322
    %v1255 = vunpack.c.l.b16 %v323
    %v1256 = vunpack.c.h.b16 %v323
    %v1257 = vunpack.c.l.b16 %v324
    %v1258 = vunpack.c.h.b16 %v324
    %v1259 = vunpack.c.l.b16 %v325
    %v1260 = vunpack.c.h.b16 %v325
    %v1261 = vunpack.c.l.b16 %v326
    %v1262 = vunpack.c.h.b16 %v326
    %v1263 = vunpack.c.l.b16 %v327
    %v1264 = vunpack.c.h.b16 %v327
    %v1265 = vunpack.c.l.b16 %v328
    %v1266 = vunpack.c.h.b16 %v328
    %v1267 = vunpack.c.l.b16 %v329
    %v1268 = vunpack.c.h.b16 %v329
    %v1269 = vunpack.c.l.b16 %v330
    %v1270 = vunpack.c.h.b16 %v330
    %v1271 = vunpack.c.l.b16 %v331
    %v1272 = vunpack.c.h.b16 %v331
    %v1273 = vunpack.c.l.b16 %v332
    %v1274 = vunpack.c.h.b16 %v332
    %v1275 = vunpack.c.l.b16 %v333
    %v1276 = vunpack.c.h.b16 %v333
    %v1277 = vunpack.c.l.b16 %v334
    %v1278 = vunpack.c.h.b16 %v334
    %v1279 = vunpack.c.l.b16 %v335
    %v1280 = vunpack.c.h.b16 %v335
    %v1281 = vunpack.c.l.b16 %v336
    %v1282 = vunpack.c.h.b16 %v336
    %v1283 = vunpack.c.l.b16 %v337
    %v1284 = vunpack.c.h.b16 %v337
    %v1285 = vunpack.c.l.b16 %v338
    %v1286 = vunpack.c.h.b16 %v338
    %v1287 = vunpack.c.l.b16 %v339
    %v1288 = vunpack.c.h.b16 %v339
    %v1289 = vunpack.c.l.b16 %v340
    %v1290 = vunpack.c.h.b16 %v340
    %v1291 = vunpack.c.l.b16 %v341
    %v1292 = vunpack.c.h.b16 %v341
    %v1293 = vunpack.c.l.b16 %v342
    %v1294 = vunpack.c.h.b16 %v342
    %v1295 = vunpack.c.l.b16 %v343
    %v1296 = vunpack.c.h.b16 %v343
    %v1297 = vunpack.c.l.b16 %v344
    %v1298 = vunpack.c.h.b16 %v344
    %v1299 = vunpack.c.l.b16 %v345
    %v1300 = vunpack.c.h.b16 %v345
    %v1301 = vunpack.c.l.b16 %v346
    %v1302 = vunpack.c.h.b16 %v346
    %v1303 = vunpack.c.l.b16 %v347
    %v1304 = vunpack.c.h.b16 %v347
    %v1305 = vunpack.c.l.b16 %v348
    %v1306 = vunpack.c.h.b16 %v348
    %v1307 = vunpack.c.l.b16 %v349
    %v1308 = vunpack.c.h.b16 %v349
    %v1309 = vunpack.c.l.b16 %v350
    %v1310 = vunpack.c.h.b16 %v350
    %v1311 = vunpack.c.l.b16 %v351
    %v1312 = vunpack.c.h.b16 %v351
    %v1313 = vunpack.c.l.b16 %v352
    %v1314 = vunpack.c.h.b16 %v352
    %v1315 = vunpack.c.l.b16 %v353
    %v1316 = vunpack.c.h.b16 %v353
    %v1317 = vunpack.c.l.b16 %v354
    %v1318 = vunpack.c.h.b16 %v354
    %v1319 = vunpack.c.l.b16 %v355
    %v1320 = vunpack.c.h.b16 %v355
    %v1321 = vunpack.c.l.b16 %v356
    %v1322 = vunpack.c.h.b16 %v356
    %v1323 = vunpack.c.l.b16 %v357
    %v1324 = vunpack.c.h.b16 %v357
    %v1325 = vunpack.c.l.b16 %v358
    %v1326 = vunpack.c.h.b16 %v358
    %v1327 = vunpack.c.l.b16 %v359
    %v1328 = vunpack.c.h.b16 %v359
    %v1329 = vunpack.c.l.b16 %v360
    %v1330 = vunpack.c.h.b16 %v360
    %v1331 = vunpack.c.l.b16 %v361
    %v1332 = vunpack.c.h.b16 %v361
    %v1333 = vunpack.c.l.b16 %v362
    %v1334 = vunpack.c.h.b16 %v362
    %v1335 = vunpack.c.l.b16 %v363
    %v1336 = vunpack.c.h.b16 %v363
    %v1337 = vunpack.c.l.b16 %v364
    %v1338 = vunpack.c.h.b16 %v364
    %v1339 = vunpack.c.l.b16 %v365
    %v1340 = vunpack.c.h.b16 %v365
    %v1341 = vunpack.c.l.b16 %v366
    %v1342 = vunpack.c.h.b16 %v366
    %v1343 = vunpack.c.l.b16 %v367
    %v1344 = vunpack.c.h.b16 %v367
    %v1345 = vunpack.c.l.b16 %v368
    %v1346 = vunpack.c.h.b16 %v368
    %v1347 = vunpack.c.l.b16 %v369
    %v1348 = vunpack.c.h.b16 %v369
    %v1349 = vunpack.c.l.b16 %v370
    %v1350 = vunpack.c.h.b16 %v370
    %v1351 = vunpack.c.l.b16 %v371
    %v1352 = vunpack.c.h.b16 %v371
    %v1353 = vunpack.c.l.b16 %v372
    %v1354 = vunpack.c.h.b16 %v372
    %v1355 = vunpack.c.l.b16 %v373
    %v1356 = vunpack.c.h.b16 %v373
    %v1357 = vunpack.c.l.b16 %v374
    %v1358 = vunpack.c.h.b16 %v374
    %v1359 = vunpack.c.l.b16 %v375
    %v1360 = vunpack.c.h.b16 %v375
    %v1361 = vunpack.c.l.b16 %v376
    %v1362 = vunpack.c.h.b16 %v376
    %v1363 = vunpack.c.l.b16 %v377
    %v1364 = vunpack.c.h.b16 %v377
    %v1365 = vunpack.c.l.b16 %v378
    %v1366 = vunpack.c.h.b16 %v378
    %v1367 = vunpack.c.l.b16 %v379
    %v1368 = vunpack.c.h.b16 %v379
    %v1369 = vunpack.c.l.b16 %v380
    %v1370 = vunpack.c.h.b16 %v380
    %v1371 = vunpack.c.l.b16 %v381
    %v1372 = vunpack.c.h.b16 %v381
    %v1373 = vunpack.c.l.b16 %v382
    %v1374 = vunpack.c.h.b16 %v382
    %v1375 = vunpack.c.l.b16 %v383
    %v1376 = vunpack.c.h.b16 %v383
    %v1377 = vunpack.c.l.b16 %v384
    %v1378 = vunpack.c.h.b16 %v384
    %v1379 = vunpack.c.l.b16 %v385
    %v1380 = vunpack.c.h.b16 %v385
    %v1381 = vunpack.c.l.b16 %v386
    %v1382 = vunpack.c.h.b16 %v386
    %v1383 = vunpack.c.l.b16 %v387
    %v1384 = vunpack.c.h.b16 %v387
    %v1385 = vunpack.c.l.b16 %v388
    %v1386 = vunpack.c.h.b16 %v388
    %v1387 = vunpack.c.l.b16 %v389
    %v1388 = vunpack.c.h.b16 %v389
    %v1389 = vunpack.c.l.b16 %v390
    %v1390 = vunpack.c.h.b16 %v390
    %v1391 = vunpack.c.l.b16 %v391
    %v1392 = vunpack.c.h.b16 %v391
    %v1393 = vunpack.c.l.b16 %v392
    %v1394 = vunpack.c.h.b16 %v392
    %v1395 = vunpack.c.l.b16 %v393
    %v1396 = vunpack.c.h.b16 %v393
    %v1397 = vunpack.c.l.b16 %v394
    %v1398 = vunpack.c.h.b16 %v394
    %v1399 = vunpack.c.l.b16 %v395
    %v1400 = vunpack.c.h.b16 %v395
    %v1401 = vunpack.c.l.b16 %v396
    %v1402 = vunpack.c.h.b16 %v396
    %v1403 = vunpack.c.l.b16 %v397
    %v1404 = vunpack.c.h.b16 %v397
    %v1405 = vunpack.c.l.b16 %v398
    %v1406 = vunpack.c.h.b16 %v398
    %v1407 = vunpack.c.l.b16 %v399
    %v1408 = vunpack.c.h.b16 %v399
    %v1409 = vunpack.c.l.b16 %v400
    %v1410 = vunpack.c.h.b16 %v400
    %v1411 = vunpack.c.l.b16 %v401
    %v1412 = vunpack.c.h.b16 %v401
    %v1413 = vpack.c.b16 %v843, %v837
    %v1414 = vpack.c.b16 %v844, %v838
    %v1415 = vpack.c.b16 %v845, %v839
    %v1416 = vpack.c.b16 %v846, %v840
    %v1417 = vpack.c.b16 %v847, %v841
    %v1418 = vpack.c.b16 %v848, %v842
    %v1419 = vpack.c.b16 %v855, %v849
    %v1420 = vpack.c.b16 %v856, %v850
    %v1421 = vpack.c.b16 %v857, %v851
    %v1422 = vpack.c.b16 %v858, %v852
    %v1423 = vpack.c.b16 %v859, %v853
    %v1424 = vpack.c.b16 %v860, %v854
    %v1425 = vpack.c.b16 %v867, %v861
    %v1426 = vpack.c.b16 %v868, %v862
    %v1427 = vpack.c.b16 %v869, %v863
    %v1428 = vpack.c.b16 %v870, %v864
    %v1429 = vpack.c.b16 %v871, %v865
    %v1430 = vpack.c.b16 %v872, %v866
    %v1431 = vpack.c.b16 %v879, %v873
    %v1432 = vpack.c.b16 %v880, %v874
    %v1433 = vpack.c.b16 %v881, %v875
    %v1434 = vpack.c.b16 %v882, %v876
    %v1435 = vpack.c.b16 %v883, %v877
    %v1436 = vpack.c.b16 %v884, %v878
    %v1437 = vpack.c.b16 %v891, %v885
    %v1438 = vpack.c.b16 %v892, %v886
    %v1439 = vpack.c.b16 %v893, %v887
    %v1440 = vpack.c.b16 %v894, %v888
    %v1441 = vpack.c.b16 %v895, %v889
    %v1442 = vpack.c.b16 %v896, %v890
    %v1443 = vpack.c.b16 %v903, %v897
    %v1444 = vpack.c.b16 %v904, %v898
    %v1445 = vpack.c.b16 %v905, %v899
    %v1446 = vpack.c.b16 %v906, %v900
    %v1447 = vpack.c.b16 %v907, %v901
    %v1448 = vpack.c.b16 %v908, %v902
    %v1449 = vpack.c.b16 %v915, %v909
    %v1450 = vpack.c.b16 %v916, %v910
    %v1451 = vpack.c.b16 %v917, %v911
    %v1452 = vpack.c.b16 %v918, %v912
    %v1453 = vpack.c.b16 %v919, %v913
    %v1454 = vpack.c.b16 %v920, %v914
    %v1455 = vpack.c.b16 %v927, %v921
    %v1456 = vpack.c.b16 %v928, %v922
    %v1457 = vpack.c.b16 %v929, %v923
    %v1458 = vpack.c.b16 %v930, %v924
    %v1459 = vpack.c.b16 %v931, %v925
    %v1460 = vpack.c.b16 %v932, %v926
    %v1461 = vpack.c.b16 %v939, %v933
    %v1462 = vpack.c.b16 %v940, %v934
    %v1463 = vpack.c.b16 %v941, %v935
    %v1464 = vpack.c.b16 %v942, %v936
    %v1465 = vpack.c.b16 %v943, %v937
    %v1466 = vpack.c.b16 %v944, %v938
    %v1467 = vpack.c.b16 %v951, %v945
    %v1468 = vpack.c.b16 %v952, %v946
    %v1469 = vpack.c.b16 %v953, %v947
    %v1470 = vpack.c.b16 %v954, %v948
    %v1471 = vpack.c.b16 %v955, %v949
    %v1472 = vpack.c.b16 %v956, %v950
    %v1473 = vpack.c.b16 %v963, %v957
    %v1474 = vpack.c.b16 %v964, %v958
    %v1475 = vpack.c.b16 %v965, %v959
    %v1476 = vpack.c.b16 %v966, %v960
    %v1477 = vpack.c.b16 %v967, %v961
    %v1478 = vpack.c.b16 %v968, %v962
    %v1479 = vpack.c.b16 %v975, %v969
    %v1480 = vpack.c.b16 %v976, %v970
    %v1481 = vpack.c.b16 %v977, %v971
    %v1482 = vpack.c.b16 %v978, %v972
    %v1483 = vpack.c.b16 %v979, %v973
    %v1484 = vpack.c.b16 %v980, %v974
    %v1485 = vpack.c.b16 %v987, %v981
    %v1486 = vpack.c.b16 %v988, %v982
    %v1487 = vpack.c.b16 %v989, %v983
    %v1488 = vpack.c.b16 %v990, %v984
    %v1489 = vpack.c.b16 %v991, %v985
    %v1490 = vpack.c.b16 %v992, %v986
    %v1491 = vpack.c.b16 %v999, %v993
    %v1492 = vpack.c.b16 %v1000, %v994
    %v1493 = vpack.c.b16 %v1001, %v995
    %v1494 = vpack.c.b16 %v1002, %v996
    %v1495 = vpack.c.b16 %v1003, %v997
    %v1496 = vpack.c.b16 %v1004, %v998
    %v1497 = vpack.c.b16 %v1011, %v1005
    %v1498 = vpack.c.b16 %v1012, %v1006
    %v1499 = vpack.c.b16 %v1013, %v1007
    %v1500 = vpack.c.b16 %v1014, %v1008
    %v1501 = vpack.c.b16 %v1015, %v1009
    %v1502 = vpack.c.b16 %v1016, %v1010
    %v1503 = vpack.c.b16 %v1023, %v1017
    %v1504 = vpack.c.b16 %v1024, %v1018
    %v1505 = vpack.c.b16 %v1025, %v1019
    %v1506 = vpack.c.b16 %v1026, %v1020
    %v1507 = vpack.c.b16 %v1027, %v1021
    %v1508 = vpack.c.b16 %v1028, %v1022
    %v1509 = vpack.c.b16 %v1035, %v1029
    %v1510 = vpack.c.b16 %v1036, %v1030
    %v1511 = vpack.c.b16 %v1037, %v1031
    %v1512 = vpack.c.b16 %v1038, %v1032
    %v1513 = vpack.c.b16 %v1039, %v1033
    %v1514 = vpack.c.b16 %v1040, %v1034
    %v1515 = vpack.c.b16 %v1047, %v1041
    %v1516 = vpack.c.b16 %v1048, %v1042
    %v1517 = vpack.c.b16 %v1049, %v1043
    %v1518 = vpack.c.b16 %v1050, %v1044
    %v1519 = vpack.c.b16 %v1051, %v1045
    %v1520 = vpack.c.b16 %v1052, %v1046
    %v1521 = vpack.c.b16 %v1059, %v1053
    %v1522 = vpack.c.b16 %v1060, %v1054
    %v1523 = vpack.c.b16 %v1061, %v1055
    %v1524 = vpack.c.b16 %v1062, %v1056
    %v1525 = vpack.c.b16 %v1063, %v1057
    %v1526 = vpack.c.b16 %v1064, %v1058
    %v1527 = vpack.c.b16 %v1071, %v1065
    %v1528 = vpack.c.b16 %v1072, %v1066
    %v1529 = vpack.c.b16 %v1073, %v1067
    %v1530 = vpack.c.b16 %v1074, %v1068
    %v1531 = vpack.c.b16 %v1075, %v1069
    %v1532 = vpack.c.b16 %v1076, %v1070
    %v1533 = vpack.c.b16 %v1083, %v1077
    %v1534 = vpack.c.b16 %v1084, %v1078
    %v1535 = vpack.c.b16 %v1085, %v1079
    %v1536 = vpack.c.b16 %v1086, %v1080
    %v1537 = vpack.c.b16 %v1087, %v1081
    %v1538 = vpack.c.b16 %v1088, %v1082
    %v1539 = vpack.c.b16 %v1095, %v1089
    %v1540 = vpack.c.b16 %v1096, %v1090
    %v1541 = vpack.c.b16 %v1097, %v1091
    %v1542 = vpack.c.b16 %v1098, %v1092
    %v1543 = vpack.c.b16 %v1099, %v1093
    %v1544 = vpack.c.b16 %v1100, %v1094
    %v1545 = vpack.c.b16 %v1107, %v1101
    %v1546 = vpack.c.b16 %v1108, %v1102
    %v1547 = vpack.c.b16 %v1109, %v1103
    %v1548 = vpack.c.b16 %v1110, %v1104
    %v1549 = vpack.c.b16 %v1111, %v1105
    %v1550 = vpack.c.b16 %v1112, %v1106
    %v1551 = vpack.c.b16 %v1119, %v1113
    %v1552 = vpack.c.b16 %v1120, %v1114
    %v1553 = vpack.c.b16 %v1121, %v1115
    %v1554 = vpack.c.b16 %v1122, %v1116
    %v1555 = vpack.c.b16 %v1123, %v1117
    %v1556 = vpack.c.b16 %v1124, %v1118
    %v1557 = vpack.c.b16 %v1131, %v1125
    %v1558 = vpack.c.b16 %v1132, %v1126
    %v1559 = vpack.c.b16 %v1133, %v1127
    %v1560 = vpack.c.b16 %v1134, %v1128
    %v1561 = vpack.c.b16 %v1135, %v1129
    %v1562 = vpack.c.b16 %v1136, %v1130
    %v1563 = vpack.c.b16 %v1143, %v1137
    %v1564 = vpack.c.b16 %v1144, %v1138
    %v1565 = vpack.c.b16 %v1145, %v1139
    %v1566 = vpack.c.b16 %v1146, %v1140
    %v1567 = vpack.c.b16 %v1147, %v1141
    %v1568 = vpack.c.b16 %v1148, %v1142
    %v1569 = vpack.c.b16 %v1155, %v1149
    %v1570 = vpack.c.b16 %v1156, %v1150
    %v1571 = vpack.c.b16 %v1157, %v1151
    %v1572 = vpack.c.b16 %v1158, %v1152
    %v1573 = vpack.c.b16 %v1159, %v1153
    %v1574 = vpack.c.b16 %v1160, %v1154
    %v1575 = vpack.c.b16 %v1167, %v1161
    %v1576 = vpack.c.b16 %v1168, %v1162
    %v1577 = vpack.c.b16 %v1169, %v1163
    %v1578 = vpack.c.b16 %v1170, %v1164
    %v1579 = vpack.c.b16 %v1171, %v1165
    %v1580 = vpack.c.b16 %v1172, %v1166
    %v1581 = vpack.c.b16 %v1179, %v1173
    %v1582 = vpack.c.b16 %v1180, %v1174
    %v1583 = vpack.c.b16 %v1181, %v1175
    %v1584 = vpack.c.b16 %v1182, %v1176
    %v1585 = vpack.c.b16 %v1183, %v1177
    %v1586 = vpack.c.b16 %v1184, %v1178
    %v1587 = vpack.c.b16 %v1191, %v1185
    %v1588 = vpack.c.b16 %v1192, %v1186
    %v1589 = vpack.c.b16 %v1193, %v1187
    %v1590 = vpack.c.b16 %v1194, %v1188
    %v1591 = vpack.c.b16 %v1195, %v1189
    %v1592 = vpack.c.b16 %v1196, %v1190
    %v1593 = vpack.c.b16 %v1203, %v1197
    %v1594 = vpack.c.b16 %v1204, %v1198
    %v1595 = vpack.c.b16 %v1205, %v1199
    %v1596 = vpack.c.b16 %v1206, %v1200
    %v1597 = vpack.c.b16 %v1207, %v1201
    %v1598 = vpack.c.b16 %v1208, %v1202
    %v1599 = vpack.c.b16 %v1215, %v1209
    %v1600 = vpack.c.b16 %v1216, %v1210
    %v1601 = vpack.c.b16 %v1217, %v1211
    %v1602 = vpack.c.b16 %v1218, %v1212
    %v1603 = vpack.c.b16 %v1219, %v1213
    %v1604 = vpack.c.b16 %v1220, %v1214
    %v1605 = vpack.c.b16 %v1227, %v1221
    %v1606 = vpack.c.b16 %v1228, %v1222
    %v1607 = vpack.c.b16 %v1229, %v1223
    %v1608 = vpack.c.b16 %v1230, %v1224
    %v1609 = vpack.c.b16 %v1231, %v1225
    %v1610 = vpack.c.b16 %v1232, %v1226
    %v1611 = vpack.c.b16 %v1239, %v1233
    %v1612 = vpack.c.b16 %v1240, %v1234
    %v1613 = vpack.c.b16 %v1241, %v1235
    %v1614 = vpack.c.b16 %v1242, %v1236
    %v1615 = vpack.c.b16 %v1243, %v1237
    %v1616 = vpack.c.b16 %v1244, %v1238
    %v1617 = vpack.c.b16 %v1251, %v1245
    %v1618 = vpack.c.b16 %v1252, %v1246
    %v1619 = vpack.c.b16 %v1253, %v1247
    %v1620 = vpack.c.b16 %v1254, %v1248
    %v1621 = vpack.c.b16 %v1255, %v1249
    %v1622 = vpack.c.b16 %v1256, %v1250
    %v1623 = vpack.c.b16 %v1263, %v1257
    %v1624 = vpack.c.b16 %v1264, %v1258
    %v1625 = vpack.c.b16 %v1265, %v1259
    %v1626 = vpack.c.b16 %v1266, %v1260
    %v1627 = vpack.c.b16 %v1267, %v1261
    %v1628 = vpack.c.b16 %v1268, %v1262
    %v1629 = vpack.c.b16 %v1275, %v1269
    %v1630 = vpack.c.b16 %v1276, %v1270
    %v1631 = vpack.c.b16 %v1277, %v1271
    %v1632 = vpack.c.b16 %v1278, %v1272
    %v1633 = vpack.c.b16 %v1279, %v1273
    %v1634 = vpack.c.b16 %v1280, %v1274
    %v1635 = vpack.c.b16 %v1287, %v1281
    %v1636 = vpack.c.b16 %v1288, %v1282
    %v1637 = vpack.c.b16 %v1289, %v1283
    %v1638 = vpack.c.b16 %v1290, %v1284
    %v1639 = vpack.c.b16 %v1291, %v1285
    %v1640 = vpack.c.b16 %v1292, %v1286
    %v1641 = vpack.c.b16 %v1299, %v1293
    %v1642 = vpack.c.b16 %v1300, %v1294
    %v1643 = vpack.c.b16 %v1301, %v1295
    %v1644 = vpack.c.b16 %v1302, %v1296
    %v1645 = vpack.c.b16 %v1303, %v1297
    %v1646 = vpack.c.b16 %v1304, %v1298
    %v1647 = vpack.c.b16 %v1311, %v1305
    %v1648 = vpack.c.b16 %v1312, %v1306
    %v1649 = vpack.c.b16 %v1313, %v1307
    %v1650 = vpack.c.b16 %v1314, %v1308
    %v1651 = vpack.c.b16 %v1315, %v1309
    %v1652 = vpack.c.b16 %v1316, %v1310
    %v1653 = vpack.c.b16 %v1323, %v1317
    %v1654 = vpack.c.b16 %v1324, %v1318
    %v1655 = vpack.c.b16 %v1325, %v1319
    %v1656 = vpack.c.b16 %v1326, %v1320
    %v1657 = vpack.c.b16 %v1327, %v1321
    %v1658 = vpack.c.b16 %v1328, %v1322
    %v1659 = vpack.c.b16 %v1335, %v1329
    %v1660 = vpack.c.b16 %v1336, %v1330
    %v1661 = vpack.c.b16 %v1337, %v1331
    %v1662 = vpack.c.b16 %v1338, %v1332
    %v1663 = vpack.c.b16 %v1339, %v1333
    %v1664 = vpack.c.b16 %v1340, %v1334
    %v1665 = vpack.c.b16 %v1347, %v1341
    %v1666 = vpack.c.b16 %v1348, %v1342
    %v1667 = vpack.c.b16 %v1349, %v1343
    %v1668 = vpack.c.b16 %v1350, %v1344
    %v1669 = vpack.c.b16 %v1351, %v1345
    %v1670 = vpack.c.b16 %v1352, %v1346
    %v1671 = vpack.c.b16 %v1359, %v1353
    %v1672 = vpack.c.b16 %v1360, %v1354
    %v1673 = vpack.c.b16 %v1361, %v1355
    %v1674 = vpack.c.b16 %v1362, %v1356
    %v1675 = vpack.c.b16 %v1363, %v1357
    %v1676 = vpack.c.b16 %v1364, %v1358
    %v1677 = vpack.c.b16 %v1371, %v1365
    %v1678 = vpack.c.b16 %v1372, %v1366
    %v1679 = vpack.c.b16 %v1373, %v1367
    %v1680 = vpack.c.b16 %v1374, %v1368
    %v1681 = vpack.c.b16 %v1375, %v1369
    %v1682 = vpack.c.b16 %v1376, %v1370
    %v1683 = vpack.c.b16 %v1383, %v1377
    %v1684 = vpack.c.b16 %v1384, %v1378
    %v1685 = vpack.c.b16 %v1385, %v1379
    %v1686 = vpack.c.b16 %v1386, %v1380
    %v1687 = vpack.c.b16 %v1387, %v1381
    %v1688 = vpack.c.b16 %v1388, %v1382
    %v1689 = vpack.c.b16 %v1395, %v1389
    %v1690 = vpack.c.b16 %v1396, %v1390
    %v1691 = vpack.c.b16 %v1397, %v1391
    %v1692 = vpack.c.b16 %v1398, %v1392
    %v1693 = vpack.c.b16 %v1399, %v1393
    %v1694 = vpack.c.b16 %v1400, %v1394
    %v1695 = vpack.c.b16 %v1407, %v1401
    %v1696 = vpack.c.b16 %v1408, %v1402
    %v1697 = vpack.c.b16 %v1409, %v1403
    %v1698 = vpack.c.b16 %v1410, %v1404
    %v1699 = vpack.c.b16 %v1411, %v1405
    %v1700 = vpack.c.b16 %v1412, %v1406
    %1989 = vmatprep.subr.bf16.mxu0 %v1456
    %1990 = vmatpush1.bf16.msra.mxu0 %v1455
    %1991 = vmatprep.subr.bf16.mxu0 %v1450
    %1992 = vmatpush1.bf16.msra.mxu0 %v1449
    %1993 = vmatprep.subr.bf16.mxu0 %v1444
    %1994 = vmatpush1.bf16.msra.mxu0 %v1443
    %1995 = vmatprep.subr.bf16.mxu0 %v1438
    %1996 = vmatpush1.bf16.msra.mxu0 %v1437
    %1997 = vmatprep.subr.bf16.mxu0 %v1432
    %1998 = vmatpush1.bf16.msra.mxu0 %v1431
    %1999 = vmatprep.subr.bf16.mxu0 %v1426
    %2000 = vmatpush1.bf16.msra.mxu0 %v1425
    %2001 = vmatprep.subr.bf16.mxu0 %v1420
    %2002 = vmatpush1.bf16.msra.mxu0 %v1419
    %2003 = vmatprep.subr.bf16.mxu0 %v1414
    %2004 = vmatpush1.bf16.msra.mxu0 %v1413
    %2005 = vmatprep.subr.bf16.mxu0 %v1504
    %2006 = vmatpush2.bf16.msra.mxu0 %v1503
    %2007 = vmatprep.subr.bf16.mxu0 %v1498
    %2008 = vmatpush2.bf16.msra.mxu0 %v1497
    %2009 = vmatprep.subr.bf16.mxu0 %v1492
    %2010 = vmatpush2.bf16.msra.mxu0 %v1491
    %2011 = vmatprep.subr.bf16.mxu0 %v1486
    %2012 = vmatpush2.bf16.msra.mxu0 %v1485
    %2013 = vmatprep.subr.bf16.mxu0 %v1480
    %2014 = vmatpush2.bf16.msra.mxu0 %v1479
    %2015 = vmatprep.subr.bf16.mxu0 %v1474
    %2016 = vmatpush2.bf16.msra.mxu0 %v1473
    %2017 = vmatprep.subr.bf16.mxu0 %v1468
    %2018 = vmatpush2.bf16.msra.mxu0 %v1467
    %2019 = vmatprep.subr.bf16.mxu0 %v1462
    %2020 = vmatpush2.bf16.msra.mxu0 %v1461
    %2021 = vmatprep.mubr.bf16.mxu0 %v513
    %2022 = vmatmul.mubr.bf16.gmra.mxu0 %v512
    %v2023 = vpop.f32.mrf.mxu0
    %v2024 = vadd.f32 %v522, %v2023
    %v2025 = vpop.f32.mrf.mxu0
    %v2026 = vadd.f32 %v526, %v2025
    %v2027 = vpop.f32.mrf.mxu0
    %v2028 = vpop.f32.mrf.mxu0
    %2029 = vdwg.mxu0
    %2030 = vmatprep.subr.bf16.mxu0 %v1552
    %2031 = vmatpush1.bf16.msra.mxu0 %v1551
    %2032 = vmatprep.subr.bf16.mxu0 %v1546
    %2033 = vmatpush1.bf16.msra.mxu0 %v1545
    %2034 = vmatprep.subr.bf16.mxu0 %v1540
    %2035 = vmatpush1.bf16.msra.mxu0 %v1539
    %2036 = vmatprep.subr.bf16.mxu0 %v1534
    %2037 = vmatpush1.bf16.msra.mxu0 %v1533
    %2038 = vmatprep.subr.bf16.mxu0 %v1528
    %2039 = vmatpush1.bf16.msra.mxu0 %v1527
    %2040 = vmatprep.subr.bf16.mxu0 %v1522
    %2041 = vmatpush1.bf16.msra.mxu0 %v1521
    %2042 = vmatprep.subr.bf16.mxu0 %v1516
    %2043 = vmatpush1.bf16.msra.mxu0 %v1515
    %2044 = vmatprep.subr.bf16.mxu0 %v1510
    %2045 = vmatpush1.bf16.msra.mxu0 %v1509
    %2046 = vmatprep.subr.bf16.mxu0 %v1600
    %2047 = vmatpush2.bf16.msra.mxu0 %v1599
    %2048 = vmatprep.subr.bf16.mxu0 %v1594
    %2049 = vmatpush2.bf16.msra.mxu0 %v1593
    %2050 = vmatprep.subr.bf16.mxu0 %v1588
    %2051 = vmatpush2.bf16.msra.mxu0 %v1587
    %2052 = vmatprep.subr.bf16.mxu0 %v1582
    %2053 = vmatpush2.bf16.msra.mxu0 %v1581
    %2054 = vmatprep.subr.bf16.mxu0 %v1576
    %2055 = vmatpush2.bf16.msra.mxu0 %v1575
    %2056 = vmatprep.subr.bf16.mxu0 %v1570
    %2057 = vmatpush2.bf16.msra.mxu0 %v1569
    %2058 = vmatprep.subr.bf16.mxu0 %v1564
    %2059 = vmatpush2.bf16.msra.mxu0 %v1563
    %2060 = vmatprep.subr.bf16.mxu0 %v1558
    %2061 = vmatpush2.bf16.msra.mxu0 %v1557
    %2062 = vmatprep.mubr.bf16.mxu0 %v515
    %2063 = vmatmul.mubr.bf16.gmra.mxu0 %v514
    %v2064 = vpop.f32.mrf.mxu0
    %v2065 = vadd.f32 %v2024, %v2064
    %v2066 = vpop.f32.mrf.mxu0
    %v2067 = vadd.f32 %v2026, %v2066
    %v2068 = vpop.f32.mrf.mxu0
    %v2069 = vpop.f32.mrf.mxu0
    %2070 = vdwg.mxu0
    %2071 = vmatprep.subr.bf16.mxu0 %v1648
    %2072 = vmatpush1.bf16.msra.mxu0 %v1647
    %2073 = vmatprep.subr.bf16.mxu0 %v1642
    %2074 = vmatpush1.bf16.msra.mxu0 %v1641
    %2075 = vmatprep.subr.bf16.mxu0 %v1636
    %2076 = vmatpush1.bf16.msra.mxu0 %v1635
    %2077 = vmatprep.subr.bf16.mxu0 %v1630
    %2078 = vmatpush1.bf16.msra.mxu0 %v1629
    %2079 = vmatprep.subr.bf16.mxu0 %v1624
    %2080 = vmatpush1.bf16.msra.mxu0 %v1623
    %2081 = vmatprep.subr.bf16.mxu0 %v1618
    %2082 = vmatpush1.bf16.msra.mxu0 %v1617
    %2083 = vmatprep.subr.bf16.mxu0 %v1612
    %2084 = vmatpush1.bf16.msra.mxu0 %v1611
    %2085 = vmatprep.subr.bf16.mxu0 %v1606
    %2086 = vmatpush1.bf16.msra.mxu0 %v1605
    %2087 = vmatprep.subr.bf16.mxu0 %v1696
    %2088 = vmatpush2.bf16.msra.mxu0 %v1695
    %2089 = vmatprep.subr.bf16.mxu0 %v1690
    %2090 = vmatpush2.bf16.msra.mxu0 %v1689
    %2091 = vmatprep.subr.bf16.mxu0 %v1684
    %2092 = vmatpush2.bf16.msra.mxu0 %v1683
    %2093 = vmatprep.subr.bf16.mxu0 %v1678
    %2094 = vmatpush2.bf16.msra.mxu0 %v1677
    %2095 = vmatprep.subr.bf16.mxu0 %v1672
    %2096 = vmatpush2.bf16.msra.mxu0 %v1671
    %2097 = vmatprep.subr.bf16.mxu0 %v1666
    %2098 = vmatpush2.bf16.msra.mxu0 %v1665
    %2099 = vmatprep.subr.bf16.mxu0 %v1660
    %2100 = vmatpush2.bf16.msra.mxu0 %v1659
    %2101 = vmatprep.subr.bf16.mxu0 %v1654
    %2102 = vmatpush2.bf16.msra.mxu0 %v1653
    %2103 = vmatprep.mubr.bf16.mxu0 %v517
    %2104 = vmatmul.mubr.bf16.gmra.mxu0 %v516
    %v2105 = vpop.f32.mrf.mxu0
    %v2106 = vadd.f32 %v2065, %v2105
    %v2107 = vpop.f32.mrf.mxu0
    %v2108 = vadd.f32 %v2067, %v2107
    %v2109 = vpop.f32.mrf.mxu0
    %v2110 = vpop.f32.mrf.mxu0
    %2111 = vdwg.mxu0
    %2112 = vmatprep.subr.bf16.mxu0 %v1458
    %2113 = vmatpush1.bf16.msra.mxu0 %v1457
    %2114 = vmatprep.subr.bf16.mxu0 %v1452
    %2115 = vmatpush1.bf16.msra.mxu0 %v1451
    %2116 = vmatprep.subr.bf16.mxu0 %v1446
    %2117 = vmatpush1.bf16.msra.mxu0 %v1445
    %2118 = vmatprep.subr.bf16.mxu0 %v1440
    %2119 = vmatpush1.bf16.msra.mxu0 %v1439
    %2120 = vmatprep.subr.bf16.mxu0 %v1434
    %2121 = vmatpush1.bf16.msra.mxu0 %v1433
    %2122 = vmatprep.subr.bf16.mxu0 %v1428
    %2123 = vmatpush1.bf16.msra.mxu0 %v1427
    %2124 = vmatprep.subr.bf16.mxu0 %v1422
    %2125 = vmatpush1.bf16.msra.mxu0 %v1421
    %2126 = vmatprep.subr.bf16.mxu0 %v1416
    %2127 = vmatpush1.bf16.msra.mxu0 %v1415
    %2128 = vmatprep.subr.bf16.mxu0 %v1506
    %2129 = vmatpush2.bf16.msra.mxu0 %v1505
    %2130 = vmatprep.subr.bf16.mxu0 %v1500
    %2131 = vmatpush2.bf16.msra.mxu0 %v1499
    %2132 = vmatprep.subr.bf16.mxu0 %v1494
    %2133 = vmatpush2.bf16.msra.mxu0 %v1493
    %2134 = vmatprep.subr.bf16.mxu0 %v1488
    %2135 = vmatpush2.bf16.msra.mxu0 %v1487
    %2136 = vmatprep.subr.bf16.mxu0 %v1482
    %2137 = vmatpush2.bf16.msra.mxu0 %v1481
    %2138 = vmatprep.subr.bf16.mxu0 %v1476
    %2139 = vmatpush2.bf16.msra.mxu0 %v1475
    %2140 = vmatprep.subr.bf16.mxu0 %v1470
    %2141 = vmatpush2.bf16.msra.mxu0 %v1469
    %2142 = vmatprep.subr.bf16.mxu0 %v1464
    %2143 = vmatpush2.bf16.msra.mxu0 %v1463
    %2144 = vmatprep.mubr.bf16.mxu0 %v513
    %2145 = vmatmul.mubr.bf16.gmra.mxu0 %v512
    %v2146 = vpop.f32.mrf.mxu0
    %v2147 = vadd.f32 %v530, %v2146
    %v2148 = vpop.f32.mrf.mxu0
    %v2149 = vadd.f32 %v534, %v2148
    %v2150 = vpop.f32.mrf.mxu0
    %v2151 = vpop.f32.mrf.mxu0
    %2152 = vdwg.mxu0
    %2153 = vmatprep.subr.bf16.mxu0 %v1554
    %2154 = vmatpush1.bf16.msra.mxu0 %v1553
    %2155 = vmatprep.subr.bf16.mxu0 %v1548
    %2156 = vmatpush1.bf16.msra.mxu0 %v1547
    %2157 = vmatprep.subr.bf16.mxu0 %v1542
    %2158 = vmatpush1.bf16.msra.mxu0 %v1541
    %2159 = vmatprep.subr.bf16.mxu0 %v1536
    %2160 = vmatpush1.bf16.msra.mxu0 %v1535
    %2161 = vmatprep.subr.bf16.mxu0 %v1530
    %2162 = vmatpush1.bf16.msra.mxu0 %v1529
    %2163 = vmatprep.subr.bf16.mxu0 %v1524
    %2164 = vmatpush1.bf16.msra.mxu0 %v1523
    %2165 = vmatprep.subr.bf16.mxu0 %v1518
    %2166 = vmatpush1.bf16.msra.mxu0 %v1517
    %2167 = vmatprep.subr.bf16.mxu0 %v1512
    %2168 = vmatpush1.bf16.msra.mxu0 %v1511
    %2169 = vmatprep.subr.bf16.mxu0 %v1602
    %2170 = vmatpush2.bf16.msra.mxu0 %v1601
    %2171 = vmatprep.subr.bf16.mxu0 %v1596
    %2172 = vmatpush2.bf16.msra.mxu0 %v1595
    %2173 = vmatprep.subr.bf16.mxu0 %v1590
    %2174 = vmatpush2.bf16.msra.mxu0 %v1589
    %2175 = vmatprep.subr.bf16.mxu0 %v1584
    %2176 = vmatpush2.bf16.msra.mxu0 %v1583
    %2177 = vmatprep.subr.bf16.mxu0 %v1578
    %2178 = vmatpush2.bf16.msra.mxu0 %v1577
    %2179 = vmatprep.subr.bf16.mxu0 %v1572
    %2180 = vmatpush2.bf16.msra.mxu0 %v1571
    %2181 = vmatprep.subr.bf16.mxu0 %v1566
    %2182 = vmatpush2.bf16.msra.mxu0 %v1565
    %2183 = vmatprep.subr.bf16.mxu0 %v1560
    %2184 = vmatpush2.bf16.msra.mxu0 %v1559
    %2185 = vmatprep.mubr.bf16.mxu0 %v515
    %2186 = vmatmul.mubr.bf16.gmra.mxu0 %v514
    %v2187 = vpop.f32.mrf.mxu0
    %v2188 = vadd.f32 %v2147, %v2187
    %v2189 = vpop.f32.mrf.mxu0
    %v2190 = vadd.f32 %v2149, %v2189
    %v2191 = vpop.f32.mrf.mxu0
    %v2192 = vpop.f32.mrf.mxu0
    %2193 = vdwg.mxu0
    %2194 = vmatprep.subr.bf16.mxu0 %v1650
    %2195 = vmatpush1.bf16.msra.mxu0 %v1649
    %2196 = vmatprep.subr.bf16.mxu0 %v1644
    %2197 = vmatpush1.bf16.msra.mxu0 %v1643
    %2198 = vmatprep.subr.bf16.mxu0 %v1638
    %2199 = vmatpush1.bf16.msra.mxu0 %v1637
    %2200 = vmatprep.subr.bf16.mxu0 %v1632
    %2201 = vmatpush1.bf16.msra.mxu0 %v1631
    %2202 = vmatprep.subr.bf16.mxu0 %v1626
    %2203 = vmatpush1.bf16.msra.mxu0 %v1625
    %2204 = vmatprep.subr.bf16.mxu0 %v1620
    %2205 = vmatpush1.bf16.msra.mxu0 %v1619
    %2206 = vmatprep.subr.bf16.mxu0 %v1614
    %2207 = vmatpush1.bf16.msra.mxu0 %v1613
    %2208 = vmatprep.subr.bf16.mxu0 %v1608
    %2209 = vmatpush1.bf16.msra.mxu0 %v1607
    %2210 = vmatprep.subr.bf16.mxu0 %v1698
    %2211 = vmatpush2.bf16.msra.mxu0 %v1697
    %2212 = vmatprep.subr.bf16.mxu0 %v1692
    %2213 = vmatpush2.bf16.msra.mxu0 %v1691
    %2214 = vmatprep.subr.bf16.mxu0 %v1686
    %2215 = vmatpush2.bf16.msra.mxu0 %v1685
    %2216 = vmatprep.subr.bf16.mxu0 %v1680
    %2217 = vmatpush2.bf16.msra.mxu0 %v1679
    %2218 = vmatprep.subr.bf16.mxu0 %v1674
    %2219 = vmatpush2.bf16.msra.mxu0 %v1673
    %2220 = vmatprep.subr.bf16.mxu0 %v1668
    %2221 = vmatpush2.bf16.msra.mxu0 %v1667
    %2222 = vmatprep.subr.bf16.mxu0 %v1662
    %2223 = vmatpush2.bf16.msra.mxu0 %v1661
    %2224 = vmatprep.subr.bf16.mxu0 %v1656
    %2225 = vmatpush2.bf16.msra.mxu0 %v1655
    %2226 = vmatprep.mubr.bf16.mxu0 %v517
    %2227 = vmatmul.mubr.bf16.gmra.mxu0 %v516
    %v2228 = vpop.f32.mrf.mxu0
    %v2229 = vadd.f32 %v2188, %v2228
    %v2230 = vpop.f32.mrf.mxu0
    %v2231 = vadd.f32 %v2190, %v2230
    %v2232 = vpop.f32.mrf.mxu0
    %v2233 = vpop.f32.mrf.mxu0
    %2234 = vdwg.mxu0
    %2235 = vmatprep.subr.bf16.mxu0 %v1460
    %2236 = vmatpush1.bf16.msra.mxu0 %v1459
    %2237 = vmatprep.subr.bf16.mxu0 %v1454
    %2238 = vmatpush1.bf16.msra.mxu0 %v1453
    %2239 = vmatprep.subr.bf16.mxu0 %v1448
    %2240 = vmatpush1.bf16.msra.mxu0 %v1447
    %2241 = vmatprep.subr.bf16.mxu0 %v1442
    %2242 = vmatpush1.bf16.msra.mxu0 %v1441
    %2243 = vmatprep.subr.bf16.mxu0 %v1436
    %2244 = vmatpush1.bf16.msra.mxu0 %v1435
    %2245 = vmatprep.subr.bf16.mxu0 %v1430
    %2246 = vmatpush1.bf16.msra.mxu0 %v1429
    %2247 = vmatprep.subr.bf16.mxu0 %v1424
    %2248 = vmatpush1.bf16.msra.mxu0 %v1423
    %2249 = vmatprep.subr.bf16.mxu0 %v1418
    %2250 = vmatpush1.bf16.msra.mxu0 %v1417
    %2251 = vmatprep.subr.bf16.mxu0 %v1508
    %2252 = vmatpush2.bf16.msra.mxu0 %v1507
    %2253 = vmatprep.subr.bf16.mxu0 %v1502
    %2254 = vmatpush2.bf16.msra.mxu0 %v1501
    %2255 = vmatprep.subr.bf16.mxu0 %v1496
    %2256 = vmatpush2.bf16.msra.mxu0 %v1495
    %2257 = vmatprep.subr.bf16.mxu0 %v1490
    %2258 = vmatpush2.bf16.msra.mxu0 %v1489
    %2259 = vmatprep.subr.bf16.mxu0 %v1484
    %2260 = vmatpush2.bf16.msra.mxu0 %v1483
    %2261 = vmatprep.subr.bf16.mxu0 %v1478
    %2262 = vmatpush2.bf16.msra.mxu0 %v1477
    %2263 = vmatprep.subr.bf16.mxu0 %v1472
    %2264 = vmatpush2.bf16.msra.mxu0 %v1471
    %2265 = vmatprep.subr.bf16.mxu0 %v1466
    %2266 = vmatpush2.bf16.msra.mxu0 %v1465
    %2267 = vmatprep.mubr.bf16.mxu0 %v513
    %2268 = vmatmul.mubr.bf16.gmra.mxu0 %v512
    %v2269 = vpop.f32.mrf.mxu0
    %v2270 = vadd.f32 %v538, %v2269
    %v2271 = vpop.f32.mrf.mxu0
    %v2272 = vadd.f32 %v542, %v2271
    %v2273 = vpop.f32.mrf.mxu0
    %v2274 = vpop.f32.mrf.mxu0
    %2275 = vdwg.mxu0
    %2276 = vmatprep.subr.bf16.mxu0 %v1556
    %2277 = vmatpush1.bf16.msra.mxu0 %v1555
    %2278 = vmatprep.subr.bf16.mxu0 %v1550
    %2279 = vmatpush1.bf16.msra.mxu0 %v1549
    %2280 = vmatprep.subr.bf16.mxu0 %v1544
    %2281 = vmatpush1.bf16.msra.mxu0 %v1543
    %2282 = vmatprep.subr.bf16.mxu0 %v1538
    %2283 = vmatpush1.bf16.msra.mxu0 %v1537
    %2284 = vmatprep.subr.bf16.mxu0 %v1532
    %2285 = vmatpush1.bf16.msra.mxu0 %v1531
    %2286 = vmatprep.subr.bf16.mxu0 %v1526
    %2287 = vmatpush1.bf16.msra.mxu0 %v1525
    %2288 = vmatprep.subr.bf16.mxu0 %v1520
    %2289 = vmatpush1.bf16.msra.mxu0 %v1519
    %2290 = vmatprep.subr.bf16.mxu0 %v1514
    %2291 = vmatpush1.bf16.msra.mxu0 %v1513
    %2292 = vmatprep.subr.bf16.mxu0 %v1604
    %2293 = vmatpush2.bf16.msra.mxu0 %v1603
    %2294 = vmatprep.subr.bf16.mxu0 %v1598
    %2295 = vmatpush2.bf16.msra.mxu0 %v1597
    %2296 = vmatprep.subr.bf16.mxu0 %v1592
    %2297 = vmatpush2.bf16.msra.mxu0 %v1591
    %2298 = vmatprep.subr.bf16.mxu0 %v1586
    %2299 = vmatpush2.bf16.msra.mxu0 %v1585
    %2300 = vmatprep.subr.bf16.mxu0 %v1580
    %2301 = vmatpush2.bf16.msra.mxu0 %v1579
    %2302 = vmatprep.subr.bf16.mxu0 %v1574
    %2303 = vmatpush2.bf16.msra.mxu0 %v1573
    %2304 = vmatprep.subr.bf16.mxu0 %v1568
    %2305 = vmatpush2.bf16.msra.mxu0 %v1567
    %2306 = vmatprep.subr.bf16.mxu0 %v1562
    %2307 = vmatpush2.bf16.msra.mxu0 %v1561
    %2308 = vmatprep.mubr.bf16.mxu0 %v515
    %2309 = vmatmul.mubr.bf16.gmra.mxu0 %v514
    %v2310 = vpop.f32.mrf.mxu0
    %v2311 = vadd.f32 %v2270, %v2310
    %v2312 = vpop.f32.mrf.mxu0
    %v2313 = vadd.f32 %v2272, %v2312
    %v2314 = vpop.f32.mrf.mxu0
    %v2315 = vpop.f32.mrf.mxu0
    %2316 = vdwg.mxu0
    %2317 = vmatprep.subr.bf16.mxu0 %v1652
    %2318 = vmatpush1.bf16.msra.mxu0 %v1651
    %2319 = vmatprep.subr.bf16.mxu0 %v1646
    %2320 = vmatpush1.bf16.msra.mxu0 %v1645
    %2321 = vmatprep.subr.bf16.mxu0 %v1640
    %2322 = vmatpush1.bf16.msra.mxu0 %v1639
    %2323 = vmatprep.subr.bf16.mxu0 %v1634
    %2324 = vmatpush1.bf16.msra.mxu0 %v1633
    %2325 = vmatprep.subr.bf16.mxu0 %v1628
    %2326 = vmatpush1.bf16.msra.mxu0 %v1627
    %2327 = vmatprep.subr.bf16.mxu0 %v1622
    %2328 = vmatpush1.bf16.msra.mxu0 %v1621
    %2329 = vmatprep.subr.bf16.mxu0 %v1616
    %2330 = vmatpush1.bf16.msra.mxu0 %v1615
    %2331 = vmatprep.subr.bf16.mxu0 %v1610
    %2332 = vmatpush1.bf16.msra.mxu0 %v1609
    %2333 = vmatprep.subr.bf16.mxu0 %v1700
    %2334 = vmatpush2.bf16.msra.mxu0 %v1699
    %2335 = vmatprep.subr.bf16.mxu0 %v1694
    %2336 = vmatpush2.bf16.msra.mxu0 %v1693
    %2337 = vmatprep.subr.bf16.mxu0 %v1688
    %2338 = vmatpush2.bf16.msra.mxu0 %v1687
    %2339 = vmatprep.subr.bf16.mxu0 %v1682
    %2340 = vmatpush2.bf16.msra.mxu0 %v1681
    %2341 = vmatprep.subr.bf16.mxu0 %v1676
    %2342 = vmatpush2.bf16.msra.mxu0 %v1675
    %2343 = vmatprep.subr.bf16.mxu0 %v1670
    %2344 = vmatpush2.bf16.msra.mxu0 %v1669
    %2345 = vmatprep.subr.bf16.mxu0 %v1664
    %2346 = vmatpush2.bf16.msra.mxu0 %v1663
    %2347 = vmatprep.subr.bf16.mxu0 %v1658
    %2348 = vmatpush2.bf16.msra.mxu0 %v1657
    %2349 = vmatprep.mubr.bf16.mxu0 %v517
    %2350 = vmatmul.mubr.bf16.gmra.mxu0 %v516
    %v2351 = vpop.f32.mrf.mxu0
    %v2352 = vadd.f32 %v2311, %v2351
    %v2353 = vpop.f32.mrf.mxu0
    %v2354 = vadd.f32 %v2313, %v2353
    %v2355 = vpop.f32.mrf.mxu0
    %v2356 = vpop.f32.mrf.mxu0
    %2357 = vdwg.mxu0
    %v2358 = vtanh.pop %v2106
    %v2359 = vtanh.pop %v2108
    %v2360 = vtanh.pop %v2229
    %v2361 = vtanh.pop %v2231
    %v2362 = vtanh.pop %v2352
    %v2363 = vtanh.pop %v2354
    %v2364 = vpack.c.bf16 %v2358, %v2358
    %v2365 = vpack.c.bf16 %v2359, %v2359
    %v2366 = vpack.c.bf16 %v2360, %v2360
    %v2367 = vpack.c.bf16 %v2361, %v2361
    %v2368 = vpack.c.bf16 %v2362, %v2362
    %v2369 = vpack.c.bf16 %v2363, %v2363
    %v2371 = vlaneseq
    %v2372 = vshrl.u32 %v2371, 7
    %v2373 = vsub.s32 0, %v2372
    %v2374 = vrot.slane %v499, %v2373
    %v2375 = vlaneseq
    %v2376 = vshrl.u32 %v2375, 7
    %v2377 = vsub.s32 1, %v2376
    %v2378 = vrot.slane %v499, %v2377
    %v2477 = vunpack.c.l.b16 %v403
    %v2478 = vunpack.c.h.b16 %v403
    %v2479 = vunpack.c.l.b16 %v404
    %v2480 = vunpack.c.h.b16 %v404
    %v2481 = vunpack.c.l.b16 %v405
    %v2482 = vunpack.c.h.b16 %v405
    %v2483 = vunpack.c.l.b16 %v406
    %v2484 = vunpack.c.h.b16 %v406
    %v2485 = vunpack.c.l.b16 %v407
    %v2486 = vunpack.c.h.b16 %v407
    %v2487 = vunpack.c.l.b16 %v408
    %v2488 = vunpack.c.h.b16 %v408
    %v2489 = vunpack.c.l.b16 %v409
    %v2490 = vunpack.c.h.b16 %v409
    %v2491 = vunpack.c.l.b16 %v410
    %v2492 = vunpack.c.h.b16 %v410
    %v2493 = vunpack.c.l.b16 %v411
    %v2494 = vunpack.c.h.b16 %v411
    %v2495 = vunpack.c.l.b16 %v412
    %v2496 = vunpack.c.h.b16 %v412
    %v2497 = vunpack.c.l.b16 %v413
    %v2498 = vunpack.c.h.b16 %v413
    %v2499 = vunpack.c.l.b16 %v414
    %v2500 = vunpack.c.h.b16 %v414
    %v2501 = vunpack.c.l.b16 %v415
    %v2502 = vunpack.c.h.b16 %v415
    %v2503 = vunpack.c.l.b16 %v416
    %v2504 = vunpack.c.h.b16 %v416
    %v2505 = vunpack.c.l.b16 %v417
    %v2506 = vunpack.c.h.b16 %v417
    %v2507 = vunpack.c.l.b16 %v418
    %v2508 = vunpack.c.h.b16 %v418
    %v2509 = vunpack.c.l.b16 %v419
    %v2510 = vunpack.c.h.b16 %v419
    %v2511 = vunpack.c.l.b16 %v420
    %v2512 = vunpack.c.h.b16 %v420
    %v2513 = vunpack.c.l.b16 %v421
    %v2514 = vunpack.c.h.b16 %v421
    %v2515 = vunpack.c.l.b16 %v422
    %v2516 = vunpack.c.h.b16 %v422
    %v2517 = vunpack.c.l.b16 %v423
    %v2518 = vunpack.c.h.b16 %v423
    %v2519 = vunpack.c.l.b16 %v424
    %v2520 = vunpack.c.h.b16 %v424
    %v2521 = vunpack.c.l.b16 %v425
    %v2522 = vunpack.c.h.b16 %v425
    %v2523 = vunpack.c.l.b16 %v426
    %v2524 = vunpack.c.h.b16 %v426
    %v2525 = vunpack.c.l.b16 %v427
    %v2526 = vunpack.c.h.b16 %v427
    %v2527 = vunpack.c.l.b16 %v428
    %v2528 = vunpack.c.h.b16 %v428
    %v2529 = vunpack.c.l.b16 %v429
    %v2530 = vunpack.c.h.b16 %v429
    %v2531 = vunpack.c.l.b16 %v430
    %v2532 = vunpack.c.h.b16 %v430
    %v2533 = vunpack.c.l.b16 %v431
    %v2534 = vunpack.c.h.b16 %v431
    %v2535 = vunpack.c.l.b16 %v432
    %v2536 = vunpack.c.h.b16 %v432
    %v2537 = vunpack.c.l.b16 %v433
    %v2538 = vunpack.c.h.b16 %v433
    %v2539 = vunpack.c.l.b16 %v434
    %v2540 = vunpack.c.h.b16 %v434
    %v2541 = vunpack.c.l.b16 %v435
    %v2542 = vunpack.c.h.b16 %v435
    %v2543 = vunpack.c.l.b16 %v436
    %v2544 = vunpack.c.h.b16 %v436
    %v2545 = vunpack.c.l.b16 %v437
    %v2546 = vunpack.c.h.b16 %v437
    %v2547 = vunpack.c.l.b16 %v438
    %v2548 = vunpack.c.h.b16 %v438
    %v2549 = vunpack.c.l.b16 %v439
    %v2550 = vunpack.c.h.b16 %v439
    %v2551 = vunpack.c.l.b16 %v440
    %v2552 = vunpack.c.h.b16 %v440
    %v2553 = vunpack.c.l.b16 %v441
    %v2554 = vunpack.c.h.b16 %v441
    %v2555 = vunpack.c.l.b16 %v442
    %v2556 = vunpack.c.h.b16 %v442
    %v2557 = vunpack.c.l.b16 %v443
    %v2558 = vunpack.c.h.b16 %v443
    %v2559 = vunpack.c.l.b16 %v444
    %v2560 = vunpack.c.h.b16 %v444
    %v2561 = vunpack.c.l.b16 %v445
    %v2562 = vunpack.c.h.b16 %v445
    %v2563 = vunpack.c.l.b16 %v446
    %v2564 = vunpack.c.h.b16 %v446
    %v2565 = vunpack.c.l.b16 %v447
    %v2566 = vunpack.c.h.b16 %v447
    %v2567 = vunpack.c.l.b16 %v448
    %v2568 = vunpack.c.h.b16 %v448
    %v2569 = vunpack.c.l.b16 %v449
    %v2570 = vunpack.c.h.b16 %v449
    %v2571 = vunpack.c.l.b16 %v450
    %v2572 = vunpack.c.h.b16 %v450
    %v2573 = vunpack.c.l.b16 %v451
    %v2574 = vunpack.c.h.b16 %v451
    %v2575 = vunpack.c.l.b16 %v452
    %v2576 = vunpack.c.h.b16 %v452
    %v2577 = vunpack.c.l.b16 %v453
    %v2578 = vunpack.c.h.b16 %v453
    %v2579 = vunpack.c.l.b16 %v454
    %v2580 = vunpack.c.h.b16 %v454
    %v2581 = vunpack.c.l.b16 %v455
    %v2582 = vunpack.c.h.b16 %v455
    %v2583 = vunpack.c.l.b16 %v456
    %v2584 = vunpack.c.h.b16 %v456
    %v2585 = vunpack.c.l.b16 %v457
    %v2586 = vunpack.c.h.b16 %v457
    %v2587 = vunpack.c.l.b16 %v458
    %v2588 = vunpack.c.h.b16 %v458
    %v2589 = vunpack.c.l.b16 %v459
    %v2590 = vunpack.c.h.b16 %v459
    %v2591 = vunpack.c.l.b16 %v460
    %v2592 = vunpack.c.h.b16 %v460
    %v2593 = vunpack.c.l.b16 %v461
    %v2594 = vunpack.c.h.b16 %v461
    %v2595 = vunpack.c.l.b16 %v462
    %v2596 = vunpack.c.h.b16 %v462
    %v2597 = vunpack.c.l.b16 %v463
    %v2598 = vunpack.c.h.b16 %v463
    %v2599 = vunpack.c.l.b16 %v464
    %v2600 = vunpack.c.h.b16 %v464
    %v2601 = vunpack.c.l.b16 %v465
    %v2602 = vunpack.c.h.b16 %v465
    %v2603 = vunpack.c.l.b16 %v466
    %v2604 = vunpack.c.h.b16 %v466
    %v2605 = vunpack.c.l.b16 %v467
    %v2606 = vunpack.c.h.b16 %v467
    %v2607 = vunpack.c.l.b16 %v468
    %v2608 = vunpack.c.h.b16 %v468
    %v2609 = vunpack.c.l.b16 %v469
    %v2610 = vunpack.c.h.b16 %v469
    %v2611 = vunpack.c.l.b16 %v470
    %v2612 = vunpack.c.h.b16 %v470
    %v2613 = vunpack.c.l.b16 %v471
    %v2614 = vunpack.c.h.b16 %v471
    %v2615 = vunpack.c.l.b16 %v472
    %v2616 = vunpack.c.h.b16 %v472
    %v2617 = vunpack.c.l.b16 %v473
    %v2618 = vunpack.c.h.b16 %v473
    %v2619 = vunpack.c.l.b16 %v474
    %v2620 = vunpack.c.h.b16 %v474
    %v2621 = vunpack.c.l.b16 %v475
    %v2622 = vunpack.c.h.b16 %v475
    %v2623 = vunpack.c.l.b16 %v476
    %v2624 = vunpack.c.h.b16 %v476
    %v2625 = vunpack.c.l.b16 %v477
    %v2626 = vunpack.c.h.b16 %v477
    %v2627 = vunpack.c.l.b16 %v478
    %v2628 = vunpack.c.h.b16 %v478
    %v2629 = vunpack.c.l.b16 %v479
    %v2630 = vunpack.c.h.b16 %v479
    %v2631 = vunpack.c.l.b16 %v480
    %v2632 = vunpack.c.h.b16 %v480
    %v2633 = vunpack.c.l.b16 %v481
    %v2634 = vunpack.c.h.b16 %v481
    %v2635 = vunpack.c.l.b16 %v482
    %v2636 = vunpack.c.h.b16 %v482
    %v2637 = vunpack.c.l.b16 %v483
    %v2638 = vunpack.c.h.b16 %v483
    %v2639 = vunpack.c.l.b16 %v484
    %v2640 = vunpack.c.h.b16 %v484
    %v2641 = vunpack.c.l.b16 %v485
    %v2642 = vunpack.c.h.b16 %v485
    %v2643 = vunpack.c.l.b16 %v486
    %v2644 = vunpack.c.h.b16 %v486
    %v2645 = vunpack.c.l.b16 %v487
    %v2646 = vunpack.c.h.b16 %v487
    %v2647 = vunpack.c.l.b16 %v488
    %v2648 = vunpack.c.h.b16 %v488
    %v2649 = vunpack.c.l.b16 %v489
    %v2650 = vunpack.c.h.b16 %v489
    %v2651 = vunpack.c.l.b16 %v490
    %v2652 = vunpack.c.h.b16 %v490
    %v2653 = vunpack.c.l.b16 %v491
    %v2654 = vunpack.c.h.b16 %v491
    %v2655 = vunpack.c.l.b16 %v492
    %v2656 = vunpack.c.h.b16 %v492
    %v2657 = vunpack.c.l.b16 %v493
    %v2658 = vunpack.c.h.b16 %v493
    %v2659 = vunpack.c.l.b16 %v494
    %v2660 = vunpack.c.h.b16 %v494
    %v2661 = vunpack.c.l.b16 %v495
    %v2662 = vunpack.c.h.b16 %v495
    %v2663 = vunpack.c.l.b16 %v496
    %v2664 = vunpack.c.h.b16 %v496
    %v2665 = vunpack.c.l.b16 %v497
    %v2666 = vunpack.c.h.b16 %v497
    %v2667 = vunpack.c.l.b16 %v498
    %v2668 = vunpack.c.h.b16 %v498
    %v2669 = vpack.c.b16 %v2479, %v2477
    %v2670 = vpack.c.b16 %v2480, %v2478
    %v2671 = vpack.c.b16 %v2483, %v2481
    %v2672 = vpack.c.b16 %v2484, %v2482
    %v2673 = vpack.c.b16 %v2487, %v2485
    %v2674 = vpack.c.b16 %v2488, %v2486
    %v2675 = vpack.c.b16 %v2491, %v2489
    %v2676 = vpack.c.b16 %v2492, %v2490
    %v2677 = vpack.c.b16 %v2495, %v2493
    %v2678 = vpack.c.b16 %v2496, %v2494
    %v2679 = vpack.c.b16 %v2499, %v2497
    %v2680 = vpack.c.b16 %v2500, %v2498
    %v2681 = vpack.c.b16 %v2503, %v2501
    %v2682 = vpack.c.b16 %v2504, %v2502
    %v2683 = vpack.c.b16 %v2507, %v2505
    %v2684 = vpack.c.b16 %v2508, %v2506
    %v2685 = vpack.c.b16 %v2511, %v2509
    %v2686 = vpack.c.b16 %v2512, %v2510
    %v2687 = vpack.c.b16 %v2515, %v2513
    %v2688 = vpack.c.b16 %v2516, %v2514
    %v2689 = vpack.c.b16 %v2519, %v2517
    %v2690 = vpack.c.b16 %v2520, %v2518
    %v2691 = vpack.c.b16 %v2523, %v2521
    %v2692 = vpack.c.b16 %v2524, %v2522
    %v2693 = vpack.c.b16 %v2527, %v2525
    %v2694 = vpack.c.b16 %v2528, %v2526
    %v2695 = vpack.c.b16 %v2531, %v2529
    %v2696 = vpack.c.b16 %v2532, %v2530
    %v2697 = vpack.c.b16 %v2535, %v2533
    %v2698 = vpack.c.b16 %v2536, %v2534
    %v2699 = vpack.c.b16 %v2539, %v2537
    %v2700 = vpack.c.b16 %v2540, %v2538
    %v2701 = vpack.c.b16 %v2543, %v2541
    %v2702 = vpack.c.b16 %v2544, %v2542
    %v2703 = vpack.c.b16 %v2547, %v2545
    %v2704 = vpack.c.b16 %v2548, %v2546
    %v2705 = vpack.c.b16 %v2551, %v2549
    %v2706 = vpack.c.b16 %v2552, %v2550
    %v2707 = vpack.c.b16 %v2555, %v2553
    %v2708 = vpack.c.b16 %v2556, %v2554
    %v2709 = vpack.c.b16 %v2559, %v2557
    %v2710 = vpack.c.b16 %v2560, %v2558
    %v2711 = vpack.c.b16 %v2563, %v2561
    %v2712 = vpack.c.b16 %v2564, %v2562
    %v2713 = vpack.c.b16 %v2567, %v2565
    %v2714 = vpack.c.b16 %v2568, %v2566
    %v2715 = vpack.c.b16 %v2571, %v2569
    %v2716 = vpack.c.b16 %v2572, %v2570
    %v2717 = vpack.c.b16 %v2575, %v2573
    %v2718 = vpack.c.b16 %v2576, %v2574
    %v2719 = vpack.c.b16 %v2579, %v2577
    %v2720 = vpack.c.b16 %v2580, %v2578
    %v2721 = vpack.c.b16 %v2583, %v2581
    %v2722 = vpack.c.b16 %v2584, %v2582
    %v2723 = vpack.c.b16 %v2587, %v2585
    %v2724 = vpack.c.b16 %v2588, %v2586
    %v2725 = vpack.c.b16 %v2591, %v2589
    %v2726 = vpack.c.b16 %v2592, %v2590
    %v2727 = vpack.c.b16 %v2595, %v2593
    %v2728 = vpack.c.b16 %v2596, %v2594
    %v2729 = vpack.c.b16 %v2599, %v2597
    %v2730 = vpack.c.b16 %v2600, %v2598
    %v2731 = vpack.c.b16 %v2603, %v2601
    %v2732 = vpack.c.b16 %v2604, %v2602
    %v2733 = vpack.c.b16 %v2607, %v2605
    %v2734 = vpack.c.b16 %v2608, %v2606
    %v2735 = vpack.c.b16 %v2611, %v2609
    %v2736 = vpack.c.b16 %v2612, %v2610
    %v2737 = vpack.c.b16 %v2615, %v2613
    %v2738 = vpack.c.b16 %v2616, %v2614
    %v2739 = vpack.c.b16 %v2619, %v2617
    %v2740 = vpack.c.b16 %v2620, %v2618
    %v2741 = vpack.c.b16 %v2623, %v2621
    %v2742 = vpack.c.b16 %v2624, %v2622
    %v2743 = vpack.c.b16 %v2627, %v2625
    %v2744 = vpack.c.b16 %v2628, %v2626
    %v2745 = vpack.c.b16 %v2631, %v2629
    %v2746 = vpack.c.b16 %v2632, %v2630
    %v2747 = vpack.c.b16 %v2635, %v2633
    %v2748 = vpack.c.b16 %v2636, %v2634
    %v2749 = vpack.c.b16 %v2639, %v2637
    %v2750 = vpack.c.b16 %v2640, %v2638
    %v2751 = vpack.c.b16 %v2643, %v2641
    %v2752 = vpack.c.b16 %v2644, %v2642
    %v2753 = vpack.c.b16 %v2647, %v2645
    %v2754 = vpack.c.b16 %v2648, %v2646
    %v2755 = vpack.c.b16 %v2651, %v2649
    %v2756 = vpack.c.b16 %v2652, %v2650
    %v2757 = vpack.c.b16 %v2655, %v2653
    %v2758 = vpack.c.b16 %v2656, %v2654
    %v2759 = vpack.c.b16 %v2659, %v2657
    %v2760 = vpack.c.b16 %v2660, %v2658
    %v2761 = vpack.c.b16 %v2663, %v2661
    %v2762 = vpack.c.b16 %v2664, %v2662
    %v2763 = vpack.c.b16 %v2667, %v2665
    %v2764 = vpack.c.b16 %v2668, %v2666
    %2861 = vmatprep.subr.bf16.mxu0 %v2684
    %2862 = vmatpush1.bf16.msra.mxu0 %v2683
    %2863 = vmatprep.subr.bf16.mxu0 %v2682
    %2864 = vmatpush1.bf16.msra.mxu0 %v2681
    %2865 = vmatprep.subr.bf16.mxu0 %v2680
    %2866 = vmatpush1.bf16.msra.mxu0 %v2679
    %2867 = vmatprep.subr.bf16.mxu0 %v2678
    %2868 = vmatpush1.bf16.msra.mxu0 %v2677
    %2869 = vmatprep.subr.bf16.mxu0 %v2676
    %2870 = vmatpush1.bf16.msra.mxu0 %v2675
    %2871 = vmatprep.subr.bf16.mxu0 %v2674
    %2872 = vmatpush1.bf16.msra.mxu0 %v2673
    %2873 = vmatprep.subr.bf16.mxu0 %v2672
    %2874 = vmatpush1.bf16.msra.mxu0 %v2671
    %2875 = vmatprep.subr.bf16.mxu0 %v2670
    %2876 = vmatpush1.bf16.msra.mxu0 %v2669
    %2877 = vmatprep.subr.bf16.mxu0 %v2700
    %2878 = vmatpush2.bf16.msra.mxu0 %v2699
    %2879 = vmatprep.subr.bf16.mxu0 %v2698
    %2880 = vmatpush2.bf16.msra.mxu0 %v2697
    %2881 = vmatprep.subr.bf16.mxu0 %v2696
    %2882 = vmatpush2.bf16.msra.mxu0 %v2695
    %2883 = vmatprep.subr.bf16.mxu0 %v2694
    %2884 = vmatpush2.bf16.msra.mxu0 %v2693
    %2885 = vmatprep.subr.bf16.mxu0 %v2692
    %2886 = vmatpush2.bf16.msra.mxu0 %v2691
    %2887 = vmatprep.subr.bf16.mxu0 %v2690
    %2888 = vmatpush2.bf16.msra.mxu0 %v2689
    %2889 = vmatprep.subr.bf16.mxu0 %v2688
    %2890 = vmatpush2.bf16.msra.mxu0 %v2687
    %2891 = vmatprep.subr.bf16.mxu0 %v2686
    %2892 = vmatpush2.bf16.msra.mxu0 %v2685
    %2893 = vmatprep.mubr.bf16.mxu0 %v2365
    %2894 = vmatmul.mubr.bf16.gmra.mxu0 %v2364
    %v2895 = vpop.f32.mrf.mxu0
    %v2896 = vadd.f32 %v2374, %v2895
    %v2897 = vpop.f32.mrf.mxu0
    %v2898 = vadd.f32 %v2378, %v2897
    %v2899 = vpop.f32.mrf.mxu0
    %v2900 = vpop.f32.mrf.mxu0
    %2901 = vdwg.mxu0
    %2902 = vmatprep.subr.bf16.mxu0 %v2716
    %2903 = vmatpush1.bf16.msra.mxu0 %v2715
    %2904 = vmatprep.subr.bf16.mxu0 %v2714
    %2905 = vmatpush1.bf16.msra.mxu0 %v2713
    %2906 = vmatprep.subr.bf16.mxu0 %v2712
    %2907 = vmatpush1.bf16.msra.mxu0 %v2711
    %2908 = vmatprep.subr.bf16.mxu0 %v2710
    %2909 = vmatpush1.bf16.msra.mxu0 %v2709
    %2910 = vmatprep.subr.bf16.mxu0 %v2708
    %2911 = vmatpush1.bf16.msra.mxu0 %v2707
    %2912 = vmatprep.subr.bf16.mxu0 %v2706
    %2913 = vmatpush1.bf16.msra.mxu0 %v2705
    %2914 = vmatprep.subr.bf16.mxu0 %v2704
    %2915 = vmatpush1.bf16.msra.mxu0 %v2703
    %2916 = vmatprep.subr.bf16.mxu0 %v2702
    %2917 = vmatpush1.bf16.msra.mxu0 %v2701
    %2918 = vmatprep.subr.bf16.mxu0 %v2732
    %2919 = vmatpush2.bf16.msra.mxu0 %v2731
    %2920 = vmatprep.subr.bf16.mxu0 %v2730
    %2921 = vmatpush2.bf16.msra.mxu0 %v2729
    %2922 = vmatprep.subr.bf16.mxu0 %v2728
    %2923 = vmatpush2.bf16.msra.mxu0 %v2727
    %2924 = vmatprep.subr.bf16.mxu0 %v2726
    %2925 = vmatpush2.bf16.msra.mxu0 %v2725
    %2926 = vmatprep.subr.bf16.mxu0 %v2724
    %2927 = vmatpush2.bf16.msra.mxu0 %v2723
    %2928 = vmatprep.subr.bf16.mxu0 %v2722
    %2929 = vmatpush2.bf16.msra.mxu0 %v2721
    %2930 = vmatprep.subr.bf16.mxu0 %v2720
    %2931 = vmatpush2.bf16.msra.mxu0 %v2719
    %2932 = vmatprep.subr.bf16.mxu0 %v2718
    %2933 = vmatpush2.bf16.msra.mxu0 %v2717
    %2934 = vmatprep.mubr.bf16.mxu0 %v2367
    %2935 = vmatmul.mubr.bf16.gmra.mxu0 %v2366
    %v2936 = vpop.f32.mrf.mxu0
    %v2937 = vadd.f32 %v2896, %v2936
    %v2938 = vpop.f32.mrf.mxu0
    %v2939 = vadd.f32 %v2898, %v2938
    %v2940 = vpop.f32.mrf.mxu0
    %v2941 = vpop.f32.mrf.mxu0
    %2942 = vdwg.mxu0
    %2943 = vmatprep.subr.bf16.mxu0 %v2748
    %2944 = vmatpush1.bf16.msra.mxu0 %v2747
    %2945 = vmatprep.subr.bf16.mxu0 %v2746
    %2946 = vmatpush1.bf16.msra.mxu0 %v2745
    %2947 = vmatprep.subr.bf16.mxu0 %v2744
    %2948 = vmatpush1.bf16.msra.mxu0 %v2743
    %2949 = vmatprep.subr.bf16.mxu0 %v2742
    %2950 = vmatpush1.bf16.msra.mxu0 %v2741
    %2951 = vmatprep.subr.bf16.mxu0 %v2740
    %2952 = vmatpush1.bf16.msra.mxu0 %v2739
    %2953 = vmatprep.subr.bf16.mxu0 %v2738
    %2954 = vmatpush1.bf16.msra.mxu0 %v2737
    %2955 = vmatprep.subr.bf16.mxu0 %v2736
    %2956 = vmatpush1.bf16.msra.mxu0 %v2735
    %2957 = vmatprep.subr.bf16.mxu0 %v2734
    %2958 = vmatpush1.bf16.msra.mxu0 %v2733
    %2959 = vmatprep.subr.bf16.mxu0 %v2764
    %2960 = vmatpush2.bf16.msra.mxu0 %v2763
    %2961 = vmatprep.subr.bf16.mxu0 %v2762
    %2962 = vmatpush2.bf16.msra.mxu0 %v2761
    %2963 = vmatprep.subr.bf16.mxu0 %v2760
    %2964 = vmatpush2.bf16.msra.mxu0 %v2759
    %2965 = vmatprep.subr.bf16.mxu0 %v2758
    %2966 = vmatpush2.bf16.msra.mxu0 %v2757
    %2967 = vmatprep.subr.bf16.mxu0 %v2756
    %2968 = vmatpush2.bf16.msra.mxu0 %v2755
    %2969 = vmatprep.subr.bf16.mxu0 %v2754
    %2970 = vmatpush2.bf16.msra.mxu0 %v2753
    %2971 = vmatprep.subr.bf16.mxu0 %v2752
    %2972 = vmatpush2.bf16.msra.mxu0 %v2751
    %2973 = vmatprep.subr.bf16.mxu0 %v2750
    %2974 = vmatpush2.bf16.msra.mxu0 %v2749
    %2975 = vmatprep.mubr.bf16.mxu0 %v2369
    %2976 = vmatmul.mubr.bf16.gmra.mxu0 %v2368
    %v2977 = vpop.f32.mrf.mxu0
    %v2978 = vadd.f32 %v2937, %v2977
    %v2979 = vpop.f32.mrf.mxu0
    %v2980 = vadd.f32 %v2939, %v2979
    %v2981 = vpop.f32.mrf.mxu0
    %v2982 = vpop.f32.mrf.mxu0
    %2983 = vdwg.mxu0
    %v2984 = vmul.f32 %v2978, %v2978
    %v2985 = vmul.f32 %v2980, %v2980
    %vm2986 = vcmask 1043456
    %v2987 = vsel %vm2986, %v2984, 0.0
    %v2988 = vsel %vm2986, %v2985, 0.0
    %v2989 = vadd.f32 %v2987, %v2988
    %2990 = vadd.xlane.f32.xlu0 %v2989
    %v2991 = vpop.xlane.xlu0 %2990
    %v2992 = vmax.f32 %v2991, 1e-24
    %v2993 = vrsqrt.pop %v2992
    %v2994 = vmul.f32 %v2978, %v2993
    %v2995 = vmul.f32 %v2980, %v2993
    %v2996 = vld [vmem:[#allocation7] sm:$0xff]
    %v2997 = vld [vmem:[#allocation7 + $0x8] sm:$0xff]
    %v2998 = vld [vmem:[#allocation7 + $0x10] sm:$0xff]
    %v3002 = vcombine.high %v2996, %v2996
    %v3003 = vcombine.high %v2997, %v2997
    %v3004 = vcombine.high %v2998, %v2998
    %v3008 = vpack.c.bf16 %v2996, %v2996
    %v3009 = vpack.c.bf16 %v3002, %v3002
    %v3010 = vpack.c.bf16 %v2997, %v2997
    %v3011 = vpack.c.bf16 %v3003, %v3003
    %v3012 = vpack.c.bf16 %v2998, %v2998
    %v3013 = vpack.c.bf16 %v3004, %v3004
    %3014 = vmatprep.subr.bf16.mxu0 %v1456
    %3015 = vmatpush1.bf16.msra.mxu0 %v1455
    %3016 = vmatprep.subr.bf16.mxu0 %v1450
    %3017 = vmatpush1.bf16.msra.mxu0 %v1449
    %3018 = vmatprep.subr.bf16.mxu0 %v1444
    %3019 = vmatpush1.bf16.msra.mxu0 %v1443
    %3020 = vmatprep.subr.bf16.mxu0 %v1438
    %3021 = vmatpush1.bf16.msra.mxu0 %v1437
    %3022 = vmatprep.subr.bf16.mxu0 %v1432
    %3023 = vmatpush1.bf16.msra.mxu0 %v1431
    %3024 = vmatprep.subr.bf16.mxu0 %v1426
    %3025 = vmatpush1.bf16.msra.mxu0 %v1425
    %3026 = vmatprep.subr.bf16.mxu0 %v1420
    %3027 = vmatpush1.bf16.msra.mxu0 %v1419
    %3028 = vmatprep.subr.bf16.mxu0 %v1414
    %3029 = vmatpush1.bf16.msra.mxu0 %v1413
    %3030 = vmatprep.subr.bf16.mxu0 %v1504
    %3031 = vmatpush2.bf16.msra.mxu0 %v1503
    %3032 = vmatprep.subr.bf16.mxu0 %v1498
    %3033 = vmatpush2.bf16.msra.mxu0 %v1497
    %3034 = vmatprep.subr.bf16.mxu0 %v1492
    %3035 = vmatpush2.bf16.msra.mxu0 %v1491
    %3036 = vmatprep.subr.bf16.mxu0 %v1486
    %3037 = vmatpush2.bf16.msra.mxu0 %v1485
    %3038 = vmatprep.subr.bf16.mxu0 %v1480
    %3039 = vmatpush2.bf16.msra.mxu0 %v1479
    %3040 = vmatprep.subr.bf16.mxu0 %v1474
    %3041 = vmatpush2.bf16.msra.mxu0 %v1473
    %3042 = vmatprep.subr.bf16.mxu0 %v1468
    %3043 = vmatpush2.bf16.msra.mxu0 %v1467
    %3044 = vmatprep.subr.bf16.mxu0 %v1462
    %3045 = vmatpush2.bf16.msra.mxu0 %v1461
    %3046 = vmatprep.mubr.bf16.mxu0 %v3009
    %3047 = vmatmul.mubr.bf16.gmra.mxu0 %v3008
    %v3048 = vpop.f32.mrf.mxu0
    %v3049 = vadd.f32 %v522, %v3048
    %v3050 = vpop.f32.mrf.mxu0
    %v3051 = vadd.f32 %v526, %v3050
    %v3052 = vpop.f32.mrf.mxu0
    %v3053 = vpop.f32.mrf.mxu0
    %3054 = vdwg.mxu0
    %3055 = vmatprep.subr.bf16.mxu0 %v1552
    %3056 = vmatpush1.bf16.msra.mxu0 %v1551
    %3057 = vmatprep.subr.bf16.mxu0 %v1546
    %3058 = vmatpush1.bf16.msra.mxu0 %v1545
    %3059 = vmatprep.subr.bf16.mxu0 %v1540
    %3060 = vmatpush1.bf16.msra.mxu0 %v1539
    %3061 = vmatprep.subr.bf16.mxu0 %v1534
    %3062 = vmatpush1.bf16.msra.mxu0 %v1533
    %3063 = vmatprep.subr.bf16.mxu0 %v1528
    %3064 = vmatpush1.bf16.msra.mxu0 %v1527
    %3065 = vmatprep.subr.bf16.mxu0 %v1522
    %3066 = vmatpush1.bf16.msra.mxu0 %v1521
    %3067 = vmatprep.subr.bf16.mxu0 %v1516
    %3068 = vmatpush1.bf16.msra.mxu0 %v1515
    %3069 = vmatprep.subr.bf16.mxu0 %v1510
    %3070 = vmatpush1.bf16.msra.mxu0 %v1509
    %3071 = vmatprep.subr.bf16.mxu0 %v1600
    %3072 = vmatpush2.bf16.msra.mxu0 %v1599
    %3073 = vmatprep.subr.bf16.mxu0 %v1594
    %3074 = vmatpush2.bf16.msra.mxu0 %v1593
    %3075 = vmatprep.subr.bf16.mxu0 %v1588
    %3076 = vmatpush2.bf16.msra.mxu0 %v1587
    %3077 = vmatprep.subr.bf16.mxu0 %v1582
    %3078 = vmatpush2.bf16.msra.mxu0 %v1581
    %3079 = vmatprep.subr.bf16.mxu0 %v1576
    %3080 = vmatpush2.bf16.msra.mxu0 %v1575
    %3081 = vmatprep.subr.bf16.mxu0 %v1570
    %3082 = vmatpush2.bf16.msra.mxu0 %v1569
    %3083 = vmatprep.subr.bf16.mxu0 %v1564
    %3084 = vmatpush2.bf16.msra.mxu0 %v1563
    %3085 = vmatprep.subr.bf16.mxu0 %v1558
    %3086 = vmatpush2.bf16.msra.mxu0 %v1557
    %3087 = vmatprep.mubr.bf16.mxu0 %v3011
    %3088 = vmatmul.mubr.bf16.gmra.mxu0 %v3010
    %v3089 = vpop.f32.mrf.mxu0
    %v3090 = vadd.f32 %v3049, %v3089
    %v3091 = vpop.f32.mrf.mxu0
    %v3092 = vadd.f32 %v3051, %v3091
    %v3093 = vpop.f32.mrf.mxu0
    %v3094 = vpop.f32.mrf.mxu0
    %3095 = vdwg.mxu0
    %3096 = vmatprep.subr.bf16.mxu0 %v1648
    %3097 = vmatpush1.bf16.msra.mxu0 %v1647
    %3098 = vmatprep.subr.bf16.mxu0 %v1642
    %3099 = vmatpush1.bf16.msra.mxu0 %v1641
    %3100 = vmatprep.subr.bf16.mxu0 %v1636
    %3101 = vmatpush1.bf16.msra.mxu0 %v1635
    %3102 = vmatprep.subr.bf16.mxu0 %v1630
    %3103 = vmatpush1.bf16.msra.mxu0 %v1629
    %3104 = vmatprep.subr.bf16.mxu0 %v1624
    %3105 = vmatpush1.bf16.msra.mxu0 %v1623
    %3106 = vmatprep.subr.bf16.mxu0 %v1618
    %3107 = vmatpush1.bf16.msra.mxu0 %v1617
    %3108 = vmatprep.subr.bf16.mxu0 %v1612
    %3109 = vmatpush1.bf16.msra.mxu0 %v1611
    %3110 = vmatprep.subr.bf16.mxu0 %v1606
    %3111 = vmatpush1.bf16.msra.mxu0 %v1605
    %3112 = vmatprep.subr.bf16.mxu0 %v1696
    %3113 = vmatpush2.bf16.msra.mxu0 %v1695
    %3114 = vmatprep.subr.bf16.mxu0 %v1690
    %3115 = vmatpush2.bf16.msra.mxu0 %v1689
    %3116 = vmatprep.subr.bf16.mxu0 %v1684
    %3117 = vmatpush2.bf16.msra.mxu0 %v1683
    %3118 = vmatprep.subr.bf16.mxu0 %v1678
    %3119 = vmatpush2.bf16.msra.mxu0 %v1677
    %3120 = vmatprep.subr.bf16.mxu0 %v1672
    %3121 = vmatpush2.bf16.msra.mxu0 %v1671
    %3122 = vmatprep.subr.bf16.mxu0 %v1666
    %3123 = vmatpush2.bf16.msra.mxu0 %v1665
    %3124 = vmatprep.subr.bf16.mxu0 %v1660
    %3125 = vmatpush2.bf16.msra.mxu0 %v1659
    %3126 = vmatprep.subr.bf16.mxu0 %v1654
    %3127 = vmatpush2.bf16.msra.mxu0 %v1653
    %3128 = vmatprep.mubr.bf16.mxu0 %v3013
    %3129 = vmatmul.mubr.bf16.gmra.mxu0 %v3012
    %v3130 = vpop.f32.mrf.mxu0
    %v3131 = vadd.f32 %v3090, %v3130
    %v3132 = vpop.f32.mrf.mxu0
    %v3133 = vadd.f32 %v3092, %v3132
    %v3134 = vpop.f32.mrf.mxu0
    %v3135 = vpop.f32.mrf.mxu0
    %3136 = vdwg.mxu0
    %3137 = vmatprep.subr.bf16.mxu0 %v1458
    %3138 = vmatpush1.bf16.msra.mxu0 %v1457
    %3139 = vmatprep.subr.bf16.mxu0 %v1452
    %3140 = vmatpush1.bf16.msra.mxu0 %v1451
    %3141 = vmatprep.subr.bf16.mxu0 %v1446
    %3142 = vmatpush1.bf16.msra.mxu0 %v1445
    %3143 = vmatprep.subr.bf16.mxu0 %v1440
    %3144 = vmatpush1.bf16.msra.mxu0 %v1439
    %3145 = vmatprep.subr.bf16.mxu0 %v1434
    %3146 = vmatpush1.bf16.msra.mxu0 %v1433
    %3147 = vmatprep.subr.bf16.mxu0 %v1428
    %3148 = vmatpush1.bf16.msra.mxu0 %v1427
    %3149 = vmatprep.subr.bf16.mxu0 %v1422
    %3150 = vmatpush1.bf16.msra.mxu0 %v1421
    %3151 = vmatprep.subr.bf16.mxu0 %v1416
    %3152 = vmatpush1.bf16.msra.mxu0 %v1415
    %3153 = vmatprep.subr.bf16.mxu0 %v1506
    %3154 = vmatpush2.bf16.msra.mxu0 %v1505
    %3155 = vmatprep.subr.bf16.mxu0 %v1500
    %3156 = vmatpush2.bf16.msra.mxu0 %v1499
    %3157 = vmatprep.subr.bf16.mxu0 %v1494
    %3158 = vmatpush2.bf16.msra.mxu0 %v1493
    %3159 = vmatprep.subr.bf16.mxu0 %v1488
    %3160 = vmatpush2.bf16.msra.mxu0 %v1487
    %3161 = vmatprep.subr.bf16.mxu0 %v1482
    %3162 = vmatpush2.bf16.msra.mxu0 %v1481
    %3163 = vmatprep.subr.bf16.mxu0 %v1476
    %3164 = vmatpush2.bf16.msra.mxu0 %v1475
    %3165 = vmatprep.subr.bf16.mxu0 %v1470
    %3166 = vmatpush2.bf16.msra.mxu0 %v1469
    %3167 = vmatprep.subr.bf16.mxu0 %v1464
    %3168 = vmatpush2.bf16.msra.mxu0 %v1463
    %3169 = vmatprep.mubr.bf16.mxu0 %v3009
    %3170 = vmatmul.mubr.bf16.gmra.mxu0 %v3008
    %v3171 = vpop.f32.mrf.mxu0
    %v3172 = vadd.f32 %v530, %v3171
    %v3173 = vpop.f32.mrf.mxu0
    %v3174 = vadd.f32 %v534, %v3173
    %v3175 = vpop.f32.mrf.mxu0
    %v3176 = vpop.f32.mrf.mxu0
    %3177 = vdwg.mxu0
    %3178 = vmatprep.subr.bf16.mxu0 %v1554
    %3179 = vmatpush1.bf16.msra.mxu0 %v1553
    %3180 = vmatprep.subr.bf16.mxu0 %v1548
    %3181 = vmatpush1.bf16.msra.mxu0 %v1547
    %3182 = vmatprep.subr.bf16.mxu0 %v1542
    %3183 = vmatpush1.bf16.msra.mxu0 %v1541
    %3184 = vmatprep.subr.bf16.mxu0 %v1536
    %3185 = vmatpush1.bf16.msra.mxu0 %v1535
    %3186 = vmatprep.subr.bf16.mxu0 %v1530
    %3187 = vmatpush1.bf16.msra.mxu0 %v1529
    %3188 = vmatprep.subr.bf16.mxu0 %v1524
    %3189 = vmatpush1.bf16.msra.mxu0 %v1523
    %3190 = vmatprep.subr.bf16.mxu0 %v1518
    %3191 = vmatpush1.bf16.msra.mxu0 %v1517
    %3192 = vmatprep.subr.bf16.mxu0 %v1512
    %3193 = vmatpush1.bf16.msra.mxu0 %v1511
    %3194 = vmatprep.subr.bf16.mxu0 %v1602
    %3195 = vmatpush2.bf16.msra.mxu0 %v1601
    %3196 = vmatprep.subr.bf16.mxu0 %v1596
    %3197 = vmatpush2.bf16.msra.mxu0 %v1595
    %3198 = vmatprep.subr.bf16.mxu0 %v1590
    %3199 = vmatpush2.bf16.msra.mxu0 %v1589
    %3200 = vmatprep.subr.bf16.mxu0 %v1584
    %3201 = vmatpush2.bf16.msra.mxu0 %v1583
    %3202 = vmatprep.subr.bf16.mxu0 %v1578
    %3203 = vmatpush2.bf16.msra.mxu0 %v1577
    %3204 = vmatprep.subr.bf16.mxu0 %v1572
    %3205 = vmatpush2.bf16.msra.mxu0 %v1571
    %3206 = vmatprep.subr.bf16.mxu0 %v1566
    %3207 = vmatpush2.bf16.msra.mxu0 %v1565
    %3208 = vmatprep.subr.bf16.mxu0 %v1560
    %3209 = vmatpush2.bf16.msra.mxu0 %v1559
    %3210 = vmatprep.mubr.bf16.mxu0 %v3011
    %3211 = vmatmul.mubr.bf16.gmra.mxu0 %v3010
    %v3212 = vpop.f32.mrf.mxu0
    %v3213 = vadd.f32 %v3172, %v3212
    %v3214 = vpop.f32.mrf.mxu0
    %v3215 = vadd.f32 %v3174, %v3214
    %v3216 = vpop.f32.mrf.mxu0
    %v3217 = vpop.f32.mrf.mxu0
    %3218 = vdwg.mxu0
    %3219 = vmatprep.subr.bf16.mxu0 %v1650
    %3220 = vmatpush1.bf16.msra.mxu0 %v1649
    %3221 = vmatprep.subr.bf16.mxu0 %v1644
    %3222 = vmatpush1.bf16.msra.mxu0 %v1643
    %3223 = vmatprep.subr.bf16.mxu0 %v1638
    %3224 = vmatpush1.bf16.msra.mxu0 %v1637
    %3225 = vmatprep.subr.bf16.mxu0 %v1632
    %3226 = vmatpush1.bf16.msra.mxu0 %v1631
    %3227 = vmatprep.subr.bf16.mxu0 %v1626
    %3228 = vmatpush1.bf16.msra.mxu0 %v1625
    %3229 = vmatprep.subr.bf16.mxu0 %v1620
    %3230 = vmatpush1.bf16.msra.mxu0 %v1619
    %3231 = vmatprep.subr.bf16.mxu0 %v1614
    %3232 = vmatpush1.bf16.msra.mxu0 %v1613
    %3233 = vmatprep.subr.bf16.mxu0 %v1608
    %3234 = vmatpush1.bf16.msra.mxu0 %v1607
    %3235 = vmatprep.subr.bf16.mxu0 %v1698
    %3236 = vmatpush2.bf16.msra.mxu0 %v1697
    %3237 = vmatprep.subr.bf16.mxu0 %v1692
    %3238 = vmatpush2.bf16.msra.mxu0 %v1691
    %3239 = vmatprep.subr.bf16.mxu0 %v1686
    %3240 = vmatpush2.bf16.msra.mxu0 %v1685
    %3241 = vmatprep.subr.bf16.mxu0 %v1680
    %3242 = vmatpush2.bf16.msra.mxu0 %v1679
    %3243 = vmatprep.subr.bf16.mxu0 %v1674
    %3244 = vmatpush2.bf16.msra.mxu0 %v1673
    %3245 = vmatprep.subr.bf16.mxu0 %v1668
    %3246 = vmatpush2.bf16.msra.mxu0 %v1667
    %3247 = vmatprep.subr.bf16.mxu0 %v1662
    %3248 = vmatpush2.bf16.msra.mxu0 %v1661
    %3249 = vmatprep.subr.bf16.mxu0 %v1656
    %3250 = vmatpush2.bf16.msra.mxu0 %v1655
    %3251 = vmatprep.mubr.bf16.mxu0 %v3013
    %3252 = vmatmul.mubr.bf16.gmra.mxu0 %v3012
    %v3253 = vpop.f32.mrf.mxu0
    %v3254 = vadd.f32 %v3213, %v3253
    %v3255 = vpop.f32.mrf.mxu0
    %v3256 = vadd.f32 %v3215, %v3255
    %v3257 = vpop.f32.mrf.mxu0
    %v3258 = vpop.f32.mrf.mxu0
    %3259 = vdwg.mxu0
    %3260 = vmatprep.subr.bf16.mxu0 %v1460
    %3261 = vmatpush1.bf16.msra.mxu0 %v1459
    %3262 = vmatprep.subr.bf16.mxu0 %v1454
    %3263 = vmatpush1.bf16.msra.mxu0 %v1453
    %3264 = vmatprep.subr.bf16.mxu0 %v1448
    %3265 = vmatpush1.bf16.msra.mxu0 %v1447
    %3266 = vmatprep.subr.bf16.mxu0 %v1442
    %3267 = vmatpush1.bf16.msra.mxu0 %v1441
    %3268 = vmatprep.subr.bf16.mxu0 %v1436
    %3269 = vmatpush1.bf16.msra.mxu0 %v1435
    %3270 = vmatprep.subr.bf16.mxu0 %v1430
    %3271 = vmatpush1.bf16.msra.mxu0 %v1429
    %3272 = vmatprep.subr.bf16.mxu0 %v1424
    %3273 = vmatpush1.bf16.msra.mxu0 %v1423
    %3274 = vmatprep.subr.bf16.mxu0 %v1418
    %3275 = vmatpush1.bf16.msra.mxu0 %v1417
    %3276 = vmatprep.subr.bf16.mxu0 %v1508
    %3277 = vmatpush2.bf16.msra.mxu0 %v1507
    %3278 = vmatprep.subr.bf16.mxu0 %v1502
    %3279 = vmatpush2.bf16.msra.mxu0 %v1501
    %3280 = vmatprep.subr.bf16.mxu0 %v1496
    %3281 = vmatpush2.bf16.msra.mxu0 %v1495
    %3282 = vmatprep.subr.bf16.mxu0 %v1490
    %3283 = vmatpush2.bf16.msra.mxu0 %v1489
    %3284 = vmatprep.subr.bf16.mxu0 %v1484
    %3285 = vmatpush2.bf16.msra.mxu0 %v1483
    %3286 = vmatprep.subr.bf16.mxu0 %v1478
    %3287 = vmatpush2.bf16.msra.mxu0 %v1477
    %3288 = vmatprep.subr.bf16.mxu0 %v1472
    %3289 = vmatpush2.bf16.msra.mxu0 %v1471
    %3290 = vmatprep.subr.bf16.mxu0 %v1466
    %3291 = vmatpush2.bf16.msra.mxu0 %v1465
    %3292 = vmatprep.mubr.bf16.mxu0 %v3009
    %3293 = vmatmul.mubr.bf16.gmra.mxu0 %v3008
    %v3294 = vpop.f32.mrf.mxu0
    %v3295 = vadd.f32 %v538, %v3294
    %v3296 = vpop.f32.mrf.mxu0
    %v3297 = vadd.f32 %v542, %v3296
    %v3298 = vpop.f32.mrf.mxu0
    %v3299 = vpop.f32.mrf.mxu0
    %3300 = vdwg.mxu0
    %3301 = vmatprep.subr.bf16.mxu0 %v1556
    %3302 = vmatpush1.bf16.msra.mxu0 %v1555
    %3303 = vmatprep.subr.bf16.mxu0 %v1550
    %3304 = vmatpush1.bf16.msra.mxu0 %v1549
    %3305 = vmatprep.subr.bf16.mxu0 %v1544
    %3306 = vmatpush1.bf16.msra.mxu0 %v1543
    %3307 = vmatprep.subr.bf16.mxu0 %v1538
    %3308 = vmatpush1.bf16.msra.mxu0 %v1537
    %3309 = vmatprep.subr.bf16.mxu0 %v1532
    %3310 = vmatpush1.bf16.msra.mxu0 %v1531
    %3311 = vmatprep.subr.bf16.mxu0 %v1526
    %3312 = vmatpush1.bf16.msra.mxu0 %v1525
    %3313 = vmatprep.subr.bf16.mxu0 %v1520
    %3314 = vmatpush1.bf16.msra.mxu0 %v1519
    %3315 = vmatprep.subr.bf16.mxu0 %v1514
    %3316 = vmatpush1.bf16.msra.mxu0 %v1513
    %3317 = vmatprep.subr.bf16.mxu0 %v1604
    %3318 = vmatpush2.bf16.msra.mxu0 %v1603
    %3319 = vmatprep.subr.bf16.mxu0 %v1598
    %3320 = vmatpush2.bf16.msra.mxu0 %v1597
    %3321 = vmatprep.subr.bf16.mxu0 %v1592
    %3322 = vmatpush2.bf16.msra.mxu0 %v1591
    %3323 = vmatprep.subr.bf16.mxu0 %v1586
    %3324 = vmatpush2.bf16.msra.mxu0 %v1585
    %3325 = vmatprep.subr.bf16.mxu0 %v1580
    %3326 = vmatpush2.bf16.msra.mxu0 %v1579
    %3327 = vmatprep.subr.bf16.mxu0 %v1574
    %3328 = vmatpush2.bf16.msra.mxu0 %v1573
    %3329 = vmatprep.subr.bf16.mxu0 %v1568
    %3330 = vmatpush2.bf16.msra.mxu0 %v1567
    %3331 = vmatprep.subr.bf16.mxu0 %v1562
    %3332 = vmatpush2.bf16.msra.mxu0 %v1561
    %3333 = vmatprep.mubr.bf16.mxu0 %v3011
    %3334 = vmatmul.mubr.bf16.gmra.mxu0 %v3010
    %v3335 = vpop.f32.mrf.mxu0
    %v3336 = vadd.f32 %v3295, %v3335
    %v3337 = vpop.f32.mrf.mxu0
    %v3338 = vadd.f32 %v3297, %v3337
    %v3339 = vpop.f32.mrf.mxu0
    %v3340 = vpop.f32.mrf.mxu0
    %3341 = vdwg.mxu0
    %3342 = vmatprep.subr.bf16.mxu0 %v1652
    %3343 = vmatpush1.bf16.msra.mxu0 %v1651
    %3344 = vmatprep.subr.bf16.mxu0 %v1646
    %3345 = vmatpush1.bf16.msra.mxu0 %v1645
    %3346 = vmatprep.subr.bf16.mxu0 %v1640
    %3347 = vmatpush1.bf16.msra.mxu0 %v1639
    %3348 = vmatprep.subr.bf16.mxu0 %v1634
    %3349 = vmatpush1.bf16.msra.mxu0 %v1633
    %3350 = vmatprep.subr.bf16.mxu0 %v1628
    %3351 = vmatpush1.bf16.msra.mxu0 %v1627
    %3352 = vmatprep.subr.bf16.mxu0 %v1622
    %3353 = vmatpush1.bf16.msra.mxu0 %v1621
    %3354 = vmatprep.subr.bf16.mxu0 %v1616
    %3355 = vmatpush1.bf16.msra.mxu0 %v1615
    %3356 = vmatprep.subr.bf16.mxu0 %v1610
    %3357 = vmatpush1.bf16.msra.mxu0 %v1609
    %3358 = vmatprep.subr.bf16.mxu0 %v1700
    %3359 = vmatpush2.bf16.msra.mxu0 %v1699
    %3360 = vmatprep.subr.bf16.mxu0 %v1694
    %3361 = vmatpush2.bf16.msra.mxu0 %v1693
    %3362 = vmatprep.subr.bf16.mxu0 %v1688
    %3363 = vmatpush2.bf16.msra.mxu0 %v1687
    %3364 = vmatprep.subr.bf16.mxu0 %v1682
    %3365 = vmatpush2.bf16.msra.mxu0 %v1681
    %3366 = vmatprep.subr.bf16.mxu0 %v1676
    %3367 = vmatpush2.bf16.msra.mxu0 %v1675
    %3368 = vmatprep.subr.bf16.mxu0 %v1670
    %3369 = vmatpush2.bf16.msra.mxu0 %v1669
    %3370 = vmatprep.subr.bf16.mxu0 %v1664
    %3371 = vmatpush2.bf16.msra.mxu0 %v1663
    %3372 = vmatprep.subr.bf16.mxu0 %v1658
    %3373 = vmatpush2.bf16.msra.mxu0 %v1657
    %3374 = vmatprep.mubr.bf16.mxu0 %v3013
    %3375 = vmatmul.mubr.bf16.gmra.mxu0 %v3012
    %v3376 = vpop.f32.mrf.mxu0
    %v3377 = vadd.f32 %v3336, %v3376
    %v3378 = vpop.f32.mrf.mxu0
    %v3379 = vadd.f32 %v3338, %v3378
    %v3380 = vpop.f32.mrf.mxu0
    %v3381 = vpop.f32.mrf.mxu0
    %3382 = vdwg.mxu0
    %v3383 = vtanh.pop %v3131
    %v3384 = vtanh.pop %v3133
    %v3385 = vtanh.pop %v3254
    %v3386 = vtanh.pop %v3256
    %v3387 = vtanh.pop %v3377
    %v3388 = vtanh.pop %v3379
    %v3389 = vpack.c.bf16 %v3383, %v3383
    %v3390 = vpack.c.bf16 %v3384, %v3384
    %v3391 = vpack.c.bf16 %v3385, %v3385
    %v3392 = vpack.c.bf16 %v3386, %v3386
    %v3393 = vpack.c.bf16 %v3387, %v3387
    %v3394 = vpack.c.bf16 %v3388, %v3388
    %3395 = vmatprep.subr.bf16.mxu0 %v2684
    %3396 = vmatpush1.bf16.msra.mxu0 %v2683
    %3397 = vmatprep.subr.bf16.mxu0 %v2682
    %3398 = vmatpush1.bf16.msra.mxu0 %v2681
    %3399 = vmatprep.subr.bf16.mxu0 %v2680
    %3400 = vmatpush1.bf16.msra.mxu0 %v2679
    %3401 = vmatprep.subr.bf16.mxu0 %v2678
    %3402 = vmatpush1.bf16.msra.mxu0 %v2677
    %3403 = vmatprep.subr.bf16.mxu0 %v2676
    %3404 = vmatpush1.bf16.msra.mxu0 %v2675
    %3405 = vmatprep.subr.bf16.mxu0 %v2674
    %3406 = vmatpush1.bf16.msra.mxu0 %v2673
    %3407 = vmatprep.subr.bf16.mxu0 %v2672
    %3408 = vmatpush1.bf16.msra.mxu0 %v2671
    %3409 = vmatprep.subr.bf16.mxu0 %v2670
    %3410 = vmatpush1.bf16.msra.mxu0 %v2669
    %3411 = vmatprep.subr.bf16.mxu0 %v2700
    %3412 = vmatpush2.bf16.msra.mxu0 %v2699
    %3413 = vmatprep.subr.bf16.mxu0 %v2698
    %3414 = vmatpush2.bf16.msra.mxu0 %v2697
    %3415 = vmatprep.subr.bf16.mxu0 %v2696
    %3416 = vmatpush2.bf16.msra.mxu0 %v2695
    %3417 = vmatprep.subr.bf16.mxu0 %v2694
    %3418 = vmatpush2.bf16.msra.mxu0 %v2693
    %3419 = vmatprep.subr.bf16.mxu0 %v2692
    %3420 = vmatpush2.bf16.msra.mxu0 %v2691
    %3421 = vmatprep.subr.bf16.mxu0 %v2690
    %3422 = vmatpush2.bf16.msra.mxu0 %v2689
    %3423 = vmatprep.subr.bf16.mxu0 %v2688
    %3424 = vmatpush2.bf16.msra.mxu0 %v2687
    %3425 = vmatprep.subr.bf16.mxu0 %v2686
    %3426 = vmatpush2.bf16.msra.mxu0 %v2685
    %3427 = vmatprep.mubr.bf16.mxu0 %v3390
    %3428 = vmatmul.mubr.bf16.gmra.mxu0 %v3389
    %v3429 = vpop.f32.mrf.mxu0
    %v3430 = vadd.f32 %v2374, %v3429
    %v3431 = vpop.f32.mrf.mxu0
    %v3432 = vadd.f32 %v2378, %v3431
    %v3433 = vpop.f32.mrf.mxu0
    %v3434 = vpop.f32.mrf.mxu0
    %3435 = vdwg.mxu0
    %3436 = vmatprep.subr.bf16.mxu0 %v2716
    %3437 = vmatpush1.bf16.msra.mxu0 %v2715
    %3438 = vmatprep.subr.bf16.mxu0 %v2714
    %3439 = vmatpush1.bf16.msra.mxu0 %v2713
    %3440 = vmatprep.subr.bf16.mxu0 %v2712
    %3441 = vmatpush1.bf16.msra.mxu0 %v2711
    %3442 = vmatprep.subr.bf16.mxu0 %v2710
    %3443 = vmatpush1.bf16.msra.mxu0 %v2709
    %3444 = vmatprep.subr.bf16.mxu0 %v2708
    %3445 = vmatpush1.bf16.msra.mxu0 %v2707
    %3446 = vmatprep.subr.bf16.mxu0 %v2706
    %3447 = vmatpush1.bf16.msra.mxu0 %v2705
    %3448 = vmatprep.subr.bf16.mxu0 %v2704
    %3449 = vmatpush1.bf16.msra.mxu0 %v2703
    %3450 = vmatprep.subr.bf16.mxu0 %v2702
    %3451 = vmatpush1.bf16.msra.mxu0 %v2701
    %3452 = vmatprep.subr.bf16.mxu0 %v2732
    %3453 = vmatpush2.bf16.msra.mxu0 %v2731
    %3454 = vmatprep.subr.bf16.mxu0 %v2730
    %3455 = vmatpush2.bf16.msra.mxu0 %v2729
    %3456 = vmatprep.subr.bf16.mxu0 %v2728
    %3457 = vmatpush2.bf16.msra.mxu0 %v2727
    %3458 = vmatprep.subr.bf16.mxu0 %v2726
    %3459 = vmatpush2.bf16.msra.mxu0 %v2725
    %3460 = vmatprep.subr.bf16.mxu0 %v2724
    %3461 = vmatpush2.bf16.msra.mxu0 %v2723
    %3462 = vmatprep.subr.bf16.mxu0 %v2722
    %3463 = vmatpush2.bf16.msra.mxu0 %v2721
    %3464 = vmatprep.subr.bf16.mxu0 %v2720
    %3465 = vmatpush2.bf16.msra.mxu0 %v2719
    %3466 = vmatprep.subr.bf16.mxu0 %v2718
    %3467 = vmatpush2.bf16.msra.mxu0 %v2717
    %3468 = vmatprep.mubr.bf16.mxu0 %v3392
    %3469 = vmatmul.mubr.bf16.gmra.mxu0 %v3391
    %v3470 = vpop.f32.mrf.mxu0
    %v3471 = vadd.f32 %v3430, %v3470
    %v3472 = vpop.f32.mrf.mxu0
    %v3473 = vadd.f32 %v3432, %v3472
    %v3474 = vpop.f32.mrf.mxu0
    %v3475 = vpop.f32.mrf.mxu0
    %3476 = vdwg.mxu0
    %3477 = vmatprep.subr.bf16.mxu0 %v2748
    %3478 = vmatpush1.bf16.msra.mxu0 %v2747
    %3479 = vmatprep.subr.bf16.mxu0 %v2746
    %3480 = vmatpush1.bf16.msra.mxu0 %v2745
    %3481 = vmatprep.subr.bf16.mxu0 %v2744
    %3482 = vmatpush1.bf16.msra.mxu0 %v2743
    %3483 = vmatprep.subr.bf16.mxu0 %v2742
    %3484 = vmatpush1.bf16.msra.mxu0 %v2741
    %3485 = vmatprep.subr.bf16.mxu0 %v2740
    %3486 = vmatpush1.bf16.msra.mxu0 %v2739
    %3487 = vmatprep.subr.bf16.mxu0 %v2738
    %3488 = vmatpush1.bf16.msra.mxu0 %v2737
    %3489 = vmatprep.subr.bf16.mxu0 %v2736
    %3490 = vmatpush1.bf16.msra.mxu0 %v2735
    %3491 = vmatprep.subr.bf16.mxu0 %v2734
    %3492 = vmatpush1.bf16.msra.mxu0 %v2733
    %3493 = vmatprep.subr.bf16.mxu0 %v2764
    %3494 = vmatpush2.bf16.msra.mxu0 %v2763
    %3495 = vmatprep.subr.bf16.mxu0 %v2762
    %3496 = vmatpush2.bf16.msra.mxu0 %v2761
    %3497 = vmatprep.subr.bf16.mxu0 %v2760
    %3498 = vmatpush2.bf16.msra.mxu0 %v2759
    %3499 = vmatprep.subr.bf16.mxu0 %v2758
    %3500 = vmatpush2.bf16.msra.mxu0 %v2757
    %3501 = vmatprep.subr.bf16.mxu0 %v2756
    %3502 = vmatpush2.bf16.msra.mxu0 %v2755
    %3503 = vmatprep.subr.bf16.mxu0 %v2754
    %3504 = vmatpush2.bf16.msra.mxu0 %v2753
    %3505 = vmatprep.subr.bf16.mxu0 %v2752
    %3506 = vmatpush2.bf16.msra.mxu0 %v2751
    %3507 = vmatprep.subr.bf16.mxu0 %v2750
    %3508 = vmatpush2.bf16.msra.mxu0 %v2749
    %3509 = vmatprep.mubr.bf16.mxu0 %v3394
    %3510 = vmatmul.mubr.bf16.gmra.mxu0 %v3393
    %v3511 = vpop.f32.mrf.mxu0
    %v3512 = vadd.f32 %v3471, %v3511
    %v3513 = vpop.f32.mrf.mxu0
    %v3514 = vadd.f32 %v3473, %v3513
    %v3515 = vpop.f32.mrf.mxu0
    %v3516 = vpop.f32.mrf.mxu0
    %3517 = vdwg.mxu0
    %v3518 = vmul.f32 %v3512, %v3512
    %v3519 = vmul.f32 %v3514, %v3514
    %v3520 = vsel %vm2986, %v3518, 0.0
    %v3521 = vsel %vm2986, %v3519, 0.0
    %v3522 = vadd.f32 %v3520, %v3521
    %3523 = vadd.xlane.f32.xlu0 %v3522
    %v3524 = vpop.xlane.xlu0 %3523
    %v3525 = vmax.f32 %v3524, 1e-24
    %v3526 = vrsqrt.pop %v3525
    %v3527 = vmul.f32 %v3512, %v3526
    %v3528 = vmul.f32 %v3514, %v3526
    %3529 = vmatprep.subr.mxu0 0.0
    %3530 = vmatpush1.xpose.msra.mxu0 0.0
    %3531 = vmatprep.subr.mxu0 0.0
    %3532 = vmatpush1.xpose.msra.mxu0 0.0
    %3533 = vmatprep.subr.mxu0 0.0
    %3534 = vmatpush1.xpose.msra.mxu0 0.0
    %3535 = vmatprep.subr.mxu0 0.0
    %3536 = vmatpush1.xpose.msra.mxu0 0.0
    %3537 = vmatprep.subr.mxu0 0.0
    %3538 = vmatpush1.xpose.msra.mxu0 0.0
    %3539 = vmatprep.subr.mxu0 0.0
    %3540 = vmatpush1.xpose.msra.mxu0 0.0
    %3541 = vmatprep.subr.mxu0 0.0
    %3542 = vmatpush1.xpose.msra.mxu0 0.0
    %3543 = vmatprep.subr.mxu0 0.0
    %3544 = vmatpush1.xpose.msra.mxu0 0.0
    %3545 = vmatprep.subr.mxu0 0.0
    %3546 = vmatpush1.xpose.msra.mxu0 0.0
    %3547 = vmatprep.subr.mxu0 0.0
    %3548 = vmatpush1.xpose.msra.mxu0 0.0
    %3549 = vmatprep.subr.mxu0 0.0
    %3550 = vmatpush1.xpose.msra.mxu0 0.0
    %3551 = vmatprep.subr.mxu0 0.0
    %3552 = vmatpush1.xpose.msra.mxu0 0.0
    %3553 = vmatprep.subr.mxu0 0.0
    %3554 = vmatpush1.xpose.msra.mxu0 0.0
    %3555 = vmatprep.subr.mxu0 0.0
    %3556 = vmatpush1.xpose.msra.mxu0 0.0
    %3557 = vmatprep.subr.mxu0 0.0
    %3558 = vmatpush1.xpose.msra.mxu0 0.0
    %3559 = vmatprep.subr.mxu0 %v3528
    %3560 = vmatpush1.xpose.msra.mxu0 %v3527
    %3561 = vmatprep.subr.mxu0 0.0
    %3562 = vmatpush2.xpose.msra.mxu0 0.0
    %3563 = vmatprep.subr.mxu0 0.0
    %3564 = vmatpush2.xpose.msra.mxu0 0.0
    %3565 = vmatprep.subr.mxu0 0.0
    %3566 = vmatpush2.xpose.msra.mxu0 0.0
    %3567 = vmatprep.subr.mxu0 0.0
    %3568 = vmatpush2.xpose.msra.mxu0 0.0
    %3569 = vmatprep.subr.mxu0 0.0
    %3570 = vmatpush2.xpose.msra.mxu0 0.0
    %3571 = vmatprep.subr.mxu0 0.0
    %3572 = vmatpush2.xpose.msra.mxu0 0.0
    %3573 = vmatprep.subr.mxu0 0.0
    %3574 = vmatpush2.xpose.msra.mxu0 0.0
    %3575 = vmatprep.subr.mxu0 0.0
    %3576 = vmatpush2.xpose.msra.mxu0 0.0
    %3577 = vmatprep.subr.mxu0 0.0
    %3578 = vmatpush2.xpose.msra.mxu0 0.0
    %3579 = vmatprep.subr.mxu0 0.0
    %3580 = vmatpush2.xpose.msra.mxu0 0.0
    %3581 = vmatprep.subr.mxu0 0.0
    %3582 = vmatpush2.xpose.msra.mxu0 0.0
    %3583 = vmatprep.subr.mxu0 0.0
    %3584 = vmatpush2.xpose.msra.mxu0 0.0
    %3585 = vmatprep.subr.mxu0 0.0
    %3586 = vmatpush2.xpose.msra.mxu0 0.0
    %3587 = vmatprep.subr.mxu0 0.0
    %3588 = vmatpush2.xpose.msra.mxu0 0.0
    %3589 = vmatprep.subr.mxu0 0.0
    %3590 = vmatpush2.xpose.msra.mxu0 0.0
    %3591 = vmatprep.subr.mxu0 0.0
    %3592 = vmatpush2.xpose.msra.mxu0 0.0
    %3593 = vmatprep.mubr.f32.mxu0 %v2995
    %3594 = vmatmul.mubr.f32.gmra.mxu0 %v2994
    %v3595 = vpop.f32.mrf.mxu0
    %v3596 = vadd.f32 0.0, %v3595
    %v3597 = vpop.f32.mrf.mxu0
    %3598 = vdwg.mxu0
    %v3599 = vlaneseq
    %v3600 = vshrl.u32 %v3599, 7
    %v3601 = vlaneseq
    %v3602 = vand.u32 %v3601, 127
    %vm3603 = vcmp.eq.s32.totalorder %v3600, %v3602
    %v3604 = vstv %s112
    %v3605 = vsub.f32 %v3596, %v3604
    %v3606 = vsel %vm3603, %v3605, %v3596
    %v3607 = vstv %s113
    %v3608 = vmul.f32 %v3606, %v3607
    %vm3609 = vcmask 27648
    %v3610 = vsel %vm3609, %v3608, -inf
    %3611 = vmax.xlane.f32.xlu0 %v3610
    %v3612 = vpop.xlane.xlu0 %3611
    %v3613 = vsub.f32 %v3608, %v3612
    %v3614 = vmul.f32 %v3613, 1.442695
    %v3615 = vpow.pop %v3614
    %v3616 = vsel %vm3609, %v3615, 0.0
    %3617 = vadd.xlane.f32.xlu0 %v3616
    %v3618 = vpop.xlane.xlu0 %3617
    %v3619 = vlog2.pop %v3618
    %v3620 = vmul.f32 %v3619, 0.6931472
    %v3621 = vadd.f32 %v3620, %v3612
    %v3622 = vsel %vm3603, %v3608, 0.0
    %v3623 = vsel %vm3609, %v3622, 0.0
    %3624 = vadd.xlane.f32.xlu0 %v3623
    %v3625 = vpop.xlane.xlu0 %3624
    %v3626 = vsub.f32 %v3621, %v3625
    %vm3627 = vcmask 3072
    %v3628 = vsel %vm3627, %v3626, 0.0
    %3629 = vadd.xlane.f32.xlu0 %v3628
    %v3630 = vpop.xlane.xlu0 %3629
    %v3631 = vrot.slane %v3630, 4
    %v3632 = vadd.f32 %v3630, %v3631
    %v3633 = vrot.slane %v3632, 2
    %v3634 = vadd.f32 %v3632, %v3633
    %v3635 = vrot.slane %v3634, 1
    %v3636 = vadd.f32 %v3634, %v3635
    %s3637 = vtos %v3636
    %v3638 = vrcp.pop 4.0
    %s3639 = vtos %v3638
    %s3640 = smul.f32 %s3637, %s3639
    %v3641 = vstv %s3640
    %vm3642 = vcmask 0
    %3643 = vst.msk [vmem:[#allocation15] sm:$0x1] %vm3642, %v3641
    // Predicated region
    $region58: #{tpu_custom_call.1} parent=1 // pred_check
      _
    $region59: #{tpu_custom_call.1} parent=1 // pred_check_branch
      %3645 = sbr.rel (0) target = $region61
    $region60: #{tpu_custom_call.1} parent=1 // pred_region
      %s3647 = ssub.s32 16, 16
      %3648 = vsyncadd [#allocation4], %s3647
      %s3650 = sshll.u32 [#allocation15], 4
      %s3651 = int_to_ptr.vmem [resolvable:$true] %s3650
      %3653 = dma.vmem_to_hbm [thread:$0]  %s3651, 16, %s7, [#allocation4]
    $region61: #{tpu_custom_call.1} parent=1 // pred_fallthru
      _
    // Predicated region
    $region62: #{tpu_custom_call.1} parent=1 // pred_check
      _
    $region63: #{tpu_custom_call.1} parent=1 // pred_check_branch
      %3655 = sbr.rel (0) target = $region65
    $region64: #{tpu_custom_call.1} parent=1 // pred_region
      %3656 = dma.done [#allocation4], 16
    $region65: #{tpu_custom_call.1} parent=1 // pred_fallthru
      _
    %3657 = vsyncpa [#allocation3], 1
    %3658 = vsyncpa [#allocation8], 1
    %3659 = vsyncpa [#allocation11], 1
    %3660 = vsyncpa [#allocation14], 1
    %3661 = vsyncpa [#allocation4], 1
    %3662 = vsyncpa [#allocation5], 1

</llo_original>
